<compile_context>
chip_gen: v6e
topology: v6e:2x2x1
jax: 0.10.0
libtpu: 0.0.40
codegen_flags: <defaults>
</compile_context>

<pallas_src>
import functools

import jax
import jax.numpy as jnp
from jax.experimental import pallas as pl
from jax.experimental.pallas import tpu as pltpu


# ----------------------------------------------------------------------------
# Fused Pallas kernel: interleaved 2-layer LSTM recurrence + FC epilogue
# ----------------------------------------------------------------------------
def _fused_lstm_fc_kernel(
    x_ref,       # (Tc*Bp, D)  bf16 : time-major flattened input chunk
    wih0_ref,    # (D, 4H)     bf16
    whh0_ref,    # (H, 4H)     bf16
    b0_ref,      # (1, 4H)     f32  (b_ih + b_hh, layer 0, gate-reordered)
    w1_ref,      # (2H, 4H)    bf16 ([W_ih1 ; W_hh1] concatenated, gate-reordered)
    b1_ref,      # (1, 4H)     f32  (b_ih + b_hh, layer 1, gate-reordered)
    fcw_ref,     # (H, C)      f32
    fcb_ref,     # (1, C)      f32
    out_ref,     # (Bp, C)     f32  (written on the last chunk)
    gx_sc,       # (Tc*Bp, 4H) f32  scratch: hoisted layer-0 input projection
    h0_sc,       # (Bp, H)     bf16 carry
    c0_sc,       # (Bp, H)     f32  carry
    h1_sc,       # (Bp, H)     bf16 carry
    c1_sc,       # (Bp, H)     f32  carry
    *,
    bp, hidden, tc, t_total, unroll, needs_mask,
):
    H = hidden
    Bp = bp
    k = pl.program_id(0)
    nk = pl.num_programs(0)

    # ---- zero the carries (and out, as cheap insurance) on the first chunk ----
    @pl.when(k == 0)
    def _():
        h0_sc[...] = jnp.zeros_like(h0_sc)
        c0_sc[...] = jnp.zeros_like(c0_sc)
        h1_sc[...] = jnp.zeros_like(h1_sc)
        c1_sc[...] = jnp.zeros_like(c1_sc)
        out_ref[...] = jnp.zeros_like(out_ref)

    # ---- layer-0 input projection hoisted out of the recurrence:
    #      one big MXU matmul for the whole chunk (bias pre-summed & folded in) ----
    gx_sc[...] = (
        jnp.dot(x_ref[...], wih0_ref[...], preferred_element_type=jnp.float32)
        + b0_ref[...]
    )

    # Hoist weight / bias reads (and the bias broadcast) out of the serial loop.
    whh0 = whh0_ref[...]
    w1 = w1_ref[...]
    b1b = jnp.broadcast_to(b1_ref[...], (Bp, 4 * H))

    # Valid timesteps in this chunk (only matters when T was padded up).
    valid = (t_total - k * tc) if needs_mask else tc

    def gate_pointwise(gates, c):
        # gate columns were reordered to [i, f, o | g] at prep time:
        # one sigmoid over (Bp, 3H) + one tanh over (Bp, H).
        sig = jax.nn.sigmoid(gates[:, : 3 * H])
        i_g = sig[:, 0 * H:1 * H]
        f_g = sig[:, 1 * H:2 * H]
        o_g = sig[:, 2 * H:3 * H]
        g_g = jnp.tanh(gates[:, 3 * H:4 * H])
        c_new = f_g * c + i_g * g_g
        h_new = o_g * jnp.tanh(c_new)
        return h_new, c_new

    def step(t, carry):
        h0, c0, h1, c1 = carry                                    # h* bf16, c* f32

        row = pl.multiple_of(t * Bp, Bp)
        gx_t = gx_sc[pl.ds(row, Bp), :]                           # (Bp, 4H) f32

        # ---- layer 0, step t: only h0 @ W_hh0 remains on the serial path ----
        gates0 = gx_t + jnp.dot(h0, whh0, preferred_element_type=jnp.float32)
        h0n_f, c0n = gate_pointwise(gates0, c0)
        h0n = h0n_f.astype(jnp.bfloat16)

        # ---- layer 1, step t: fused input+recurrent matmul, K = 2H ----
        lhs1 = jnp.concatenate([h0n, h1], axis=-1)                # (Bp, 2H) bf16
        gates1 = b1b + jnp.dot(lhs1, w1, preferred_element_type=jnp.float32)
        h1n_f, c1n = gate_pointwise(gates1, c1)
        h1n = h1n_f.astype(jnp.bfloat16)

        if needs_mask:
            keep = t < valid
            h0n = jnp.where(keep, h0n, h0)
            c0n = jnp.where(keep, c0n, c0)
            h1n = jnp.where(keep, h1n, h1)
            c1n = jnp.where(keep, c1n, c1)
        return (h0n, c0n, h1n, c1n)

    h0, c0, h1, c1 = jax.lax.fori_loop(
        0, tc, step,
        (h0_sc[...], c0_sc[...], h1_sc[...], c1_sc[...]),
        unroll=unroll,
    )
    h0_sc[...] = h0
    c0_sc[...] = c0
    h1_sc[...] = h1
    c1_sc[...] = c1

    # ---- FC epilogue on the last chunk only (out[:, -1, :] @ W_fc^T + b_fc) ----
    @pl.when(k == nk - 1)
    def _():
        out_ref[...] = (
            jnp.dot(h1.astype(jnp.float32), fcw_ref[...],
                    preferred_element_type=jnp.float32)
            + fcb_ref[...]
        )


# ----------------------------------------------------------------------------
# Parameter prep (done ONCE, outside the jitted forward)
# ----------------------------------------------------------------------------
def prepare_params(params):
    """PyTorch-layout params -> kernel layout.

    Pre-transposed, bias pre-summed, gate columns reordered [i,f,g,o] -> [i,f,o,g],
    layer-1 input/recurrent weights concatenated along K, gate weights cast to bf16.
    """
    assert len(params["lstm"]) == 2, "fused kernel implements the module's num_layers=2"
    l0, l1 = params["lstm"]
    H = l0["w_hh"].shape[1]

    def reorder(m):  # (..., 4H) columns [i, f, g, o] -> [i, f, o, g]
        return jnp.concatenate(
            [m[..., 0 * H:2 * H], m[..., 3 * H:4 * H], m[..., 2 * H:3 * H]], axis=-1)

    def prep_w(w):   # (4H, K) -> (K, 4H), gate-reordered
        return reorder(jnp.transpose(w))

    wih0 = prep_w(l0["w_ih"]).astype(jnp.bfloat16)                          # (D, 4H)
    whh0 = prep_w(l0["w_hh"]).astype(jnp.bfloat16)                          # (H, 4H)
    b0 = reorder((l0["b_ih"] + l0["b_hh"]).reshape(1, 4 * H)).astype(jnp.float32)

    w1 = jnp.concatenate(
        [prep_w(l1["w_ih"]), prep_w(l1["w_hh"])], axis=0).astype(jnp.bfloat16)  # (2H, 4H)
    b1 = reorder((l1["b_ih"] + l1["b_hh"]).reshape(1, 4 * H)).astype(jnp.float32)

    return {
        "wih0": wih0, "whh0": whh0, "b0": b0,
        "w1": w1, "b1": b1,
        "fc_w": jnp.transpose(params["fc_w"]).astype(jnp.float32),          # (H, C)
        "fc_b": params["fc_b"].reshape(1, -1).astype(jnp.float32),          # (1, C)
    }


# ----------------------------------------------------------------------------
# Forward
# ----------------------------------------------------------------------------
@functools.partial(jax.jit, static_argnames=("t_chunk", "unroll"))
def lstm_model_forward(x, kparams, *, t_chunk=64, unroll=16):
    """x: (B, T, D) batch_first f32, like the PyTorch module. Returns (B, C) f32."""
    B, T, D = x.shape
    H = kparams["whh0"].shape[0]
    C = kparams["fc_w"].shape[1]

    # Pad batch to the f32 sublane width; pad T up to a multiple of the chunk
    # (tail steps are masked inside the kernel) instead of shrinking the chunk.
    Bp = ((B + 7) // 8) * 8
    tc = min(int(t_chunk), T)
    num_chunks = -(-T // tc)
    T_pad = num_chunks * tc
    ur = max(1, min(int(unroll), tc))
    needs_mask = (T_pad != T)

    xp = jnp.pad(x, ((0, Bp - B), (0, T_pad - T), (0, 0)))
    # Time-major, flattened to a dense 2-D slab, cast to bf16 once up front.
    x_tm = jnp.transpose(xp, (1, 0, 2)).reshape(T_pad * Bp, D).astype(jnp.bfloat16)

    kernel = functools.partial(
        _fused_lstm_fc_kernel,
        bp=Bp, hidden=H, tc=tc, t_total=T, unroll=ur, needs_mask=needs_mask)

    out = pl.pallas_call(
        kernel,
        out_shape=jax.ShapeDtypeStruct((Bp, C), jnp.float32),
        grid=(num_chunks,),
        in_specs=[
            pl.BlockSpec((tc * Bp, D), lambda k: (k, 0)),         # x chunk (double-buffered)
            pl.BlockSpec((D, 4 * H), lambda k: (0, 0)),           # wih0 (resident)
            pl.BlockSpec((H, 4 * H), lambda k: (0, 0)),           # whh0
            pl.BlockSpec((1, 4 * H), lambda k: (0, 0)),           # b0
            pl.BlockSpec((2 * H, 4 * H), lambda k: (0, 0)),       # [wih1; whh1]
            pl.BlockSpec((1, 4 * H), lambda k: (0, 0)),           # b1
            pl.BlockSpec((H, C), lambda k: (0, 0)),               # fc_w
            pl.BlockSpec((1, C), lambda k: (0, 0)),               # fc_b
        ],
        out_specs=pl.BlockSpec((Bp, C), lambda k: (0, 0)),
        scratch_shapes=[
            pltpu.VMEM((tc * Bp, 4 * H), jnp.float32),            # hoisted layer-0 projection
            pltpu.VMEM((Bp, H), jnp.bfloat16),                    # h0 carry
            pltpu.VMEM((Bp, H), jnp.float32),                     # c0 carry
            pltpu.VMEM((Bp, H), jnp.bfloat16),                    # h1 carry
            pltpu.VMEM((Bp, H), jnp.float32),                     # c1 carry
        ],
        compiler_params=pltpu.CompilerParams(
            dimension_semantics=("arbitrary",),                   # time chunks are sequential
        ),
    )(
        x_tm,
        kparams["wih0"], kparams["whh0"], kparams["b0"],
        kparams["w1"], kparams["b1"],
        kparams["fc_w"], kparams["fc_b"],
    )
    return out[:B]


# ----------------------------------------------------------------------------
# Deterministic parameter init (matches nn.LSTM / nn.Linear shapes & layout)
# ----------------------------------------------------------------------------
def init_params(key, input_size, hidden_size, num_layers, num_classes):
    stdv = 1.0 / jnp.sqrt(jnp.float32(hidden_size))
    params = {"lstm": []}
    for l in range(num_layers):
        in_dim = input_size if l == 0 else hidden_size
        key, k1, k2, k3, k4 = jax.random.split(key, 5)
        params["lstm"].append({
            "w_ih": jax.random.uniform(k1, (4 * hidden_size, in_dim), jnp.float32, -stdv, stdv),
            "w_hh": jax.random.uniform(k2, (4 * hidden_size, hidden_size), jnp.float32, -stdv, stdv),
            "b_ih": jax.random.uniform(k3, (4 * hidden_size,), jnp.float32, -stdv, stdv),
            "b_hh": jax.random.uniform(k4, (4 * hidden_size,), jnp.float32, -stdv, stdv),
        })
    key, k5, k6 = jax.random.split(key, 3)
    params["fc_w"] = jax.random.uniform(k5, (num_classes, hidden_size), jnp.float32, -stdv, stdv)
    params["fc_b"] = jax.random.uniform(k6, (num_classes,), jnp.float32, -stdv, stdv)
    return params


# ----------------------------------------------------------------------------
# Pure-JAX f32 reference (mirrors the PyTorch forward in eval mode)
# ----------------------------------------------------------------------------
def reference_forward(x, params):
    B, T, _ = x.shape
    h_seq = x
    for layer in params["lstm"]:
        H = layer["w_hh"].shape[1]
        h = jnp.zeros((B, H), jnp.float32)
        c = jnp.zeros((B, H), jnp.float32)
        outs = []
        for t in range(T):
            gates = (h_seq[:, t, :] @ layer["w_ih"].T + layer["b_ih"]
                     + h @ layer["w_hh"].T + layer["b_hh"])
            i = jax.nn.sigmoid(gates[:, 0 * H:1 * H])
            f = jax.nn.sigmoid(gates[:, 1 * H:2 * H])
            g = jnp.tanh(gates[:, 2 * H:3 * H])
            o = jax.nn.sigmoid(gates[:, 3 * H:4 * H])
            c = f * c + i * g
            h = o * jnp.tanh(c)
            outs.append(h)
        h_seq = jnp.stack(outs, axis=1)
    return h_seq[:, -1, :] @ params["fc_w"].T + params["fc_b"]


# ----------------------------------------------------------------------------
if __name__ == "__main__":
    # Small shapes consistent with the module: batch=2, seq=8, input_size=16,
    # hidden_size=128 (module default -> 128-lane aligned), num_layers=2, classes=2.
    B, T, D, H, C = 2, 8, 16, 128, 2

    key = jax.random.PRNGKey(0)
    key, kx = jax.random.split(key)
    x = jax.random.normal(kx, (B, T, D), jnp.float32)

    params = init_params(key, input_size=D, hidden_size=H, num_layers=2, num_classes=C)
    kparams = prepare_params(params)          # one-time layout/dtype prep

    out = lstm_model_forward(x, kparams)
    out = jax.block_until_ready(out)

    ref = reference_forward(x, params)
    assert out.shape == (B, C), out.shape
    # bf16 gate matmuls / bf16 hidden carries in the kernel vs. f32 reference.
    assert jnp.allclose(out, ref, atol=5e-2, rtol=5e-2), (out, ref)

    print("KERNEL_OK")
</pallas_src>

<mosaic_0001>
module attributes {stable_mosaic.version = 11 : i64} {
  func.func @_fused_lstm_fc_kernel(%arg0: i32, %arg1: memref<64x16xbf16, #tpu.memory_space<vmem>>, %arg2: memref<16x512xbf16, #tpu.memory_space<vmem>>, %arg3: memref<128x512xbf16, #tpu.memory_space<vmem>>, %arg4: memref<1x512xf32, #tpu.memory_space<vmem>>, %arg5: memref<256x512xbf16, #tpu.memory_space<vmem>>, %arg6: memref<1x512xf32, #tpu.memory_space<vmem>>, %arg7: memref<128x2xf32, #tpu.memory_space<vmem>>, %arg8: memref<1x2xf32, #tpu.memory_space<vmem>>, %arg9: memref<8x2xf32, #tpu.memory_space<vmem>>, %arg10: memref<64x512xf32, #tpu.memory_space<vmem>>, %arg11: memref<8x128xbf16, #tpu.memory_space<vmem>>, %arg12: memref<8x128xf32, #tpu.memory_space<vmem>>, %arg13: memref<8x128xbf16, #tpu.memory_space<vmem>>, %arg14: memref<8x128xf32, #tpu.memory_space<vmem>>) attributes {dimension_semantics = [#tpu.dimension_semantics<arbitrary>], iteration_bounds = array<i64: 1>, scalar_prefetch = 0 : i64, scratch_operands = 5 : i64, tpu.core_type = #tpu.core_type<tc>, window_params = [{transform_indices = @transform_0, window_bounds = array<i64: 64, 16>}, {pipeline_mode = #tpu.pipeline_mode<synchronous>, transform_indices = @transform_1, window_bounds = array<i64: 16, 512>}, {pipeline_mode = #tpu.pipeline_mode<synchronous>, transform_indices = @transform_2, window_bounds = array<i64: 128, 512>}, {pipeline_mode = #tpu.pipeline_mode<synchronous>, transform_indices = @transform_3, window_bounds = array<i64: 1, 512>}, {pipeline_mode = #tpu.pipeline_mode<synchronous>, transform_indices = @transform_4, window_bounds = array<i64: 256, 512>}, {pipeline_mode = #tpu.pipeline_mode<synchronous>, transform_indices = @transform_5, window_bounds = array<i64: 1, 512>}, {pipeline_mode = #tpu.pipeline_mode<synchronous>, transform_indices = @transform_6, window_bounds = array<i64: 128, 2>}, {pipeline_mode = #tpu.pipeline_mode<synchronous>, transform_indices = @transform_7, window_bounds = array<i64: 1, 2>}, {pipeline_mode = #tpu.pipeline_mode<synchronous>, transform_indices = @transform_8, window_bounds = array<i64: 8, 2>}]} {
    %c0_i32 = arith.constant 0 : i32
    %0 = arith.cmpi eq, %arg0, %c0_i32 : i32
    %1 = arith.extui %0 : i1 to i32
    %c0_i32_0 = arith.constant 0 : i32
    %2 = arith.cmpi ne, %1, %c0_i32_0 : i32
    scf.if %2 {
      %cst_81 = arith.constant 0.000000e+00 : bf16
      %370 = vector.broadcast %cst_81 : bf16 to vector<8x128xbf16>
      %c0_82 = arith.constant 0 : index
      %c0_83 = arith.constant 0 : index
      %371 = vector.load %arg11[%c0_82, %c0_83] : memref<8x128xbf16, #tpu.memory_space<vmem>>, vector<8x128xbf16>
      tpu.vector_store %arg11[%c0_82, %c0_83], %370 {strides = array<i32>} : memref<8x128xbf16, #tpu.memory_space<vmem>>, vector<8x128xbf16>,
      %cst_84 = arith.constant 0.000000e+00 : f32
      %372 = vector.broadcast %cst_84 : f32 to vector<8x128xf32>
      %c0_85 = arith.constant 0 : index
      %c0_86 = arith.constant 0 : index
      %373 = vector.load %arg12[%c0_85, %c0_86] : memref<8x128xf32, #tpu.memory_space<vmem>>, vector<8x128xf32>
      tpu.vector_store %arg12[%c0_85, %c0_86], %372 {strides = array<i32>} : memref<8x128xf32, #tpu.memory_space<vmem>>, vector<8x128xf32>,
      %cst_87 = arith.constant 0.000000e+00 : bf16
      %374 = vector.broadcast %cst_87 : bf16 to vector<8x128xbf16>
      %c0_88 = arith.constant 0 : index
      %c0_89 = arith.constant 0 : index
      %375 = vector.load %arg13[%c0_88, %c0_89] : memref<8x128xbf16, #tpu.memory_space<vmem>>, vector<8x128xbf16>
      tpu.vector_store %arg13[%c0_88, %c0_89], %374 {strides = array<i32>} : memref<8x128xbf16, #tpu.memory_space<vmem>>, vector<8x128xbf16>,
      %cst_90 = arith.constant 0.000000e+00 : f32
      %376 = vector.broadcast %cst_90 : f32 to vector<8x128xf32>
      %c0_91 = arith.constant 0 : index
      %c0_92 = arith.constant 0 : index
      %377 = vector.load %arg14[%c0_91, %c0_92] : memref<8x128xf32, #tpu.memory_space<vmem>>, vector<8x128xf32>
      tpu.vector_store %arg14[%c0_91, %c0_92], %376 {strides = array<i32>} : memref<8x128xf32, #tpu.memory_space<vmem>>, vector<8x128xf32>,
      %cst_93 = arith.constant 0.000000e+00 : f32
      %378 = vector.broadcast %cst_93 : f32 to vector<8x2xf32>
      %c0_94 = arith.constant 0 : index
      %c0_95 = arith.constant 0 : index
      %379 = vector.load %arg9[%c0_94, %c0_95] : memref<8x2xf32, #tpu.memory_space<vmem>>, vector<8x2xf32>
      tpu.vector_store %arg9[%c0_94, %c0_95], %378 {strides = array<i32>} : memref<8x2xf32, #tpu.memory_space<vmem>>, vector<8x2xf32>,
    } else {
    }
    %c0 = arith.constant 0 : index
    %c0_1 = arith.constant 0 : index
    %3 = vector.load %arg1[%c0, %c0_1] : memref<64x16xbf16, #tpu.memory_space<vmem>>, vector<64x16xbf16>
    %c0_2 = arith.constant 0 : index
    %c0_3 = arith.constant 0 : index
    %4 = vector.load %arg2[%c0_2, %c0_3] : memref<16x512xbf16, #tpu.memory_space<vmem>>, vector<16x512xbf16>
    %cst = arith.constant dense<0.000000e+00> : vector<64x512xf32>
    %5 = tpu.matmul %3, %4, %cst {dimension_numbers = #tpu.dot_dimension_numbers<[1], [0], [0], [1], [0, 0, 1, 1], [], []>} : vector<64x16xbf16>, vector<16x512xbf16>, vector<64x512xf32> -> vector<64x512xf32>
    %c0_4 = arith.constant 0 : index
    %c0_5 = arith.constant 0 : index
    %6 = vector.load %arg4[%c0_4, %c0_5] : memref<1x512xf32, #tpu.memory_space<vmem>>, vector<1x512xf32>
    %7 = vector.broadcast %6 : vector<1x512xf32> to vector<64x512xf32>
    %8 = arith.addf %5, %7 : vector<64x512xf32>
    %c0_6 = arith.constant 0 : index
    %c0_7 = arith.constant 0 : index
    %9 = vector.load %arg10[%c0_6, %c0_7] : memref<64x512xf32, #tpu.memory_space<vmem>>, vector<64x512xf32>
    tpu.vector_store %arg10[%c0_6, %c0_7], %8 {strides = array<i32>} : memref<64x512xf32, #tpu.memory_space<vmem>>, vector<64x512xf32>,
    %c0_8 = arith.constant 0 : index
    %c0_9 = arith.constant 0 : index
    %10 = vector.load %arg3[%c0_8, %c0_9] : memref<128x512xbf16, #tpu.memory_space<vmem>>, vector<128x512xbf16>
    %c0_10 = arith.constant 0 : index
    %c0_11 = arith.constant 0 : index
    %11 = vector.load %arg5[%c0_10, %c0_11] : memref<256x512xbf16, #tpu.memory_space<vmem>>, vector<256x512xbf16>
    %c0_12 = arith.constant 0 : index
    %c0_13 = arith.constant 0 : index
    %12 = vector.load %arg6[%c0_12, %c0_13] : memref<1x512xf32, #tpu.memory_space<vmem>>, vector<1x512xf32>
    %13 = vector.shape_cast %12 : vector<1x512xf32> to vector<1x512xf32>
    %14 = vector.broadcast %13 : vector<1x512xf32> to vector<8x512xf32>
    %c0_14 = arith.constant 0 : index
    %c0_15 = arith.constant 0 : index
    %15 = vector.load %arg11[%c0_14, %c0_15] : memref<8x128xbf16, #tpu.memory_space<vmem>>, vector<8x128xbf16>
    %c0_16 = arith.constant 0 : index
    %c0_17 = arith.constant 0 : index
    %16 = vector.load %arg12[%c0_16, %c0_17] : memref<8x128xf32, #tpu.memory_space<vmem>>, vector<8x128xf32>
    %c0_18 = arith.constant 0 : index
    %c0_19 = arith.constant 0 : index
    %17 = vector.load %arg13[%c0_18, %c0_19] : memref<8x128xbf16, #tpu.memory_space<vmem>>, vector<8x128xbf16>
    %c0_20 = arith.constant 0 : index
    %c0_21 = arith.constant 0 : index
    %18 = vector.load %arg14[%c0_20, %c0_21] : memref<8x128xf32, #tpu.memory_space<vmem>>, vector<8x128xf32>
    %c0_i32_22 = arith.constant 0 : i32
    %c8_i32 = arith.constant 8 : i32
    %19 = arith.muli %c0_i32_22, %c8_i32 : i32
    %20 = tpu.assume_multiple %19, 8 : i32
    %21 = arith.index_cast %20 : i32 to index
    %c0_23 = arith.constant 0 : index
    %22 = vector.load %arg10[%21, %c0_23] : memref<64x512xf32, #tpu.memory_space<vmem>>, vector<8x512xf32>
    %cst_24 = arith.constant dense<0.000000e+00> : vector<8x512xf32>
    %23 = tpu.matmul %15, %10, %cst_24 {dimension_numbers = #tpu.dot_dimension_numbers<[1], [0], [0], [1], [0, 0, 1, 1], [], []>} : vector<8x128xbf16>, vector<128x512xbf16>, vector<8x512xf32> -> vector<8x512xf32>
    %24 = arith.addf %22, %23 : vector<8x512xf32>
    %25 = vector.extract_strided_slice %24 {offsets = [0, 0], sizes = [8, 384], strides = [1, 1]} : vector<8x512xf32> to vector<8x384xf32>
    %26 = arith.negf %25 : vector<8x384xf32>
    %27 = math.exp %26 : vector<8x384xf32>
    %cst_25 = arith.constant 1.000000e+00 : f32
    %28 = vector.broadcast %cst_25 : f32 to vector<8x384xf32>
    %29 = arith.addf %28, %27 : vector<8x384xf32>
    %30 = arith.divf %28, %29 : vector<8x384xf32>
    %31 = vector.extract_strided_slice %30 {offsets = [0, 0], sizes = [8, 128], strides = [1, 1]} : vector<8x384xf32> to vector<8x128xf32>
    %32 = vector.extract_strided_slice %30 {offsets = [0, 128], sizes = [8, 128], strides = [1, 1]} : vector<8x384xf32> to vector<8x128xf32>
    %33 = vector.extract_strided_slice %30 {offsets = [0, 256], sizes = [8, 128], strides = [1, 1]} : vector<8x384xf32> to vector<8x128xf32>
    %34 = vector.extract_strided_slice %24 {offsets = [0, 384], sizes = [8, 128], strides = [1, 1]} : vector<8x512xf32> to vector<8x128xf32>
    %35 = math.tanh %34 : vector<8x128xf32>
    %36 = arith.mulf %32, %16 : vector<8x128xf32>
    %37 = arith.mulf %31, %35 : vector<8x128xf32>
    %38 = arith.addf %36, %37 : vector<8x128xf32>
    %39 = math.tanh %38 : vector<8x128xf32>
    %40 = arith.mulf %33, %39 : vector<8x128xf32>
    %41 = arith.truncf %40 : vector<8x128xf32> to vector<8x128xbf16>
    %42 = tpu.concatenate %41, %17 in 1 : vector<8x128xbf16>, vector<8x128xbf16> -> vector<8x256xbf16>
    %cst_26 = arith.constant dense<0.000000e+00> : vector<8x512xf32>
    %43 = tpu.matmul %42, %11, %cst_26 {dimension_numbers = #tpu.dot_dimension_numbers<[1], [0], [0], [1], [0, 0, 1, 1], [], []>} : vector<8x256xbf16>, vector<256x512xbf16>, vector<8x512xf32> -> vector<8x512xf32>
    %44 = arith.addf %14, %43 : vector<8x512xf32>
    %45 = vector.extract_strided_slice %44 {offsets = [0, 0], sizes = [8, 384], strides = [1, 1]} : vector<8x512xf32> to vector<8x384xf32>
    %46 = arith.negf %45 : vector<8x384xf32>
    %47 = math.exp %46 : vector<8x384xf32>
    %cst_27 = arith.constant 1.000000e+00 : f32
    %48 = vector.broadcast %cst_27 : f32 to vector<8x384xf32>
    %49 = arith.addf %48, %47 : vector<8x384xf32>
    %50 = arith.divf %48, %49 : vector<8x384xf32>
    %51 = vector.extract_strided_slice %50 {offsets = [0, 0], sizes = [8, 128], strides = [1, 1]} : vector<8x384xf32> to vector<8x128xf32>
    %52 = vector.extract_strided_slice %50 {offsets = [0, 128], sizes = [8, 128], strides = [1, 1]} : vector<8x384xf32> to vector<8x128xf32>
    %53 = vector.extract_strided_slice %50 {offsets = [0, 256], sizes = [8, 128], strides = [1, 1]} : vector<8x384xf32> to vector<8x128xf32>
    %54 = vector.extract_strided_slice %44 {offsets = [0, 384], sizes = [8, 128], strides = [1, 1]} : vector<8x512xf32> to vector<8x128xf32>
    %55 = math.tanh %54 : vector<8x128xf32>
    %56 = arith.mulf %52, %18 : vector<8x128xf32>
    %57 = arith.mulf %51, %55 : vector<8x128xf32>
    %58 = arith.addf %56, %57 : vector<8x128xf32>
    %59 = math.tanh %58 : vector<8x128xf32>
    %60 = arith.mulf %53, %59 : vector<8x128xf32>
    %61 = arith.truncf %60 : vector<8x128xf32> to vector<8x128xbf16>
    %c1_i32 = arith.constant 1 : i32
    %c8_i32_28 = arith.constant 8 : i32
    %62 = arith.muli %c1_i32, %c8_i32_28 : i32
    %63 = tpu.assume_multiple %62, 8 : i32
    %64 = arith.index_cast %63 : i32 to index
    %c0_29 = arith.constant 0 : index
    %65 = vector.load %arg10[%64, %c0_29] : memref<64x512xf32, #tpu.memory_space<vmem>>, vector<8x512xf32>
    %cst_30 = arith.constant dense<0.000000e+00> : vector<8x512xf32>
    %66 = tpu.matmul %41, %10, %cst_30 {dimension_numbers = #tpu.dot_dimension_numbers<[1], [0], [0], [1], [0, 0, 1, 1], [], []>} : vector<8x128xbf16>, vector<128x512xbf16>, vector<8x512xf32> -> vector<8x512xf32>
    %67 = arith.addf %65, %66 : vector<8x512xf32>
    %68 = vector.extract_strided_slice %67 {offsets = [0, 0], sizes = [8, 384], strides = [1, 1]} : vector<8x512xf32> to vector<8x384xf32>
    %69 = arith.negf %68 : vector<8x384xf32>
    %70 = math.exp %69 : vector<8x384xf32>
    %cst_31 = arith.constant 1.000000e+00 : f32
    %71 = vector.broadcast %cst_31 : f32 to vector<8x384xf32>
    %72 = arith.addf %71, %70 : vector<8x384xf32>
    %73 = arith.divf %71, %72 : vector<8x384xf32>
    %74 = vector.extract_strided_slice %73 {offsets = [0, 0], sizes = [8, 128], strides = [1, 1]} : vector<8x384xf32> to vector<8x128xf32>
    %75 = vector.extract_strided_slice %73 {offsets = [0, 128], sizes = [8, 128], strides = [1, 1]} : vector<8x384xf32> to vector<8x128xf32>
    %76 = vector.extract_strided_slice %73 {offsets = [0, 256], sizes = [8, 128], strides = [1, 1]} : vector<8x384xf32> to vector<8x128xf32>
    %77 = vector.extract_strided_slice %67 {offsets = [0, 384], sizes = [8, 128], strides = [1, 1]} : vector<8x512xf32> to vector<8x128xf32>
    %78 = math.tanh %77 : vector<8x128xf32>
    %79 = arith.mulf %75, %38 : vector<8x128xf32>
    %80 = arith.mulf %74, %78 : vector<8x128xf32>
    %81 = arith.addf %79, %80 : vector<8x128xf32>
    %82 = math.tanh %81 : vector<8x128xf32>
    %83 = arith.mulf %76, %82 : vector<8x128xf32>
    %84 = arith.truncf %83 : vector<8x128xf32> to vector<8x128xbf16>
    %85 = tpu.concatenate %84, %61 in 1 : vector<8x128xbf16>, vector<8x128xbf16> -> vector<8x256xbf16>
    %cst_32 = arith.constant dense<0.000000e+00> : vector<8x512xf32>
    %86 = tpu.matmul %85, %11, %cst_32 {dimension_numbers = #tpu.dot_dimension_numbers<[1], [0], [0], [1], [0, 0, 1, 1], [], []>} : vector<8x256xbf16>, vector<256x512xbf16>, vector<8x512xf32> -> vector<8x512xf32>
    %87 = arith.addf %14, %86 : vector<8x512xf32>
    %88 = vector.extract_strided_slice %87 {offsets = [0, 0], sizes = [8, 384], strides = [1, 1]} : vector<8x512xf32> to vector<8x384xf32>
    %89 = arith.negf %88 : vector<8x384xf32>
    %90 = math.exp %89 : vector<8x384xf32>
    %cst_33 = arith.constant 1.000000e+00 : f32
    %91 = vector.broadcast %cst_33 : f32 to vector<8x384xf32>
    %92 = arith.addf %91, %90 : vector<8x384xf32>
    %93 = arith.divf %91, %92 : vector<8x384xf32>
    %94 = vector.extract_strided_slice %93 {offsets = [0, 0], sizes = [8, 128], strides = [1, 1]} : vector<8x384xf32> to vector<8x128xf32>
    %95 = vector.extract_strided_slice %93 {offsets = [0, 128], sizes = [8, 128], strides = [1, 1]} : vector<8x384xf32> to vector<8x128xf32>
    %96 = vector.extract_strided_slice %93 {offsets = [0, 256], sizes = [8, 128], strides = [1, 1]} : vector<8x384xf32> to vector<8x128xf32>
    %97 = vector.extract_strided_slice %87 {offsets = [0, 384], sizes = [8, 128], strides = [1, 1]} : vector<8x512xf32> to vector<8x128xf32>
    %98 = math.tanh %97 : vector<8x128xf32>
    %99 = arith.mulf %95, %58 : vector<8x128xf32>
    %100 = arith.mulf %94, %98 : vector<8x128xf32>
    %101 = arith.addf %99, %100 : vector<8x128xf32>
    %102 = math.tanh %101 : vector<8x128xf32>
    %103 = arith.mulf %96, %102 : vector<8x128xf32>
    %104 = arith.truncf %103 : vector<8x128xf32> to vector<8x128xbf16>
    %c2_i32 = arith.constant 2 : i32
    %c8_i32_34 = arith.constant 8 : i32
    %105 = arith.muli %c2_i32, %c8_i32_34 : i32
    %106 = tpu.assume_multiple %105, 8 : i32
    %107 = arith.index_cast %106 : i32 to index
    %c0_35 = arith.constant 0 : index
    %108 = vector.load %arg10[%107, %c0_35] : memref<64x512xf32, #tpu.memory_space<vmem>>, vector<8x512xf32>
    %cst_36 = arith.constant dense<0.000000e+00> : vector<8x512xf32>
    %109 = tpu.matmul %84, %10, %cst_36 {dimension_numbers = #tpu.dot_dimension_numbers<[1], [0], [0], [1], [0, 0, 1, 1], [], []>} : vector<8x128xbf16>, vector<128x512xbf16>, vector<8x512xf32> -> vector<8x512xf32>
    %110 = arith.addf %108, %109 : vector<8x512xf32>
    %111 = vector.extract_strided_slice %110 {offsets = [0, 0], sizes = [8, 384], strides = [1, 1]} : vector<8x512xf32> to vector<8x384xf32>
    %112 = arith.negf %111 : vector<8x384xf32>
    %113 = math.exp %112 : vector<8x384xf32>
    %cst_37 = arith.constant 1.000000e+00 : f32
    %114 = vector.broadcast %cst_37 : f32 to vector<8x384xf32>
    %115 = arith.addf %114, %113 : vector<8x384xf32>
    %116 = arith.divf %114, %115 : vector<8x384xf32>
    %117 = vector.extract_strided_slice %116 {offsets = [0, 0], sizes = [8, 128], strides = [1, 1]} : vector<8x384xf32> to vector<8x128xf32>
    %118 = vector.extract_strided_slice %116 {offsets = [0, 128], sizes = [8, 128], strides = [1, 1]} : vector<8x384xf32> to vector<8x128xf32>
    %119 = vector.extract_strided_slice %116 {offsets = [0, 256], sizes = [8, 128], strides = [1, 1]} : vector<8x384xf32> to vector<8x128xf32>
    %120 = vector.extract_strided_slice %110 {offsets = [0, 384], sizes = [8, 128], strides = [1, 1]} : vector<8x512xf32> to vector<8x128xf32>
    %121 = math.tanh %120 : vector<8x128xf32>
    %122 = arith.mulf %118, %81 : vector<8x128xf32>
    %123 = arith.mulf %117, %121 : vector<8x128xf32>
    %124 = arith.addf %122, %123 : vector<8x128xf32>
    %125 = math.tanh %124 : vector<8x128xf32>
    %126 = arith.mulf %119, %125 : vector<8x128xf32>
    %127 = arith.truncf %126 : vector<8x128xf32> to vector<8x128xbf16>
    %128 = tpu.concatenate %127, %104 in 1 : vector<8x128xbf16>, vector<8x128xbf16> -> vector<8x256xbf16>
    %cst_38 = arith.constant dense<0.000000e+00> : vector<8x512xf32>
    %129 = tpu.matmul %128, %11, %cst_38 {dimension_numbers = #tpu.dot_dimension_numbers<[1], [0], [0], [1], [0, 0, 1, 1], [], []>} : vector<8x256xbf16>, vector<256x512xbf16>, vector<8x512xf32> -> vector<8x512xf32>
    %130 = arith.addf %14, %129 : vector<8x512xf32>
    %131 = vector.extract_strided_slice %130 {offsets = [0, 0], sizes = [8, 384], strides = [1, 1]} : vector<8x512xf32> to vector<8x384xf32>
    %132 = arith.negf %131 : vector<8x384xf32>
    %133 = math.exp %132 : vector<8x384xf32>
    %cst_39 = arith.constant 1.000000e+00 : f32
    %134 = vector.broadcast %cst_39 : f32 to vector<8x384xf32>
    %135 = arith.addf %134, %133 : vector<8x384xf32>
    %136 = arith.divf %134, %135 : vector<8x384xf32>
    %137 = vector.extract_strided_slice %136 {offsets = [0, 0], sizes = [8, 128], strides = [1, 1]} : vector<8x384xf32> to vector<8x128xf32>
    %138 = vector.extract_strided_slice %136 {offsets = [0, 128], sizes = [8, 128], strides = [1, 1]} : vector<8x384xf32> to vector<8x128xf32>
    %139 = vector.extract_strided_slice %136 {offsets = [0, 256], sizes = [8, 128], strides = [1, 1]} : vector<8x384xf32> to vector<8x128xf32>
    %140 = vector.extract_strided_slice %130 {offsets = [0, 384], sizes = [8, 128], strides = [1, 1]} : vector<8x512xf32> to vector<8x128xf32>
    %141 = math.tanh %140 : vector<8x128xf32>
    %142 = arith.mulf %138, %101 : vector<8x128xf32>
    %143 = arith.mulf %137, %141 : vector<8x128xf32>
    %144 = arith.addf %142, %143 : vector<8x128xf32>
    %145 = math.tanh %144 : vector<8x128xf32>
    %146 = arith.mulf %139, %145 : vector<8x128xf32>
    %147 = arith.truncf %146 : vector<8x128xf32> to vector<8x128xbf16>
    %c3_i32 = arith.constant 3 : i32
    %c8_i32_40 = arith.constant 8 : i32
    %148 = arith.muli %c3_i32, %c8_i32_40 : i32
    %149 = tpu.assume_multiple %148, 8 : i32
    %150 = arith.index_cast %149 : i32 to index
    %c0_41 = arith.constant 0 : index
    %151 = vector.load %arg10[%150, %c0_41] : memref<64x512xf32, #tpu.memory_space<vmem>>, vector<8x512xf32>
    %cst_42 = arith.constant dense<0.000000e+00> : vector<8x512xf32>
    %152 = tpu.matmul %127, %10, %cst_42 {dimension_numbers = #tpu.dot_dimension_numbers<[1], [0], [0], [1], [0, 0, 1, 1], [], []>} : vector<8x128xbf16>, vector<128x512xbf16>, vector<8x512xf32> -> vector<8x512xf32>
    %153 = arith.addf %151, %152 : vector<8x512xf32>
    %154 = vector.extract_strided_slice %153 {offsets = [0, 0], sizes = [8, 384], strides = [1, 1]} : vector<8x512xf32> to vector<8x384xf32>
    %155 = arith.negf %154 : vector<8x384xf32>
    %156 = math.exp %155 : vector<8x384xf32>
    %cst_43 = arith.constant 1.000000e+00 : f32
    %157 = vector.broadcast %cst_43 : f32 to vector<8x384xf32>
    %158 = arith.addf %157, %156 : vector<8x384xf32>
    %159 = arith.divf %157, %158 : vector<8x384xf32>
    %160 = vector.extract_strided_slice %159 {offsets = [0, 0], sizes = [8, 128], strides = [1, 1]} : vector<8x384xf32> to vector<8x128xf32>
    %161 = vector.extract_strided_slice %159 {offsets = [0, 128], sizes = [8, 128], strides = [1, 1]} : vector<8x384xf32> to vector<8x128xf32>
    %162 = vector.extract_strided_slice %159 {offsets = [0, 256], sizes = [8, 128], strides = [1, 1]} : vector<8x384xf32> to vector<8x128xf32>
    %163 = vector.extract_strided_slice %153 {offsets = [0, 384], sizes = [8, 128], strides = [1, 1]} : vector<8x512xf32> to vector<8x128xf32>
    %164 = math.tanh %163 : vector<8x128xf32>
    %165 = arith.mulf %161, %124 : vector<8x128xf32>
    %166 = arith.mulf %160, %164 : vector<8x128xf32>
    %167 = arith.addf %165, %166 : vector<8x128xf32>
    %168 = math.tanh %167 : vector<8x128xf32>
    %169 = arith.mulf %162, %168 : vector<8x128xf32>
    %170 = arith.truncf %169 : vector<8x128xf32> to vector<8x128xbf16>
    %171 = tpu.concatenate %170, %147 in 1 : vector<8x128xbf16>, vector<8x128xbf16> -> vector<8x256xbf16>
    %cst_44 = arith.constant dense<0.000000e+00> : vector<8x512xf32>
    %172 = tpu.matmul %171, %11, %cst_44 {dimension_numbers = #tpu.dot_dimension_numbers<[1], [0], [0], [1], [0, 0, 1, 1], [], []>} : vector<8x256xbf16>, vector<256x512xbf16>, vector<8x512xf32> -> vector<8x512xf32>
    %173 = arith.addf %14, %172 : vector<8x512xf32>
    %174 = vector.extract_strided_slice %173 {offsets = [0, 0], sizes = [8, 384], strides = [1, 1]} : vector<8x512xf32> to vector<8x384xf32>
    %175 = arith.negf %174 : vector<8x384xf32>
    %176 = math.exp %175 : vector<8x384xf32>
    %cst_45 = arith.constant 1.000000e+00 : f32
    %177 = vector.broadcast %cst_45 : f32 to vector<8x384xf32>
    %178 = arith.addf %177, %176 : vector<8x384xf32>
    %179 = arith.divf %177, %178 : vector<8x384xf32>
    %180 = vector.extract_strided_slice %179 {offsets = [0, 0], sizes = [8, 128], strides = [1, 1]} : vector<8x384xf32> to vector<8x128xf32>
    %181 = vector.extract_strided_slice %179 {offsets = [0, 128], sizes = [8, 128], strides = [1, 1]} : vector<8x384xf32> to vector<8x128xf32>
    %182 = vector.extract_strided_slice %179 {offsets = [0, 256], sizes = [8, 128], strides = [1, 1]} : vector<8x384xf32> to vector<8x128xf32>
    %183 = vector.extract_strided_slice %173 {offsets = [0, 384], sizes = [8, 128], strides = [1, 1]} : vector<8x512xf32> to vector<8x128xf32>
    %184 = math.tanh %183 : vector<8x128xf32>
    %185 = arith.mulf %181, %144 : vector<8x128xf32>
    %186 = arith.mulf %180, %184 : vector<8x128xf32>
    %187 = arith.addf %185, %186 : vector<8x128xf32>
    %188 = math.tanh %187 : vector<8x128xf32>
    %189 = arith.mulf %182, %188 : vector<8x128xf32>
    %190 = arith.truncf %189 : vector<8x128xf32> to vector<8x128xbf16>
    %c4_i32 = arith.constant 4 : i32
    %c8_i32_46 = arith.constant 8 : i32
    %191 = arith.muli %c4_i32, %c8_i32_46 : i32
    %192 = tpu.assume_multiple %191, 8 : i32
    %193 = arith.index_cast %192 : i32 to index
    %c0_47 = arith.constant 0 : index
    %194 = vector.load %arg10[%193, %c0_47] : memref<64x512xf32, #tpu.memory_space<vmem>>, vector<8x512xf32>
    %cst_48 = arith.constant dense<0.000000e+00> : vector<8x512xf32>
    %195 = tpu.matmul %170, %10, %cst_48 {dimension_numbers = #tpu.dot_dimension_numbers<[1], [0], [0], [1], [0, 0, 1, 1], [], []>} : vector<8x128xbf16>, vector<128x512xbf16>, vector<8x512xf32> -> vector<8x512xf32>
    %196 = arith.addf %194, %195 : vector<8x512xf32>
    %197 = vector.extract_strided_slice %196 {offsets = [0, 0], sizes = [8, 384], strides = [1, 1]} : vector<8x512xf32> to vector<8x384xf32>
    %198 = arith.negf %197 : vector<8x384xf32>
    %199 = math.exp %198 : vector<8x384xf32>
    %cst_49 = arith.constant 1.000000e+00 : f32
    %200 = vector.broadcast %cst_49 : f32 to vector<8x384xf32>
    %201 = arith.addf %200, %199 : vector<8x384xf32>
    %202 = arith.divf %200, %201 : vector<8x384xf32>
    %203 = vector.extract_strided_slice %202 {offsets = [0, 0], sizes = [8, 128], strides = [1, 1]} : vector<8x384xf32> to vector<8x128xf32>
    %204 = vector.extract_strided_slice %202 {offsets = [0, 128], sizes = [8, 128], strides = [1, 1]} : vector<8x384xf32> to vector<8x128xf32>
    %205 = vector.extract_strided_slice %202 {offsets = [0, 256], sizes = [8, 128], strides = [1, 1]} : vector<8x384xf32> to vector<8x128xf32>
    %206 = vector.extract_strided_slice %196 {offsets = [0, 384], sizes = [8, 128], strides = [1, 1]} : vector<8x512xf32> to vector<8x128xf32>
    %207 = math.tanh %206 : vector<8x128xf32>
    %208 = arith.mulf %204, %167 : vector<8x128xf32>
    %209 = arith.mulf %203, %207 : vector<8x128xf32>
    %210 = arith.addf %208, %209 : vector<8x128xf32>
    %211 = math.tanh %210 : vector<8x128xf32>
    %212 = arith.mulf %205, %211 : vector<8x128xf32>
    %213 = arith.truncf %212 : vector<8x128xf32> to vector<8x128xbf16>
    %214 = tpu.concatenate %213, %190 in 1 : vector<8x128xbf16>, vector<8x128xbf16> -> vector<8x256xbf16>
    %cst_50 = arith.constant dense<0.000000e+00> : vector<8x512xf32>
    %215 = tpu.matmul %214, %11, %cst_50 {dimension_numbers = #tpu.dot_dimension_numbers<[1], [0], [0], [1], [0, 0, 1, 1], [], []>} : vector<8x256xbf16>, vector<256x512xbf16>, vector<8x512xf32> -> vector<8x512xf32>
    %216 = arith.addf %14, %215 : vector<8x512xf32>
    %217 = vector.extract_strided_slice %216 {offsets = [0, 0], sizes = [8, 384], strides = [1, 1]} : vector<8x512xf32> to vector<8x384xf32>
    %218 = arith.negf %217 : vector<8x384xf32>
    %219 = math.exp %218 : vector<8x384xf32>
    %cst_51 = arith.constant 1.000000e+00 : f32
    %220 = vector.broadcast %cst_51 : f32 to vector<8x384xf32>
    %221 = arith.addf %220, %219 : vector<8x384xf32>
    %222 = arith.divf %220, %221 : vector<8x384xf32>
    %223 = vector.extract_strided_slice %222 {offsets = [0, 0], sizes = [8, 128], strides = [1, 1]} : vector<8x384xf32> to vector<8x128xf32>
    %224 = vector.extract_strided_slice %222 {offsets = [0, 128], sizes = [8, 128], strides = [1, 1]} : vector<8x384xf32> to vector<8x128xf32>
    %225 = vector.extract_strided_slice %222 {offsets = [0, 256], sizes = [8, 128], strides = [1, 1]} : vector<8x384xf32> to vector<8x128xf32>
    %226 = vector.extract_strided_slice %216 {offsets = [0, 384], sizes = [8, 128], strides = [1, 1]} : vector<8x512xf32> to vector<8x128xf32>
    %227 = math.tanh %226 : vector<8x128xf32>
    %228 = arith.mulf %224, %187 : vector<8x128xf32>
    %229 = arith.mulf %223, %227 : vector<8x128xf32>
    %230 = arith.addf %228, %229 : vector<8x128xf32>
    %231 = math.tanh %230 : vector<8x128xf32>
    %232 = arith.mulf %225, %231 : vector<8x128xf32>
    %233 = arith.truncf %232 : vector<8x128xf32> to vector<8x128xbf16>
    %c5_i32 = arith.constant 5 : i32
    %c8_i32_52 = arith.constant 8 : i32
    %234 = arith.muli %c5_i32, %c8_i32_52 : i32
    %235 = tpu.assume_multiple %234, 8 : i32
    %236 = arith.index_cast %235 : i32 to index
    %c0_53 = arith.constant 0 : index
    %237 = vector.load %arg10[%236, %c0_53] : memref<64x512xf32, #tpu.memory_space<vmem>>, vector<8x512xf32>
    %cst_54 = arith.constant dense<0.000000e+00> : vector<8x512xf32>
    %238 = tpu.matmul %213, %10, %cst_54 {dimension_numbers = #tpu.dot_dimension_numbers<[1], [0], [0], [1], [0, 0, 1, 1], [], []>} : vector<8x128xbf16>, vector<128x512xbf16>, vector<8x512xf32> -> vector<8x512xf32>
    %239 = arith.addf %237, %238 : vector<8x512xf32>
    %240 = vector.extract_strided_slice %239 {offsets = [0, 0], sizes = [8, 384], strides = [1, 1]} : vector<8x512xf32> to vector<8x384xf32>
    %241 = arith.negf %240 : vector<8x384xf32>
    %242 = math.exp %241 : vector<8x384xf32>
    %cst_55 = arith.constant 1.000000e+00 : f32
    %243 = vector.broadcast %cst_55 : f32 to vector<8x384xf32>
    %244 = arith.addf %243, %242 : vector<8x384xf32>
    %245 = arith.divf %243, %244 : vector<8x384xf32>
    %246 = vector.extract_strided_slice %245 {offsets = [0, 0], sizes = [8, 128], strides = [1, 1]} : vector<8x384xf32> to vector<8x128xf32>
    %247 = vector.extract_strided_slice %245 {offsets = [0, 128], sizes = [8, 128], strides = [1, 1]} : vector<8x384xf32> to vector<8x128xf32>
    %248 = vector.extract_strided_slice %245 {offsets = [0, 256], sizes = [8, 128], strides = [1, 1]} : vector<8x384xf32> to vector<8x128xf32>
    %249 = vector.extract_strided_slice %239 {offsets = [0, 384], sizes = [8, 128], strides = [1, 1]} : vector<8x512xf32> to vector<8x128xf32>
    %250 = math.tanh %249 : vector<8x128xf32>
    %251 = arith.mulf %247, %210 : vector<8x128xf32>
    %252 = arith.mulf %246, %250 : vector<8x128xf32>
    %253 = arith.addf %251, %252 : vector<8x128xf32>
    %254 = math.tanh %253 : vector<8x128xf32>
    %255 = arith.mulf %248, %254 : vector<8x128xf32>
    %256 = arith.truncf %255 : vector<8x128xf32> to vector<8x128xbf16>
    %257 = tpu.concatenate %256, %233 in 1 : vector<8x128xbf16>, vector<8x128xbf16> -> vector<8x256xbf16>
    %cst_56 = arith.constant dense<0.000000e+00> : vector<8x512xf32>
    %258 = tpu.matmul %257, %11, %cst_56 {dimension_numbers = #tpu.dot_dimension_numbers<[1], [0], [0], [1], [0, 0, 1, 1], [], []>} : vector<8x256xbf16>, vector<256x512xbf16>, vector<8x512xf32> -> vector<8x512xf32>
    %259 = arith.addf %14, %258 : vector<8x512xf32>
    %260 = vector.extract_strided_slice %259 {offsets = [0, 0], sizes = [8, 384], strides = [1, 1]} : vector<8x512xf32> to vector<8x384xf32>
    %261 = arith.negf %260 : vector<8x384xf32>
    %262 = math.exp %261 : vector<8x384xf32>
    %cst_57 = arith.constant 1.000000e+00 : f32
    %263 = vector.broadcast %cst_57 : f32 to vector<8x384xf32>
    %264 = arith.addf %263, %262 : vector<8x384xf32>
    %265 = arith.divf %263, %264 : vector<8x384xf32>
    %266 = vector.extract_strided_slice %265 {offsets = [0, 0], sizes = [8, 128], strides = [1, 1]} : vector<8x384xf32> to vector<8x128xf32>
    %267 = vector.extract_strided_slice %265 {offsets = [0, 128], sizes = [8, 128], strides = [1, 1]} : vector<8x384xf32> to vector<8x128xf32>
    %268 = vector.extract_strided_slice %265 {offsets = [0, 256], sizes = [8, 128], strides = [1, 1]} : vector<8x384xf32> to vector<8x128xf32>
    %269 = vector.extract_strided_slice %259 {offsets = [0, 384], sizes = [8, 128], strides = [1, 1]} : vector<8x512xf32> to vector<8x128xf32>
    %270 = math.tanh %269 : vector<8x128xf32>
    %271 = arith.mulf %267, %230 : vector<8x128xf32>
    %272 = arith.mulf %266, %270 : vector<8x128xf32>
    %273 = arith.addf %271, %272 : vector<8x128xf32>
    %274 = math.tanh %273 : vector<8x128xf32>
    %275 = arith.mulf %268, %274 : vector<8x128xf32>
    %276 = arith.truncf %275 : vector<8x128xf32> to vector<8x128xbf16>
    %c6_i32 = arith.constant 6 : i32
    %c8_i32_58 = arith.constant 8 : i32
    %277 = arith.muli %c6_i32, %c8_i32_58 : i32
    %278 = tpu.assume_multiple %277, 8 : i32
    %279 = arith.index_cast %278 : i32 to index
    %c0_59 = arith.constant 0 : index
    %280 = vector.load %arg10[%279, %c0_59] : memref<64x512xf32, #tpu.memory_space<vmem>>, vector<8x512xf32>
    %cst_60 = arith.constant dense<0.000000e+00> : vector<8x512xf32>
    %281 = tpu.matmul %256, %10, %cst_60 {dimension_numbers = #tpu.dot_dimension_numbers<[1], [0], [0], [1], [0, 0, 1, 1], [], []>} : vector<8x128xbf16>, vector<128x512xbf16>, vector<8x512xf32> -> vector<8x512xf32>
    %282 = arith.addf %280, %281 : vector<8x512xf32>
    %283 = vector.extract_strided_slice %282 {offsets = [0, 0], sizes = [8, 384], strides = [1, 1]} : vector<8x512xf32> to vector<8x384xf32>
    %284 = arith.negf %283 : vector<8x384xf32>
    %285 = math.exp %284 : vector<8x384xf32>
    %cst_61 = arith.constant 1.000000e+00 : f32
    %286 = vector.broadcast %cst_61 : f32 to vector<8x384xf32>
    %287 = arith.addf %286, %285 : vector<8x384xf32>
    %288 = arith.divf %286, %287 : vector<8x384xf32>
    %289 = vector.extract_strided_slice %288 {offsets = [0, 0], sizes = [8, 128], strides = [1, 1]} : vector<8x384xf32> to vector<8x128xf32>
    %290 = vector.extract_strided_slice %288 {offsets = [0, 128], sizes = [8, 128], strides = [1, 1]} : vector<8x384xf32> to vector<8x128xf32>
    %291 = vector.extract_strided_slice %288 {offsets = [0, 256], sizes = [8, 128], strides = [1, 1]} : vector<8x384xf32> to vector<8x128xf32>
    %292 = vector.extract_strided_slice %282 {offsets = [0, 384], sizes = [8, 128], strides = [1, 1]} : vector<8x512xf32> to vector<8x128xf32>
    %293 = math.tanh %292 : vector<8x128xf32>
    %294 = arith.mulf %290, %253 : vector<8x128xf32>
    %295 = arith.mulf %289, %293 : vector<8x128xf32>
    %296 = arith.addf %294, %295 : vector<8x128xf32>
    %297 = math.tanh %296 : vector<8x128xf32>
    %298 = arith.mulf %291, %297 : vector<8x128xf32>
    %299 = arith.truncf %298 : vector<8x128xf32> to vector<8x128xbf16>
    %300 = tpu.concatenate %299, %276 in 1 : vector<8x128xbf16>, vector<8x128xbf16> -> vector<8x256xbf16>
    %cst_62 = arith.constant dense<0.000000e+00> : vector<8x512xf32>
    %301 = tpu.matmul %300, %11, %cst_62 {dimension_numbers = #tpu.dot_dimension_numbers<[1], [0], [0], [1], [0, 0, 1, 1], [], []>} : vector<8x256xbf16>, vector<256x512xbf16>, vector<8x512xf32> -> vector<8x512xf32>
    %302 = arith.addf %14, %301 : vector<8x512xf32>
    %303 = vector.extract_strided_slice %302 {offsets = [0, 0], sizes = [8, 384], strides = [1, 1]} : vector<8x512xf32> to vector<8x384xf32>
    %304 = arith.negf %303 : vector<8x384xf32>
    %305 = math.exp %304 : vector<8x384xf32>
    %cst_63 = arith.constant 1.000000e+00 : f32
    %306 = vector.broadcast %cst_63 : f32 to vector<8x384xf32>
    %307 = arith.addf %306, %305 : vector<8x384xf32>
    %308 = arith.divf %306, %307 : vector<8x384xf32>
    %309 = vector.extract_strided_slice %308 {offsets = [0, 0], sizes = [8, 128], strides = [1, 1]} : vector<8x384xf32> to vector<8x128xf32>
    %310 = vector.extract_strided_slice %308 {offsets = [0, 128], sizes = [8, 128], strides = [1, 1]} : vector<8x384xf32> to vector<8x128xf32>
    %311 = vector.extract_strided_slice %308 {offsets = [0, 256], sizes = [8, 128], strides = [1, 1]} : vector<8x384xf32> to vector<8x128xf32>
    %312 = vector.extract_strided_slice %302 {offsets = [0, 384], sizes = [8, 128], strides = [1, 1]} : vector<8x512xf32> to vector<8x128xf32>
    %313 = math.tanh %312 : vector<8x128xf32>
    %314 = arith.mulf %310, %273 : vector<8x128xf32>
    %315 = arith.mulf %309, %313 : vector<8x128xf32>
    %316 = arith.addf %314, %315 : vector<8x128xf32>
    %317 = math.tanh %316 : vector<8x128xf32>
    %318 = arith.mulf %311, %317 : vector<8x128xf32>
    %319 = arith.truncf %318 : vector<8x128xf32> to vector<8x128xbf16>
    %c7_i32 = arith.constant 7 : i32
    %c8_i32_64 = arith.constant 8 : i32
    %320 = arith.muli %c7_i32, %c8_i32_64 : i32
    %321 = tpu.assume_multiple %320, 8 : i32
    %322 = arith.index_cast %321 : i32 to index
    %c0_65 = arith.constant 0 : index
    %323 = vector.load %arg10[%322, %c0_65] : memref<64x512xf32, #tpu.memory_space<vmem>>, vector<8x512xf32>
    %cst_66 = arith.constant dense<0.000000e+00> : vector<8x512xf32>
    %324 = tpu.matmul %299, %10, %cst_66 {dimension_numbers = #tpu.dot_dimension_numbers<[1], [0], [0], [1], [0, 0, 1, 1], [], []>} : vector<8x128xbf16>, vector<128x512xbf16>, vector<8x512xf32> -> vector<8x512xf32>
    %325 = arith.addf %323, %324 : vector<8x512xf32>
    %326 = vector.extract_strided_slice %325 {offsets = [0, 0], sizes = [8, 384], strides = [1, 1]} : vector<8x512xf32> to vector<8x384xf32>
    %327 = arith.negf %326 : vector<8x384xf32>
    %328 = math.exp %327 : vector<8x384xf32>
    %cst_67 = arith.constant 1.000000e+00 : f32
    %329 = vector.broadcast %cst_67 : f32 to vector<8x384xf32>
    %330 = arith.addf %329, %328 : vector<8x384xf32>
    %331 = arith.divf %329, %330 : vector<8x384xf32>
    %332 = vector.extract_strided_slice %331 {offsets = [0, 0], sizes = [8, 128], strides = [1, 1]} : vector<8x384xf32> to vector<8x128xf32>
    %333 = vector.extract_strided_slice %331 {offsets = [0, 128], sizes = [8, 128], strides = [1, 1]} : vector<8x384xf32> to vector<8x128xf32>
    %334 = vector.extract_strided_slice %331 {offsets = [0, 256], sizes = [8, 128], strides = [1, 1]} : vector<8x384xf32> to vector<8x128xf32>
    %335 = vector.extract_strided_slice %325 {offsets = [0, 384], sizes = [8, 128], strides = [1, 1]} : vector<8x512xf32> to vector<8x128xf32>
    %336 = math.tanh %335 : vector<8x128xf32>
    %337 = arith.mulf %333, %296 : vector<8x128xf32>
    %338 = arith.mulf %332, %336 : vector<8x128xf32>
    %339 = arith.addf %337, %338 : vector<8x128xf32>
    %340 = math.tanh %339 : vector<8x128xf32>
    %341 = arith.mulf %334, %340 : vector<8x128xf32>
    %342 = arith.truncf %341 : vector<8x128xf32> to vector<8x128xbf16>
    %343 = tpu.concatenate %342, %319 in 1 : vector<8x128xbf16>, vector<8x128xbf16> -> vector<8x256xbf16>
    %cst_68 = arith.constant dense<0.000000e+00> : vector<8x512xf32>
    %344 = tpu.matmul %343, %11, %cst_68 {dimension_numbers = #tpu.dot_dimension_numbers<[1], [0], [0], [1], [0, 0, 1, 1], [], []>} : vector<8x256xbf16>, vector<256x512xbf16>, vector<8x512xf32> -> vector<8x512xf32>
    %345 = arith.addf %14, %344 : vector<8x512xf32>
    %346 = vector.extract_strided_slice %345 {offsets = [0, 0], sizes = [8, 384], strides = [1, 1]} : vector<8x512xf32> to vector<8x384xf32>
    %347 = arith.negf %346 : vector<8x384xf32>
    %348 = math.exp %347 : vector<8x384xf32>
    %cst_69 = arith.constant 1.000000e+00 : f32
    %349 = vector.broadcast %cst_69 : f32 to vector<8x384xf32>
    %350 = arith.addf %349, %348 : vector<8x384xf32>
    %351 = arith.divf %349, %350 : vector<8x384xf32>
    %352 = vector.extract_strided_slice %351 {offsets = [0, 0], sizes = [8, 128], strides = [1, 1]} : vector<8x384xf32> to vector<8x128xf32>
    %353 = vector.extract_strided_slice %351 {offsets = [0, 128], sizes = [8, 128], strides = [1, 1]} : vector<8x384xf32> to vector<8x128xf32>
    %354 = vector.extract_strided_slice %351 {offsets = [0, 256], sizes = [8, 128], strides = [1, 1]} : vector<8x384xf32> to vector<8x128xf32>
    %355 = vector.extract_strided_slice %345 {offsets = [0, 384], sizes = [8, 128], strides = [1, 1]} : vector<8x512xf32> to vector<8x128xf32>
    %356 = math.tanh %355 : vector<8x128xf32>
    %357 = arith.mulf %353, %316 : vector<8x128xf32>
    %358 = arith.mulf %352, %356 : vector<8x128xf32>
    %359 = arith.addf %357, %358 : vector<8x128xf32>
    %360 = math.tanh %359 : vector<8x128xf32>
    %361 = arith.mulf %354, %360 : vector<8x128xf32>
    %362 = arith.truncf %361 : vector<8x128xf32> to vector<8x128xbf16>
    %c8_i32_70 = arith.constant 8 : i32
    %c0_71 = arith.constant 0 : index
    %c0_72 = arith.constant 0 : index
    %363 = vector.load %arg11[%c0_71, %c0_72] : memref<8x128xbf16, #tpu.memory_space<vmem>>, vector<8x128xbf16>
    tpu.vector_store %arg11[%c0_71, %c0_72], %342 {strides = array<i32>} : memref<8x128xbf16, #tpu.memory_space<vmem>>, vector<8x128xbf16>,
    %c0_73 = arith.constant 0 : index
    %c0_74 = arith.constant 0 : index
    %364 = vector.load %arg12[%c0_73, %c0_74] : memref<8x128xf32, #tpu.memory_space<vmem>>, vector<8x128xf32>
    tpu.vector_store %arg12[%c0_73, %c0_74], %339 {strides = array<i32>} : memref<8x128xf32, #tpu.memory_space<vmem>>, vector<8x128xf32>,
    %c0_75 = arith.constant 0 : index
    %c0_76 = arith.constant 0 : index
    %365 = vector.load %arg13[%c0_75, %c0_76] : memref<8x128xbf16, #tpu.memory_space<vmem>>, vector<8x128xbf16>
    tpu.vector_store %arg13[%c0_75, %c0_76], %362 {strides = array<i32>} : memref<8x128xbf16, #tpu.memory_space<vmem>>, vector<8x128xbf16>,
    %c0_77 = arith.constant 0 : index
    %c0_78 = arith.constant 0 : index
    %366 = vector.load %arg14[%c0_77, %c0_78] : memref<8x128xf32, #tpu.memory_space<vmem>>, vector<8x128xf32>
    tpu.vector_store %arg14[%c0_77, %c0_78], %359 {strides = array<i32>} : memref<8x128xf32, #tpu.memory_space<vmem>>, vector<8x128xf32>,
    %c0_i32_79 = arith.constant 0 : i32
    %367 = arith.cmpi eq, %arg0, %c0_i32_79 : i32
    %368 = arith.extui %367 : i1 to i32
    %c0_i32_80 = arith.constant 0 : i32
    %369 = arith.cmpi ne, %368, %c0_i32_80 : i32
    scf.if %369 {
      %370 = arith.extf %362 : vector<8x128xbf16> to vector<8x128xf32>
      %c0_81 = arith.constant 0 : index
      %c0_82 = arith.constant 0 : index
      %371 = vector.load %arg7[%c0_81, %c0_82] : memref<128x2xf32, #tpu.memory_space<vmem>>, vector<128x2xf32>
      %cst_83 = arith.constant dense<0.000000e+00> : vector<8x2xf32>
      %372 = tpu.matmul %370, %371, %cst_83 {dimension_numbers = #tpu.dot_dimension_numbers<[1], [0], [0], [1], [0, 0, 1, 1], [], []>} : vector<8x128xf32>, vector<128x2xf32>, vector<8x2xf32> -> vector<8x2xf32>
      %c0_84 = arith.constant 0 : index
      %c0_85 = arith.constant 0 : index
      %373 = vector.load %arg8[%c0_84, %c0_85] : memref<1x2xf32, #tpu.memory_space<vmem>>, vector<1x2xf32>
      %374 = vector.broadcast %373 : vector<1x2xf32> to vector<8x2xf32>
      %375 = arith.addf %372, %374 : vector<8x2xf32>
      %c0_86 = arith.constant 0 : index
      %c0_87 = arith.constant 0 : index
      %376 = vector.load %arg9[%c0_86, %c0_87] : memref<8x2xf32, #tpu.memory_space<vmem>>, vector<8x2xf32>
      tpu.vector_store %arg9[%c0_86, %c0_87], %375 {strides = array<i32>} : memref<8x2xf32, #tpu.memory_space<vmem>>, vector<8x2xf32>,
    } else {
    }
    return
  }
  func.func @transform_0(%arg0: i32) -> (i32, i32) {
    %c0_i32 = arith.constant 0 : i32
    %c0_i32_0 = arith.constant 0 : i32
    return %arg0, %c0_i32 : i32, i32
  }
  func.func @transform_1(%arg0: i32) -> (i32, i32) {
    %c0_i32 = arith.constant 0 : i32
    %c0_i32_0 = arith.constant 0 : i32
    %c0_i32_1 = arith.constant 0 : i32
    return %c0_i32, %c0_i32_0 : i32, i32
  }
  func.func @transform_2(%arg0: i32) -> (i32, i32) {
    %c0_i32 = arith.constant 0 : i32
    %c0_i32_0 = arith.constant 0 : i32
    %c0_i32_1 = arith.constant 0 : i32
    return %c0_i32, %c0_i32_0 : i32, i32
  }
  func.func @transform_3(%arg0: i32) -> (i32, i32) {
    %c0_i32 = arith.constant 0 : i32
    %c0_i32_0 = arith.constant 0 : i32
    %c0_i32_1 = arith.constant 0 : i32
    return %c0_i32, %c0_i32_0 : i32, i32
  }
  func.func @transform_4(%arg0: i32) -> (i32, i32) {
    %c0_i32 = arith.constant 0 : i32
    %c0_i32_0 = arith.constant 0 : i32
    %c0_i32_1 = arith.constant 0 : i32
    return %c0_i32, %c0_i32_0 : i32, i32
  }
  func.func @transform_5(%arg0: i32) -> (i32, i32) {
    %c0_i32 = arith.constant 0 : i32
    %c0_i32_0 = arith.constant 0 : i32
    %c0_i32_1 = arith.constant 0 : i32
    return %c0_i32, %c0_i32_0 : i32, i32
  }
  func.func @transform_6(%arg0: i32) -> (i32, i32) {
    %c0_i32 = arith.constant 0 : i32
    %c0_i32_0 = arith.constant 0 : i32
    %c0_i32_1 = arith.constant 0 : i32
    return %c0_i32, %c0_i32_0 : i32, i32
  }
  func.func @transform_7(%arg0: i32) -> (i32, i32) {
    %c0_i32 = arith.constant 0 : i32
    %c0_i32_0 = arith.constant 0 : i32
    %c0_i32_1 = arith.constant 0 : i32
    return %c0_i32, %c0_i32_0 : i32, i32
  }
  func.func @transform_8(%arg0: i32) -> (i32, i32) {
    %c0_i32 = arith.constant 0 : i32
    %c0_i32_0 = arith.constant 0 : i32
    %c0_i32_1 = arith.constant 0 : i32
    return %c0_i32, %c0_i32_0 : i32, i32
  }
}

</mosaic_0001>

<llo_original>
// kernel: lstm_model_forward.1
$region0: #{lstm_model_forward.1}
  #allocation0 [shape = 'u32[]', space=smem, size = 0x4, offset = 0x4, fixed_abs, tag = 'smem constant byte address 0x4 - core index']
  #allocation1 [shape = 'u32[144,128]{1,0:T(1,128)}', space=vmem, size = 0x12000, scoped, tag = 'internal scratch']
  #allocation2 [shape = 'f32[64,512]{1,0:T(8,128)}', space=vmem, size = 0x20000, scoped, tag = 'scratch operand']
  #allocation3 [shape = 'bf16[8,128]{1,0:T(8,128)(2,1)}', space=vmem, size = 0x800, scoped, tag = 'scratch operand']
  #allocation4 [shape = 'f32[8,128]{1,0:T(8,128)}', space=vmem, size = 0x1000, scoped, tag = 'scratch operand']
  #allocation5 [shape = 'bf16[8,128]{1,0:T(8,128)(2,1)}', space=vmem, size = 0x800, scoped, tag = 'scratch operand']
  #allocation6 [shape = 'f32[8,128]{1,0:T(8,128)}', space=vmem, size = 0x1000, scoped, tag = 'scratch operand']
  %s0 = inlined_call_operand.vmem [shape: bf16[64,16], index: 0, kind: input, shape index: {}]
  %s1 = inlined_call_operand.hbm [shape: bf16[16,512], index: 1, kind: input, shape index: {}]
  %s2 = inlined_call_operand.vmem [shape: bf16[128,512], index: 2, kind: input, shape index: {}]
  %s3 = inlined_call_operand.vmem [shape: f32[1,512], index: 3, kind: input, shape index: {}]
  %s4 = inlined_call_operand.hbm [shape: bf16[256,512], index: 4, kind: input, shape index: {}]
  %s5 = inlined_call_operand.vmem [shape: f32[1,512], index: 5, kind: input, shape index: {}]
  %s6 = inlined_call_operand.vmem [shape: f32[128,2], index: 6, kind: input, shape index: {}]
  %s7 = inlined_call_operand.vmem [shape: f32[1,2], index: 7, kind: input, shape index: {}]
  %s8 = inlined_call_operand.vmem [shape: f32[8,2], index: 8, kind: output, shape index: {}]
  %s9 = sld [smem:[#allocation0]]
  $region58: #{lstm_model_forward.1} parent=0
    _
  %s11 = ssub.s32 1, %s9
  %s12 = scalar_select 0, %s11, %s9
  $region1: #{lstm_model_forward.1} parent=0
    #allocation7 [shape = 'u8[16384]{0}', space=vmem, size = 0x4000, scoped, tag = 'input window, operand 1, single buffered']
    #allocation8 [shape = 's32[1]{0}', space=sflag, size = 0x4, scoped, tag = 'scoped memory for lstm_model_forward.1']
    #allocation9 [shape = 'u8[262144]{0}', space=vmem, size = 0x40000, scoped, tag = 'input window, operand 4, single buffered']
    #allocation10 [shape = 's32[1]{0}', space=sflag, size = 0x4, scoped, tag = 'scoped memory for lstm_model_forward.1']
    %13 = vsyncpa [#allocation8], 0
    %14 = vsyncpa [#allocation10], 0
    // Predicated region
    $region2: #{lstm_model_forward.1} parent=1 // pred_check
      _
    $region3: #{lstm_model_forward.1} parent=1 // pred_check_branch
      %16 = sbr.rel (0) target = $region5
    $region4: #{lstm_model_forward.1} parent=1 // pred_region
      _
    $region5: #{lstm_model_forward.1} parent=1 // pred_fallthru
      _
    // Predicated region
    $region6: #{lstm_model_forward.1} parent=1 // pred_check
      _
    $region7: #{lstm_model_forward.1} parent=1 // pred_check_branch
      %18 = sbr.rel (0) target = $region9
    $region8: #{lstm_model_forward.1} parent=1 // pred_region
      %s20 = ssub.s32 512, 512
      %21 = vsyncadd [#allocation8], %s20
      %s22 = sshll.u32 [#allocation7], 4
      %s23 = int_to_ptr.vmem [resolvable:$true] %s22
      %28 = dma.hbm_to_vmem [thread:$0]  %s1, 512, %s23, [#allocation8], 256, 256, 16
    $region9: #{lstm_model_forward.1} parent=1 // pred_fallthru
      _
    // Predicated region
    $region10: #{lstm_model_forward.1} parent=1 // pred_check
      _
    $region11: #{lstm_model_forward.1} parent=1 // pred_check_branch
      %30 = sbr.rel (0) target = $region13
    $region12: #{lstm_model_forward.1} parent=1 // pred_region
      _
    $region13: #{lstm_model_forward.1} parent=1 // pred_fallthru
      _
    // Predicated region
    $region14: #{lstm_model_forward.1} parent=1 // pred_check
      _
    $region15: #{lstm_model_forward.1} parent=1 // pred_check_branch
      %32 = sbr.rel (0) target = $region17
    $region16: #{lstm_model_forward.1} parent=1 // pred_region
      _
    $region17: #{lstm_model_forward.1} parent=1 // pred_fallthru
      _
    // Predicated region
    $region18: #{lstm_model_forward.1} parent=1 // pred_check
      _
    $region19: #{lstm_model_forward.1} parent=1 // pred_check_branch
      %34 = sbr.rel (0) target = $region21
    $region20: #{lstm_model_forward.1} parent=1 // pred_region
      %s36 = ssub.s32 8192, 8192
      %37 = vsyncadd [#allocation10], %s36
      %s38 = sshll.u32 [#allocation9], 4
      %s39 = int_to_ptr.vmem [resolvable:$true] %s38
      %44 = dma.hbm_to_vmem [thread:$0]  %s4, 8192, %s39, [#allocation10], 256, 256, 16
    $region21: #{lstm_model_forward.1} parent=1 // pred_fallthru
      _
    // Predicated region
    $region22: #{lstm_model_forward.1} parent=1 // pred_check
      _
    $region23: #{lstm_model_forward.1} parent=1 // pred_check_branch
      %46 = sbr.rel (0) target = $region25
    $region24: #{lstm_model_forward.1} parent=1 // pred_region
      _
    $region25: #{lstm_model_forward.1} parent=1 // pred_fallthru
      _
    // Predicated region
    $region26: #{lstm_model_forward.1} parent=1 // pred_check
      _
    $region27: #{lstm_model_forward.1} parent=1 // pred_check_branch
      %48 = sbr.rel (0) target = $region29
    $region28: #{lstm_model_forward.1} parent=1 // pred_region
      _
    $region29: #{lstm_model_forward.1} parent=1 // pred_fallthru
      _
    // Predicated region
    $region30: #{lstm_model_forward.1} parent=1 // pred_check
      _
    $region31: #{lstm_model_forward.1} parent=1 // pred_check_branch
      %50 = sbr.rel (0) target = $region33
    $region32: #{lstm_model_forward.1} parent=1 // pred_region
      _
    $region33: #{lstm_model_forward.1} parent=1 // pred_fallthru
      _
    // Predicated region
    $region34: #{lstm_model_forward.1} parent=1 // pred_check
      _
    $region35: #{lstm_model_forward.1} parent=1 // pred_check_branch
      %52 = sbr.rel (0) target = $region37
    $region36: #{lstm_model_forward.1} parent=1 // pred_region
      %53 = dma.done [#allocation8], 512
    $region37: #{lstm_model_forward.1} parent=1 // pred_fallthru
      _
    // Predicated region
    $region38: #{lstm_model_forward.1} parent=1 // pred_check
      _
    $region39: #{lstm_model_forward.1} parent=1 // pred_check_branch
      %55 = sbr.rel (0) target = $region41
    $region40: #{lstm_model_forward.1} parent=1 // pred_region
      %56 = dma.done [#allocation10], 8192
    $region41: #{lstm_model_forward.1} parent=1 // pred_fallthru
      _
    %p58 = scmp.eq.s32.totalorder 0, 0
    // Predicated region
    $region42: #{lstm_model_forward.1} parent=1 // pred_check
      %p59 = pneg %p58
    $region43: #{lstm_model_forward.1} parent=1 // pred_check_branch
      %61 = sbr.rel (%p59) target = $region45
    $region44: #{lstm_model_forward.1} parent=1 // pred_region
      %62 = vst [vmem:[#allocation3] sm:$0xf] 0
      %63 = vst [vmem:[#allocation4] sm:$0xff] 0.0
      %64 = vst [vmem:[#allocation5] sm:$0xf] 0
      %65 = vst [vmem:[#allocation6] sm:$0xff] 0.0
      %vm66 = vcmask 15360
      %67 = vst.msk [vmem:[%s8] sm:$0xff] %vm66, 0.0
    $region45: #{lstm_model_forward.1} parent=1 // pred_fallthru
      _
    %v68 = vld [vmem:[%s0] sm:$0xf]
    %v69 = vld [vmem:[%s0 + $0x4] sm:$0xf]
    %v70 = vld [vmem:[%s0 + $0x8] sm:$0xf]
    %v71 = vld [vmem:[%s0 + $0xc] sm:$0xf]
    %v72 = vld [vmem:[%s0 + $0x10] sm:$0xf]
    %v73 = vld [vmem:[%s0 + $0x14] sm:$0xf]
    %v74 = vld [vmem:[%s0 + $0x18] sm:$0xf]
    %v75 = vld [vmem:[%s0 + $0x1c] sm:$0xf]
    %v76 = vld [vmem:[#allocation7] sm:$0xff]
    %v77 = vld [vmem:[#allocation7 + $0x8] sm:$0xff]
    %v78 = vld [vmem:[#allocation7 + $0x10] sm:$0xff]
    %v79 = vld [vmem:[#allocation7 + $0x18] sm:$0xff]
    %v80 = vld [vmem:[%s3] sm:$0xf]
    %v82 = vlaneseq
    %v83 = vshrl.u32 %v82, 7
    %v84 = vsub.s32 0, %v83
    %v85 = vrot.slane %v80, %v84
    %v86 = vlaneseq
    %v87 = vshrl.u32 %v86, 7
    %v88 = vsub.s32 1, %v87
    %v89 = vrot.slane %v80, %v88
    %v90 = vlaneseq
    %v91 = vshrl.u32 %v90, 7
    %v92 = vsub.s32 2, %v91
    %v93 = vrot.slane %v80, %v92
    %v94 = vlaneseq
    %v95 = vshrl.u32 %v94, 7
    %v96 = vsub.s32 3, %v95
    %v97 = vrot.slane %v80, %v96
    %v110 = vunpack.c.l.b16 %v68
    %v111 = vunpack.c.l.b16 %v69
    %v112 = vunpack.c.l.b16 %v70
    %v113 = vunpack.c.l.b16 %v71
    %v114 = vunpack.c.l.b16 %v72
    %v115 = vunpack.c.l.b16 %v73
    %v116 = vunpack.c.l.b16 %v74
    %v117 = vunpack.c.l.b16 %v75
    %v118 = vpack.c.b16 %v111, %v110
    %v119 = vpack.c.b16 %v113, %v112
    %v120 = vpack.c.b16 %v115, %v114
    %v121 = vpack.c.b16 %v117, %v116
    %v126 = vunpack.c.l.b16 %v76
    %v127 = vunpack.c.h.b16 %v76
    %v128 = vunpack.c.l.b16 %v77
    %v129 = vunpack.c.h.b16 %v77
    %v130 = vunpack.c.l.b16 %v78
    %v131 = vunpack.c.h.b16 %v78
    %v132 = vunpack.c.l.b16 %v79
    %v133 = vunpack.c.h.b16 %v79
    %v134 = vpack.c.b16 %v130, %v126
    %v135 = vpack.c.b16 %v131, %v127
    %v136 = vpack.c.b16 %v132, %v128
    %v137 = vpack.c.b16 %v133, %v129
    %vm142 = vcmask 130048
    %v144 = vsel %vm142, %v118, 0
    %v147 = vsel %vm142, %v119, 0
    %v150 = vsel %vm142, %v120, 0
    %v153 = vsel %vm142, %v121, 0
    %155 = vmatprep.subr.bf16.mxu0 0
    %156 = vmatpush1.bf16.msra.mxu0 0
    %157 = vmatprep.subr.bf16.mxu0 0
    %158 = vmatpush1.bf16.msra.mxu0 0
    %159 = vmatprep.subr.bf16.mxu0 0
    %160 = vmatpush1.bf16.msra.mxu0 0
    %161 = vmatprep.subr.bf16.mxu0 0
    %162 = vmatpush1.bf16.msra.mxu0 0
    %163 = vmatprep.subr.bf16.mxu0 0
    %164 = vmatpush1.bf16.msra.mxu0 0
    %165 = vmatprep.subr.bf16.mxu0 0
    %166 = vmatpush1.bf16.msra.mxu0 0
    %167 = vmatprep.subr.bf16.mxu0 0
    %168 = vmatpush1.bf16.msra.mxu0 0
    %169 = vmatprep.subr.bf16.mxu0 %v135
    %170 = vmatpush1.bf16.msra.mxu0 %v134
    %171 = vmatprep.subr.bf16.mxu0 0
    %172 = vmatpush2.bf16.msra.mxu0 0
    %173 = vmatprep.subr.bf16.mxu0 0
    %174 = vmatpush2.bf16.msra.mxu0 0
    %175 = vmatprep.subr.bf16.mxu0 0
    %176 = vmatpush2.bf16.msra.mxu0 0
    %177 = vmatprep.subr.bf16.mxu0 0
    %178 = vmatpush2.bf16.msra.mxu0 0
    %179 = vmatprep.subr.bf16.mxu0 0
    %180 = vmatpush2.bf16.msra.mxu0 0
    %181 = vmatprep.subr.bf16.mxu0 0
    %182 = vmatpush2.bf16.msra.mxu0 0
    %183 = vmatprep.subr.bf16.mxu0 0
    %184 = vmatpush2.bf16.msra.mxu0 0
    %185 = vmatprep.subr.bf16.mxu0 0
    %186 = vmatpush2.bf16.msra.mxu0 0
    %187 = vmatprep.mubr.bf16.mxu0 0
    %188 = vmatmul.mubr.bf16.gmra.mxu0 %v144
    %v189 = vpop.f32.mrf.mxu0
    %v190 = vadd.f32 %v85, %v189
    %v191 = vpop.f32.mrf.mxu0
    %v192 = vadd.f32 %v89, %v191
    %v193 = vpop.f32.mrf.mxu0
    %v194 = vadd.f32 %v85, %v193
    %v195 = vpop.f32.mrf.mxu0
    %v196 = vadd.f32 %v89, %v195
    %197 = vmatprep.mubr.bf16.mxu0 0
    %198 = vmatmul.mubr.bf16.gmra.mxu0 %v147
    %v199 = vpop.f32.mrf.mxu0
    %v200 = vadd.f32 %v85, %v199
    %v201 = vpop.f32.mrf.mxu0
    %v202 = vadd.f32 %v89, %v201
    %v203 = vpop.f32.mrf.mxu0
    %v204 = vadd.f32 %v85, %v203
    %v205 = vpop.f32.mrf.mxu0
    %v206 = vadd.f32 %v89, %v205
    %207 = vmatprep.mubr.bf16.mxu0 0
    %208 = vmatmul.mubr.bf16.gmra.mxu0 %v150
    %v209 = vpop.f32.mrf.mxu0
    %v210 = vadd.f32 %v85, %v209
    %v211 = vpop.f32.mrf.mxu0
    %v212 = vadd.f32 %v89, %v211
    %v213 = vpop.f32.mrf.mxu0
    %v214 = vadd.f32 %v85, %v213
    %v215 = vpop.f32.mrf.mxu0
    %v216 = vadd.f32 %v89, %v215
    %217 = vmatprep.mubr.bf16.mxu0 0
    %218 = vmatmul.mubr.bf16.gmra.mxu0 %v153
    %v219 = vpop.f32.mrf.mxu0
    %v220 = vadd.f32 %v85, %v219
    %v221 = vpop.f32.mrf.mxu0
    %v222 = vadd.f32 %v89, %v221
    %v223 = vpop.f32.mrf.mxu0
    %v224 = vadd.f32 %v85, %v223
    %v225 = vpop.f32.mrf.mxu0
    %v226 = vadd.f32 %v89, %v225
    %227 = vdwg.mxu0
    %228 = vmatprep.subr.bf16.mxu0 0
    %229 = vmatpush1.bf16.msra.mxu0 0
    %230 = vmatprep.subr.bf16.mxu0 0
    %231 = vmatpush1.bf16.msra.mxu0 0
    %232 = vmatprep.subr.bf16.mxu0 0
    %233 = vmatpush1.bf16.msra.mxu0 0
    %234 = vmatprep.subr.bf16.mxu0 0
    %235 = vmatpush1.bf16.msra.mxu0 0
    %236 = vmatprep.subr.bf16.mxu0 0
    %237 = vmatpush1.bf16.msra.mxu0 0
    %238 = vmatprep.subr.bf16.mxu0 0
    %239 = vmatpush1.bf16.msra.mxu0 0
    %240 = vmatprep.subr.bf16.mxu0 0
    %241 = vmatpush1.bf16.msra.mxu0 0
    %242 = vmatprep.subr.bf16.mxu0 %v137
    %243 = vmatpush1.bf16.msra.mxu0 %v136
    %244 = vmatprep.subr.bf16.mxu0 0
    %245 = vmatpush2.bf16.msra.mxu0 0
    %246 = vmatprep.subr.bf16.mxu0 0
    %247 = vmatpush2.bf16.msra.mxu0 0
    %248 = vmatprep.subr.bf16.mxu0 0
    %249 = vmatpush2.bf16.msra.mxu0 0
    %250 = vmatprep.subr.bf16.mxu0 0
    %251 = vmatpush2.bf16.msra.mxu0 0
    %252 = vmatprep.subr.bf16.mxu0 0
    %253 = vmatpush2.bf16.msra.mxu0 0
    %254 = vmatprep.subr.bf16.mxu0 0
    %255 = vmatpush2.bf16.msra.mxu0 0
    %256 = vmatprep.subr.bf16.mxu0 0
    %257 = vmatpush2.bf16.msra.mxu0 0
    %258 = vmatprep.subr.bf16.mxu0 0
    %259 = vmatpush2.bf16.msra.mxu0 0
    %260 = vmatprep.mubr.bf16.mxu0 0
    %261 = vmatmul.mubr.bf16.gmra.mxu0 %v144
    %v262 = vpop.f32.mrf.mxu0
    %v263 = vadd.f32 %v93, %v262
    %v264 = vpop.f32.mrf.mxu0
    %v265 = vadd.f32 %v97, %v264
    %v266 = vpop.f32.mrf.mxu0
    %v267 = vadd.f32 %v93, %v266
    %v268 = vpop.f32.mrf.mxu0
    %v269 = vadd.f32 %v97, %v268
    %270 = vmatprep.mubr.bf16.mxu0 0
    %271 = vmatmul.mubr.bf16.gmra.mxu0 %v147
    %v272 = vpop.f32.mrf.mxu0
    %v273 = vadd.f32 %v93, %v272
    %v274 = vpop.f32.mrf.mxu0
    %v275 = vadd.f32 %v97, %v274
    %v276 = vpop.f32.mrf.mxu0
    %v277 = vadd.f32 %v93, %v276
    %v278 = vpop.f32.mrf.mxu0
    %v279 = vadd.f32 %v97, %v278
    %280 = vmatprep.mubr.bf16.mxu0 0
    %281 = vmatmul.mubr.bf16.gmra.mxu0 %v150
    %v282 = vpop.f32.mrf.mxu0
    %v283 = vadd.f32 %v93, %v282
    %v284 = vpop.f32.mrf.mxu0
    %v285 = vadd.f32 %v97, %v284
    %v286 = vpop.f32.mrf.mxu0
    %v287 = vadd.f32 %v93, %v286
    %v288 = vpop.f32.mrf.mxu0
    %v289 = vadd.f32 %v97, %v288
    %290 = vmatprep.mubr.bf16.mxu0 0
    %291 = vmatmul.mubr.bf16.gmra.mxu0 %v153
    %v292 = vpop.f32.mrf.mxu0
    %v293 = vadd.f32 %v93, %v292
    %v294 = vpop.f32.mrf.mxu0
    %v295 = vadd.f32 %v97, %v294
    %v296 = vpop.f32.mrf.mxu0
    %v297 = vadd.f32 %v93, %v296
    %v298 = vpop.f32.mrf.mxu0
    %v299 = vadd.f32 %v97, %v298
    %300 = vdwg.mxu0
    %301 = vst [vmem:[#allocation2] sm:$0xff] %v190
    %302 = vst [vmem:[#allocation2 + $0x8] sm:$0xff] %v192
    %303 = vst [vmem:[#allocation2 + $0x10] sm:$0xff] %v263
    %304 = vst [vmem:[#allocation2 + $0x18] sm:$0xff] %v265
    %305 = vst [vmem:[#allocation2 + $0x20] sm:$0xff] %v194
    %306 = vst [vmem:[#allocation2 + $0x28] sm:$0xff] %v196
    %307 = vst [vmem:[#allocation2 + $0x30] sm:$0xff] %v267
    %308 = vst [vmem:[#allocation2 + $0x38] sm:$0xff] %v269
    %309 = vst [vmem:[#allocation2 + $0x40] sm:$0xff] %v200
    %310 = vst [vmem:[#allocation2 + $0x48] sm:$0xff] %v202
    %311 = vst [vmem:[#allocation2 + $0x50] sm:$0xff] %v273
    %312 = vst [vmem:[#allocation2 + $0x58] sm:$0xff] %v275
    %313 = vst [vmem:[#allocation2 + $0x60] sm:$0xff] %v204
    %314 = vst [vmem:[#allocation2 + $0x68] sm:$0xff] %v206
    %315 = vst [vmem:[#allocation2 + $0x70] sm:$0xff] %v277
    %316 = vst [vmem:[#allocation2 + $0x78] sm:$0xff] %v279
    %317 = vst [vmem:[#allocation2 + $0x80] sm:$0xff] %v210
    %318 = vst [vmem:[#allocation2 + $0x88] sm:$0xff] %v212
    %319 = vst [vmem:[#allocation2 + $0x90] sm:$0xff] %v283
    %320 = vst [vmem:[#allocation2 + $0x98] sm:$0xff] %v285
    %321 = vst [vmem:[#allocation2 + $0xa0] sm:$0xff] %v214
    %322 = vst [vmem:[#allocation2 + $0xa8] sm:$0xff] %v216
    %323 = vst [vmem:[#allocation2 + $0xb0] sm:$0xff] %v287
    %324 = vst [vmem:[#allocation2 + $0xb8] sm:$0xff] %v289
    %325 = vst [vmem:[#allocation2 + $0xc0] sm:$0xff] %v220
    %326 = vst [vmem:[#allocation2 + $0xc8] sm:$0xff] %v222
    %327 = vst [vmem:[#allocation2 + $0xd0] sm:$0xff] %v293
    %328 = vst [vmem:[#allocation2 + $0xd8] sm:$0xff] %v295
    %329 = vst [vmem:[#allocation2 + $0xe0] sm:$0xff] %v224
    %330 = vst [vmem:[#allocation2 + $0xe8] sm:$0xff] %v226
    %331 = vst [vmem:[#allocation2 + $0xf0] sm:$0xff] %v297
    %332 = vst [vmem:[#allocation2 + $0xf8] sm:$0xff] %v299
    %v333 = vld [vmem:[%s2] sm:$0xff]
    %v334 = vld [vmem:[%s2 + $0x8] sm:$0xff]
    %v335 = vld [vmem:[%s2 + $0x10] sm:$0xff]
    %v336 = vld [vmem:[%s2 + $0x18] sm:$0xff]
    %v337 = vld [vmem:[%s2 + $0x20] sm:$0xff]
    %v338 = vld [vmem:[%s2 + $0x28] sm:$0xff]
    %v339 = vld [vmem:[%s2 + $0x30] sm:$0xff]
    %v340 = vld [vmem:[%s2 + $0x38] sm:$0xff]
    %v341 = vld [vmem:[%s2 + $0x40] sm:$0xff]
    %v342 = vld [vmem:[%s2 + $0x48] sm:$0xff]
    %v343 = vld [vmem:[%s2 + $0x50] sm:$0xff]
    %v344 = vld [vmem:[%s2 + $0x58] sm:$0xff]
    %v345 = vld [vmem:[%s2 + $0x60] sm:$0xff]
    %v346 = vld [vmem:[%s2 + $0x68] sm:$0xff]
    %v347 = vld [vmem:[%s2 + $0x70] sm:$0xff]
    %v348 = vld [vmem:[%s2 + $0x78] sm:$0xff]
    %v349 = vld [vmem:[%s2 + $0x80] sm:$0xff]
    %v350 = vld [vmem:[%s2 + $0x88] sm:$0xff]
    %v351 = vld [vmem:[%s2 + $0x90] sm:$0xff]
    %v352 = vld [vmem:[%s2 + $0x98] sm:$0xff]
    %v353 = vld [vmem:[%s2 + $0xa0] sm:$0xff]
    %v354 = vld [vmem:[%s2 + $0xa8] sm:$0xff]
    %v355 = vld [vmem:[%s2 + $0xb0] sm:$0xff]
    %v356 = vld [vmem:[%s2 + $0xb8] sm:$0xff]
    %v357 = vld [vmem:[%s2 + $0xc0] sm:$0xff]
    %v358 = vld [vmem:[%s2 + $0xc8] sm:$0xff]
    %v359 = vld [vmem:[%s2 + $0xd0] sm:$0xff]
    %v360 = vld [vmem:[%s2 + $0xd8] sm:$0xff]
    %v361 = vld [vmem:[%s2 + $0xe0] sm:$0xff]
    %v362 = vld [vmem:[%s2 + $0xe8] sm:$0xff]
    %v363 = vld [vmem:[%s2 + $0xf0] sm:$0xff]
    %v364 = vld [vmem:[%s2 + $0xf8] sm:$0xff]
    %v365 = vld [vmem:[#allocation9] sm:$0xff]
    %v366 = vld [vmem:[#allocation9 + $0x8] sm:$0xff]
    %v367 = vld [vmem:[#allocation9 + $0x10] sm:$0xff]
    %v368 = vld [vmem:[#allocation9 + $0x18] sm:$0xff]
    %v369 = vld [vmem:[#allocation9 + $0x20] sm:$0xff]
    %v370 = vld [vmem:[#allocation9 + $0x28] sm:$0xff]
    %v371 = vld [vmem:[#allocation9 + $0x30] sm:$0xff]
    %v372 = vld [vmem:[#allocation9 + $0x38] sm:$0xff]
    %v373 = vld [vmem:[#allocation9 + $0x40] sm:$0xff]
    %v374 = vld [vmem:[#allocation9 + $0x48] sm:$0xff]
    %v375 = vld [vmem:[#allocation9 + $0x50] sm:$0xff]
    %v376 = vld [vmem:[#allocation9 + $0x58] sm:$0xff]
    %v377 = vld [vmem:[#allocation9 + $0x60] sm:$0xff]
    %v378 = vld [vmem:[#allocation9 + $0x68] sm:$0xff]
    %v379 = vld [vmem:[#allocation9 + $0x70] sm:$0xff]
    %v380 = vld [vmem:[#allocation9 + $0x78] sm:$0xff]
    %v381 = vld [vmem:[#allocation9 + $0x80] sm:$0xff]
    %v382 = vld [vmem:[#allocation9 + $0x88] sm:$0xff]
    %v383 = vld [vmem:[#allocation9 + $0x90] sm:$0xff]
    %v384 = vld [vmem:[#allocation9 + $0x98] sm:$0xff]
    %v385 = vld [vmem:[#allocation9 + $0xa0] sm:$0xff]
    %v386 = vld [vmem:[#allocation9 + $0xa8] sm:$0xff]
    %v387 = vld [vmem:[#allocation9 + $0xb0] sm:$0xff]
    %v388 = vld [vmem:[#allocation9 + $0xb8] sm:$0xff]
    %v389 = vld [vmem:[#allocation9 + $0xc0] sm:$0xff]
    %v390 = vld [vmem:[#allocation9 + $0xc8] sm:$0xff]
    %v391 = vld [vmem:[#allocation9 + $0xd0] sm:$0xff]
    %v392 = vld [vmem:[#allocation9 + $0xd8] sm:$0xff]
    %v393 = vld [vmem:[#allocation9 + $0xe0] sm:$0xff]
    %v394 = vld [vmem:[#allocation9 + $0xe8] sm:$0xff]
    %v395 = vld [vmem:[#allocation9 + $0xf0] sm:$0xff]
    %v396 = vld [vmem:[#allocation9 + $0xf8] sm:$0xff]
    %v397 = vld [vmem:[#allocation9 + $0x100] sm:$0xff]
    %v398 = vld [vmem:[#allocation9 + $0x108] sm:$0xff]
    %v399 = vld [vmem:[#allocation9 + $0x110] sm:$0xff]
    %v400 = vld [vmem:[#allocation9 + $0x118] sm:$0xff]
    %v401 = vld [vmem:[#allocation9 + $0x120] sm:$0xff]
    %v402 = vld [vmem:[#allocation9 + $0x128] sm:$0xff]
    %v403 = vld [vmem:[#allocation9 + $0x130] sm:$0xff]
    %v404 = vld [vmem:[#allocation9 + $0x138] sm:$0xff]
    %v405 = vld [vmem:[#allocation9 + $0x140] sm:$0xff]
    %v406 = vld [vmem:[#allocation9 + $0x148] sm:$0xff]
    %v407 = vld [vmem:[#allocation9 + $0x150] sm:$0xff]
    %v408 = vld [vmem:[#allocation9 + $0x158] sm:$0xff]
    %v409 = vld [vmem:[#allocation9 + $0x160] sm:$0xff]
    %v410 = vld [vmem:[#allocation9 + $0x168] sm:$0xff]
    %v411 = vld [vmem:[#allocation9 + $0x170] sm:$0xff]
    %v412 = vld [vmem:[#allocation9 + $0x178] sm:$0xff]
    %v413 = vld [vmem:[#allocation9 + $0x180] sm:$0xff]
    %v414 = vld [vmem:[#allocation9 + $0x188] sm:$0xff]
    %v415 = vld [vmem:[#allocation9 + $0x190] sm:$0xff]
    %v416 = vld [vmem:[#allocation9 + $0x198] sm:$0xff]
    %v417 = vld [vmem:[#allocation9 + $0x1a0] sm:$0xff]
    %v418 = vld [vmem:[#allocation9 + $0x1a8] sm:$0xff]
    %v419 = vld [vmem:[#allocation9 + $0x1b0] sm:$0xff]
    %v420 = vld [vmem:[#allocation9 + $0x1b8] sm:$0xff]
    %v421 = vld [vmem:[#allocation9 + $0x1c0] sm:$0xff]
    %v422 = vld [vmem:[#allocation9 + $0x1c8] sm:$0xff]
    %v423 = vld [vmem:[#allocation9 + $0x1d0] sm:$0xff]
    %v424 = vld [vmem:[#allocation9 + $0x1d8] sm:$0xff]
    %v425 = vld [vmem:[#allocation9 + $0x1e0] sm:$0xff]
    %v426 = vld [vmem:[#allocation9 + $0x1e8] sm:$0xff]
    %v427 = vld [vmem:[#allocation9 + $0x1f0] sm:$0xff]
    %v428 = vld [vmem:[#allocation9 + $0x1f8] sm:$0xff]
    %v429 = vld [vmem:[%s5] sm:$0xf]
    %v431 = vlaneseq
    %v432 = vshrl.u32 %v431, 7
    %v433 = vsub.s32 0, %v432
    %v434 = vrot.slane %v429, %v433
    %v435 = vlaneseq
    %v436 = vshrl.u32 %v435, 7
    %v437 = vsub.s32 1, %v436
    %v438 = vrot.slane %v429, %v437
    %v439 = vlaneseq
    %v440 = vshrl.u32 %v439, 7
    %v441 = vsub.s32 2, %v440
    %v442 = vrot.slane %v429, %v441
    %v443 = vlaneseq
    %v444 = vshrl.u32 %v443, 7
    %v445 = vsub.s32 3, %v444
    %v446 = vrot.slane %v429, %v445
    %v451 = vld [vmem:[#allocation3] sm:$0xf]
    %v452 = vld [vmem:[#allocation4] sm:$0xff]
    %v453 = vld [vmem:[#allocation5] sm:$0xf]
    %v454 = vld [vmem:[#allocation6] sm:$0xff]
    %s455 = smul.u32 0, 4
    %s456 = smul.addr %s455, 8
    %s457 = scalar_lea.vmem [#allocation2], %s456
    %v458 = vld [vmem:[%s457] sm:$0xff]
    %v459 = vld [vmem:[%s457 + $0x8] sm:$0xff]
    %v460 = vld [vmem:[%s457 + $0x10] sm:$0xff]
    %v461 = vld [vmem:[%s457 + $0x18] sm:$0xff]
    %v494 = vunpack.c.l.b16 %v333
    %v495 = vunpack.c.h.b16 %v333
    %v496 = vunpack.c.l.b16 %v334
    %v497 = vunpack.c.h.b16 %v334
    %v498 = vunpack.c.l.b16 %v335
    %v499 = vunpack.c.h.b16 %v335
    %v500 = vunpack.c.l.b16 %v336
    %v501 = vunpack.c.h.b16 %v336
    %v502 = vunpack.c.l.b16 %v337
    %v503 = vunpack.c.h.b16 %v337
    %v504 = vunpack.c.l.b16 %v338
    %v505 = vunpack.c.h.b16 %v338
    %v506 = vunpack.c.l.b16 %v339
    %v507 = vunpack.c.h.b16 %v339
    %v508 = vunpack.c.l.b16 %v340
    %v509 = vunpack.c.h.b16 %v340
    %v510 = vunpack.c.l.b16 %v341
    %v511 = vunpack.c.h.b16 %v341
    %v512 = vunpack.c.l.b16 %v342
    %v513 = vunpack.c.h.b16 %v342
    %v514 = vunpack.c.l.b16 %v343
    %v515 = vunpack.c.h.b16 %v343
    %v516 = vunpack.c.l.b16 %v344
    %v517 = vunpack.c.h.b16 %v344
    %v518 = vunpack.c.l.b16 %v345
    %v519 = vunpack.c.h.b16 %v345
    %v520 = vunpack.c.l.b16 %v346
    %v521 = vunpack.c.h.b16 %v346
    %v522 = vunpack.c.l.b16 %v347
    %v523 = vunpack.c.h.b16 %v347
    %v524 = vunpack.c.l.b16 %v348
    %v525 = vunpack.c.h.b16 %v348
    %v526 = vunpack.c.l.b16 %v349
    %v527 = vunpack.c.h.b16 %v349
    %v528 = vunpack.c.l.b16 %v350
    %v529 = vunpack.c.h.b16 %v350
    %v530 = vunpack.c.l.b16 %v351
    %v531 = vunpack.c.h.b16 %v351
    %v532 = vunpack.c.l.b16 %v352
    %v533 = vunpack.c.h.b16 %v352
    %v534 = vunpack.c.l.b16 %v353
    %v535 = vunpack.c.h.b16 %v353
    %v536 = vunpack.c.l.b16 %v354
    %v537 = vunpack.c.h.b16 %v354
    %v538 = vunpack.c.l.b16 %v355
    %v539 = vunpack.c.h.b16 %v355
    %v540 = vunpack.c.l.b16 %v356
    %v541 = vunpack.c.h.b16 %v356
    %v542 = vunpack.c.l.b16 %v357
    %v543 = vunpack.c.h.b16 %v357
    %v544 = vunpack.c.l.b16 %v358
    %v545 = vunpack.c.h.b16 %v358
    %v546 = vunpack.c.l.b16 %v359
    %v547 = vunpack.c.h.b16 %v359
    %v548 = vunpack.c.l.b16 %v360
    %v549 = vunpack.c.h.b16 %v360
    %v550 = vunpack.c.l.b16 %v361
    %v551 = vunpack.c.h.b16 %v361
    %v552 = vunpack.c.l.b16 %v362
    %v553 = vunpack.c.h.b16 %v362
    %v554 = vunpack.c.l.b16 %v363
    %v555 = vunpack.c.h.b16 %v363
    %v556 = vunpack.c.l.b16 %v364
    %v557 = vunpack.c.h.b16 %v364
    %v558 = vpack.c.b16 %v498, %v494
    %v559 = vpack.c.b16 %v499, %v495
    %v560 = vpack.c.b16 %v500, %v496
    %v561 = vpack.c.b16 %v501, %v497
    %v562 = vpack.c.b16 %v506, %v502
    %v563 = vpack.c.b16 %v507, %v503
    %v564 = vpack.c.b16 %v508, %v504
    %v565 = vpack.c.b16 %v509, %v505
    %v566 = vpack.c.b16 %v514, %v510
    %v567 = vpack.c.b16 %v515, %v511
    %v568 = vpack.c.b16 %v516, %v512
    %v569 = vpack.c.b16 %v517, %v513
    %v570 = vpack.c.b16 %v522, %v518
    %v571 = vpack.c.b16 %v523, %v519
    %v572 = vpack.c.b16 %v524, %v520
    %v573 = vpack.c.b16 %v525, %v521
    %v574 = vpack.c.b16 %v530, %v526
    %v575 = vpack.c.b16 %v531, %v527
    %v576 = vpack.c.b16 %v532, %v528
    %v577 = vpack.c.b16 %v533, %v529
    %v578 = vpack.c.b16 %v538, %v534
    %v579 = vpack.c.b16 %v539, %v535
    %v580 = vpack.c.b16 %v540, %v536
    %v581 = vpack.c.b16 %v541, %v537
    %v582 = vpack.c.b16 %v546, %v542
    %v583 = vpack.c.b16 %v547, %v543
    %v584 = vpack.c.b16 %v548, %v544
    %v585 = vpack.c.b16 %v549, %v545
    %v586 = vpack.c.b16 %v554, %v550
    %v587 = vpack.c.b16 %v555, %v551
    %v588 = vpack.c.b16 %v556, %v552
    %v589 = vpack.c.b16 %v557, %v553
    %622 = vmatprep.subr.bf16.mxu0 %v587
    %623 = vmatpush1.bf16.msra.mxu0 %v586
    %624 = vmatprep.subr.bf16.mxu0 %v583
    %625 = vmatpush1.bf16.msra.mxu0 %v582
    %626 = vmatprep.subr.bf16.mxu0 %v579
    %627 = vmatpush1.bf16.msra.mxu0 %v578
    %628 = vmatprep.subr.bf16.mxu0 %v575
    %629 = vmatpush1.bf16.msra.mxu0 %v574
    %630 = vmatprep.subr.bf16.mxu0 %v571
    %631 = vmatpush1.bf16.msra.mxu0 %v570
    %632 = vmatprep.subr.bf16.mxu0 %v567
    %633 = vmatpush1.bf16.msra.mxu0 %v566
    %634 = vmatprep.subr.bf16.mxu0 %v563
    %635 = vmatpush1.bf16.msra.mxu0 %v562
    %636 = vmatprep.subr.bf16.mxu0 %v559
    %637 = vmatpush1.bf16.msra.mxu0 %v558
    %638 = vmatprep.subr.bf16.mxu0 0
    %639 = vmatpush2.bf16.msra.mxu0 0
    %640 = vmatprep.subr.bf16.mxu0 0
    %641 = vmatpush2.bf16.msra.mxu0 0
    %642 = vmatprep.subr.bf16.mxu0 0
    %643 = vmatpush2.bf16.msra.mxu0 0
    %644 = vmatprep.subr.bf16.mxu0 0
    %645 = vmatpush2.bf16.msra.mxu0 0
    %646 = vmatprep.subr.bf16.mxu0 0
    %647 = vmatpush2.bf16.msra.mxu0 0
    %648 = vmatprep.subr.bf16.mxu0 0
    %649 = vmatpush2.bf16.msra.mxu0 0
    %650 = vmatprep.subr.bf16.mxu0 0
    %651 = vmatpush2.bf16.msra.mxu0 0
    %652 = vmatprep.subr.bf16.mxu0 0
    %653 = vmatpush2.bf16.msra.mxu0 0
    %654 = vmatprep.mubr.bf16.mxu0 0
    %655 = vmatmul.mubr.bf16.gmra.mxu0 %v451
    %v656 = vpop.f32.mrf.mxu0
    %v657 = vadd.f32 0.0, %v656
    %v658 = vpop.f32.mrf.mxu0
    %v659 = vadd.f32 0.0, %v658
    %v660 = vpop.f32.mrf.mxu0
    %v661 = vpop.f32.mrf.mxu0
    %662 = vdwg.mxu0
    %663 = vmatprep.subr.bf16.mxu0 %v589
    %664 = vmatpush1.bf16.msra.mxu0 %v588
    %665 = vmatprep.subr.bf16.mxu0 %v585
    %666 = vmatpush1.bf16.msra.mxu0 %v584
    %667 = vmatprep.subr.bf16.mxu0 %v581
    %668 = vmatpush1.bf16.msra.mxu0 %v580
    %669 = vmatprep.subr.bf16.mxu0 %v577
    %670 = vmatpush1.bf16.msra.mxu0 %v576
    %671 = vmatprep.subr.bf16.mxu0 %v573
    %672 = vmatpush1.bf16.msra.mxu0 %v572
    %673 = vmatprep.subr.bf16.mxu0 %v569
    %674 = vmatpush1.bf16.msra.mxu0 %v568
    %675 = vmatprep.subr.bf16.mxu0 %v565
    %676 = vmatpush1.bf16.msra.mxu0 %v564
    %677 = vmatprep.subr.bf16.mxu0 %v561
    %678 = vmatpush1.bf16.msra.mxu0 %v560
    %679 = vmatprep.subr.bf16.mxu0 0
    %680 = vmatpush2.bf16.msra.mxu0 0
    %681 = vmatprep.subr.bf16.mxu0 0
    %682 = vmatpush2.bf16.msra.mxu0 0
    %683 = vmatprep.subr.bf16.mxu0 0
    %684 = vmatpush2.bf16.msra.mxu0 0
    %685 = vmatprep.subr.bf16.mxu0 0
    %686 = vmatpush2.bf16.msra.mxu0 0
    %687 = vmatprep.subr.bf16.mxu0 0
    %688 = vmatpush2.bf16.msra.mxu0 0
    %689 = vmatprep.subr.bf16.mxu0 0
    %690 = vmatpush2.bf16.msra.mxu0 0
    %691 = vmatprep.subr.bf16.mxu0 0
    %692 = vmatpush2.bf16.msra.mxu0 0
    %693 = vmatprep.subr.bf16.mxu0 0
    %694 = vmatpush2.bf16.msra.mxu0 0
    %695 = vmatprep.mubr.bf16.mxu0 0
    %696 = vmatmul.mubr.bf16.gmra.mxu0 %v451
    %v697 = vpop.f32.mrf.mxu0
    %v698 = vadd.f32 0.0, %v697
    %v699 = vpop.f32.mrf.mxu0
    %v700 = vadd.f32 0.0, %v699
    %v701 = vpop.f32.mrf.mxu0
    %v702 = vpop.f32.mrf.mxu0
    %703 = vdwg.mxu0
    %v704 = vadd.f32 %v458, %v657
    %v705 = vadd.f32 %v459, %v659
    %v706 = vadd.f32 %v460, %v698
    %v707 = vadd.f32 %v461, %v700
    %v708 = vxor.u32 %v704, 2147483648
    %v709 = vxor.u32 %v705, 2147483648
    %v710 = vxor.u32 %v706, 2147483648
    %v711 = vmul.f32 %v708, 1.442695
    %v712 = vpow.pop %v711
    %v713 = vmul.f32 %v709, 1.442695
    %v714 = vpow.pop %v713
    %v715 = vmul.f32 %v710, 1.442695
    %v716 = vpow.pop %v715
    %v717 = vadd.f32 %v712, 1.0
    %v718 = vadd.f32 %v714, 1.0
    %v719 = vadd.f32 %v716, 1.0
    %v720 = vrcp.pop %v717
    %v721 = vmul.f32 1.0, %v720
    %v722 = vrcp.pop %v718
    %v723 = vmul.f32 1.0, %v722
    %v724 = vrcp.pop %v719
    %v725 = vmul.f32 1.0, %v724
    %v726 = vtanh.pop %v707
    %v727 = vmul.f32 %v723, %v452
    %v728 = vmul.f32 %v721, %v726
    %v729 = vadd.f32 %v727, %v728
    %v730 = vtanh.pop %v729
    %v731 = vmul.f32 %v725, %v730
    %v732 = vpack.c.bf16 %v731, %v731
    %v797 = vunpack.c.l.b16 %v365
    %v798 = vunpack.c.h.b16 %v365
    %v799 = vunpack.c.l.b16 %v366
    %v800 = vunpack.c.h.b16 %v366
    %v801 = vunpack.c.l.b16 %v367
    %v802 = vunpack.c.h.b16 %v367
    %v803 = vunpack.c.l.b16 %v368
    %v804 = vunpack.c.h.b16 %v368
    %v805 = vunpack.c.l.b16 %v369
    %v806 = vunpack.c.h.b16 %v369
    %v807 = vunpack.c.l.b16 %v370
    %v808 = vunpack.c.h.b16 %v370
    %v809 = vunpack.c.l.b16 %v371
    %v810 = vunpack.c.h.b16 %v371
    %v811 = vunpack.c.l.b16 %v372
    %v812 = vunpack.c.h.b16 %v372
    %v813 = vunpack.c.l.b16 %v373
    %v814 = vunpack.c.h.b16 %v373
    %v815 = vunpack.c.l.b16 %v374
    %v816 = vunpack.c.h.b16 %v374
    %v817 = vunpack.c.l.b16 %v375
    %v818 = vunpack.c.h.b16 %v375
    %v819 = vunpack.c.l.b16 %v376
    %v820 = vunpack.c.h.b16 %v376
    %v821 = vunpack.c.l.b16 %v377
    %v822 = vunpack.c.h.b16 %v377
    %v823 = vunpack.c.l.b16 %v378
    %v824 = vunpack.c.h.b16 %v378
    %v825 = vunpack.c.l.b16 %v379
    %v826 = vunpack.c.h.b16 %v379
    %v827 = vunpack.c.l.b16 %v380
    %v828 = vunpack.c.h.b16 %v380
    %v829 = vunpack.c.l.b16 %v381
    %v830 = vunpack.c.h.b16 %v381
    %v831 = vunpack.c.l.b16 %v382
    %v832 = vunpack.c.h.b16 %v382
    %v833 = vunpack.c.l.b16 %v383
    %v834 = vunpack.c.h.b16 %v383
    %v835 = vunpack.c.l.b16 %v384
    %v836 = vunpack.c.h.b16 %v384
    %v837 = vunpack.c.l.b16 %v385
    %v838 = vunpack.c.h.b16 %v385
    %v839 = vunpack.c.l.b16 %v386
    %v840 = vunpack.c.h.b16 %v386
    %v841 = vunpack.c.l.b16 %v387
    %v842 = vunpack.c.h.b16 %v387
    %v843 = vunpack.c.l.b16 %v388
    %v844 = vunpack.c.h.b16 %v388
    %v845 = vunpack.c.l.b16 %v389
    %v846 = vunpack.c.h.b16 %v389
    %v847 = vunpack.c.l.b16 %v390
    %v848 = vunpack.c.h.b16 %v390
    %v849 = vunpack.c.l.b16 %v391
    %v850 = vunpack.c.h.b16 %v391
    %v851 = vunpack.c.l.b16 %v392
    %v852 = vunpack.c.h.b16 %v392
    %v853 = vunpack.c.l.b16 %v393
    %v854 = vunpack.c.h.b16 %v393
    %v855 = vunpack.c.l.b16 %v394
    %v856 = vunpack.c.h.b16 %v394
    %v857 = vunpack.c.l.b16 %v395
    %v858 = vunpack.c.h.b16 %v395
    %v859 = vunpack.c.l.b16 %v396
    %v860 = vunpack.c.h.b16 %v396
    %v861 = vunpack.c.l.b16 %v397
    %v862 = vunpack.c.h.b16 %v397
    %v863 = vunpack.c.l.b16 %v398
    %v864 = vunpack.c.h.b16 %v398
    %v865 = vunpack.c.l.b16 %v399
    %v866 = vunpack.c.h.b16 %v399
    %v867 = vunpack.c.l.b16 %v400
    %v868 = vunpack.c.h.b16 %v400
    %v869 = vunpack.c.l.b16 %v401
    %v870 = vunpack.c.h.b16 %v401
    %v871 = vunpack.c.l.b16 %v402
    %v872 = vunpack.c.h.b16 %v402
    %v873 = vunpack.c.l.b16 %v403
    %v874 = vunpack.c.h.b16 %v403
    %v875 = vunpack.c.l.b16 %v404
    %v876 = vunpack.c.h.b16 %v404
    %v877 = vunpack.c.l.b16 %v405
    %v878 = vunpack.c.h.b16 %v405
    %v879 = vunpack.c.l.b16 %v406
    %v880 = vunpack.c.h.b16 %v406
    %v881 = vunpack.c.l.b16 %v407
    %v882 = vunpack.c.h.b16 %v407
    %v883 = vunpack.c.l.b16 %v408
    %v884 = vunpack.c.h.b16 %v408
    %v885 = vunpack.c.l.b16 %v409
    %v886 = vunpack.c.h.b16 %v409
    %v887 = vunpack.c.l.b16 %v410
    %v888 = vunpack.c.h.b16 %v410
    %v889 = vunpack.c.l.b16 %v411
    %v890 = vunpack.c.h.b16 %v411
    %v891 = vunpack.c.l.b16 %v412
    %v892 = vunpack.c.h.b16 %v412
    %v893 = vunpack.c.l.b16 %v413
    %v894 = vunpack.c.h.b16 %v413
    %v895 = vunpack.c.l.b16 %v414
    %v896 = vunpack.c.h.b16 %v414
    %v897 = vunpack.c.l.b16 %v415
    %v898 = vunpack.c.h.b16 %v415
    %v899 = vunpack.c.l.b16 %v416
    %v900 = vunpack.c.h.b16 %v416
    %v901 = vunpack.c.l.b16 %v417
    %v902 = vunpack.c.h.b16 %v417
    %v903 = vunpack.c.l.b16 %v418
    %v904 = vunpack.c.h.b16 %v418
    %v905 = vunpack.c.l.b16 %v419
    %v906 = vunpack.c.h.b16 %v419
    %v907 = vunpack.c.l.b16 %v420
    %v908 = vunpack.c.h.b16 %v420
    %v909 = vunpack.c.l.b16 %v421
    %v910 = vunpack.c.h.b16 %v421
    %v911 = vunpack.c.l.b16 %v422
    %v912 = vunpack.c.h.b16 %v422
    %v913 = vunpack.c.l.b16 %v423
    %v914 = vunpack.c.h.b16 %v423
    %v915 = vunpack.c.l.b16 %v424
    %v916 = vunpack.c.h.b16 %v424
    %v917 = vunpack.c.l.b16 %v425
    %v918 = vunpack.c.h.b16 %v425
    %v919 = vunpack.c.l.b16 %v426
    %v920 = vunpack.c.h.b16 %v426
    %v921 = vunpack.c.l.b16 %v427
    %v922 = vunpack.c.h.b16 %v427
    %v923 = vunpack.c.l.b16 %v428
    %v924 = vunpack.c.h.b16 %v428
    %v925 = vpack.c.b16 %v801, %v797
    %v926 = vpack.c.b16 %v802, %v798
    %v927 = vpack.c.b16 %v803, %v799
    %v928 = vpack.c.b16 %v804, %v800
    %v929 = vpack.c.b16 %v809, %v805
    %v930 = vpack.c.b16 %v810, %v806
    %v931 = vpack.c.b16 %v811, %v807
    %v932 = vpack.c.b16 %v812, %v808
    %v933 = vpack.c.b16 %v817, %v813
    %v934 = vpack.c.b16 %v818, %v814
    %v935 = vpack.c.b16 %v819, %v815
    %v936 = vpack.c.b16 %v820, %v816
    %v937 = vpack.c.b16 %v825, %v821
    %v938 = vpack.c.b16 %v826, %v822
    %v939 = vpack.c.b16 %v827, %v823
    %v940 = vpack.c.b16 %v828, %v824
    %v941 = vpack.c.b16 %v833, %v829
    %v942 = vpack.c.b16 %v834, %v830
    %v943 = vpack.c.b16 %v835, %v831
    %v944 = vpack.c.b16 %v836, %v832
    %v945 = vpack.c.b16 %v841, %v837
    %v946 = vpack.c.b16 %v842, %v838
    %v947 = vpack.c.b16 %v843, %v839
    %v948 = vpack.c.b16 %v844, %v840
    %v949 = vpack.c.b16 %v849, %v845
    %v950 = vpack.c.b16 %v850, %v846
    %v951 = vpack.c.b16 %v851, %v847
    %v952 = vpack.c.b16 %v852, %v848
    %v953 = vpack.c.b16 %v857, %v853
    %v954 = vpack.c.b16 %v858, %v854
    %v955 = vpack.c.b16 %v859, %v855
    %v956 = vpack.c.b16 %v860, %v856
    %v957 = vpack.c.b16 %v865, %v861
    %v958 = vpack.c.b16 %v866, %v862
    %v959 = vpack.c.b16 %v867, %v863
    %v960 = vpack.c.b16 %v868, %v864
    %v961 = vpack.c.b16 %v873, %v869
    %v962 = vpack.c.b16 %v874, %v870
    %v963 = vpack.c.b16 %v875, %v871
    %v964 = vpack.c.b16 %v876, %v872
    %v965 = vpack.c.b16 %v881, %v877
    %v966 = vpack.c.b16 %v882, %v878
    %v967 = vpack.c.b16 %v883, %v879
    %v968 = vpack.c.b16 %v884, %v880
    %v969 = vpack.c.b16 %v889, %v885
    %v970 = vpack.c.b16 %v890, %v886
    %v971 = vpack.c.b16 %v891, %v887
    %v972 = vpack.c.b16 %v892, %v888
    %v973 = vpack.c.b16 %v897, %v893
    %v974 = vpack.c.b16 %v898, %v894
    %v975 = vpack.c.b16 %v899, %v895
    %v976 = vpack.c.b16 %v900, %v896
    %v977 = vpack.c.b16 %v905, %v901
    %v978 = vpack.c.b16 %v906, %v902
    %v979 = vpack.c.b16 %v907, %v903
    %v980 = vpack.c.b16 %v908, %v904
    %v981 = vpack.c.b16 %v913, %v909
    %v982 = vpack.c.b16 %v914, %v910
    %v983 = vpack.c.b16 %v915, %v911
    %v984 = vpack.c.b16 %v916, %v912
    %v985 = vpack.c.b16 %v921, %v917
    %v986 = vpack.c.b16 %v922, %v918
    %v987 = vpack.c.b16 %v923, %v919
    %v988 = vpack.c.b16 %v924, %v920
    %1053 = vmatprep.subr.bf16.mxu0 %v954
    %1054 = vmatpush1.bf16.msra.mxu0 %v953
    %1055 = vmatprep.subr.bf16.mxu0 %v950
    %1056 = vmatpush1.bf16.msra.mxu0 %v949
    %1057 = vmatprep.subr.bf16.mxu0 %v946
    %1058 = vmatpush1.bf16.msra.mxu0 %v945
    %1059 = vmatprep.subr.bf16.mxu0 %v942
    %1060 = vmatpush1.bf16.msra.mxu0 %v941
    %1061 = vmatprep.subr.bf16.mxu0 %v938
    %1062 = vmatpush1.bf16.msra.mxu0 %v937
    %1063 = vmatprep.subr.bf16.mxu0 %v934
    %1064 = vmatpush1.bf16.msra.mxu0 %v933
    %1065 = vmatprep.subr.bf16.mxu0 %v930
    %1066 = vmatpush1.bf16.msra.mxu0 %v929
    %1067 = vmatprep.subr.bf16.mxu0 %v926
    %1068 = vmatpush1.bf16.msra.mxu0 %v925
    %1069 = vmatprep.subr.bf16.mxu0 %v986
    %1070 = vmatpush2.bf16.msra.mxu0 %v985
    %1071 = vmatprep.subr.bf16.mxu0 %v982
    %1072 = vmatpush2.bf16.msra.mxu0 %v981
    %1073 = vmatprep.subr.bf16.mxu0 %v978
    %1074 = vmatpush2.bf16.msra.mxu0 %v977
    %1075 = vmatprep.subr.bf16.mxu0 %v974
    %1076 = vmatpush2.bf16.msra.mxu0 %v973
    %1077 = vmatprep.subr.bf16.mxu0 %v970
    %1078 = vmatpush2.bf16.msra.mxu0 %v969
    %1079 = vmatprep.subr.bf16.mxu0 %v966
    %1080 = vmatpush2.bf16.msra.mxu0 %v965
    %1081 = vmatprep.subr.bf16.mxu0 %v962
    %1082 = vmatpush2.bf16.msra.mxu0 %v961
    %1083 = vmatprep.subr.bf16.mxu0 %v958
    %1084 = vmatpush2.bf16.msra.mxu0 %v957
    %1085 = vmatprep.mubr.bf16.mxu0 %v453
    %1086 = vmatmul.mubr.bf16.gmra.mxu0 %v732
    %v1087 = vpop.f32.mrf.mxu0
    %v1088 = vadd.f32 0.0, %v1087
    %v1089 = vpop.f32.mrf.mxu0
    %v1090 = vadd.f32 0.0, %v1089
    %v1091 = vpop.f32.mrf.mxu0
    %v1092 = vpop.f32.mrf.mxu0
    %1093 = vdwg.mxu0
    %1094 = vmatprep.subr.bf16.mxu0 %v956
    %1095 = vmatpush1.bf16.msra.mxu0 %v955
    %1096 = vmatprep.subr.bf16.mxu0 %v952
    %1097 = vmatpush1.bf16.msra.mxu0 %v951
    %1098 = vmatprep.subr.bf16.mxu0 %v948
    %1099 = vmatpush1.bf16.msra.mxu0 %v947
    %1100 = vmatprep.subr.bf16.mxu0 %v944
    %1101 = vmatpush1.bf16.msra.mxu0 %v943
    %1102 = vmatprep.subr.bf16.mxu0 %v940
    %1103 = vmatpush1.bf16.msra.mxu0 %v939
    %1104 = vmatprep.subr.bf16.mxu0 %v936
    %1105 = vmatpush1.bf16.msra.mxu0 %v935
    %1106 = vmatprep.subr.bf16.mxu0 %v932
    %1107 = vmatpush1.bf16.msra.mxu0 %v931
    %1108 = vmatprep.subr.bf16.mxu0 %v928
    %1109 = vmatpush1.bf16.msra.mxu0 %v927
    %1110 = vmatprep.subr.bf16.mxu0 %v988
    %1111 = vmatpush2.bf16.msra.mxu0 %v987
    %1112 = vmatprep.subr.bf16.mxu0 %v984
    %1113 = vmatpush2.bf16.msra.mxu0 %v983
    %1114 = vmatprep.subr.bf16.mxu0 %v980
    %1115 = vmatpush2.bf16.msra.mxu0 %v979
    %1116 = vmatprep.subr.bf16.mxu0 %v976
    %1117 = vmatpush2.bf16.msra.mxu0 %v975
    %1118 = vmatprep.subr.bf16.mxu0 %v972
    %1119 = vmatpush2.bf16.msra.mxu0 %v971
    %1120 = vmatprep.subr.bf16.mxu0 %v968
    %1121 = vmatpush2.bf16.msra.mxu0 %v967
    %1122 = vmatprep.subr.bf16.mxu0 %v964
    %1123 = vmatpush2.bf16.msra.mxu0 %v963
    %1124 = vmatprep.subr.bf16.mxu0 %v960
    %1125 = vmatpush2.bf16.msra.mxu0 %v959
    %1126 = vmatprep.mubr.bf16.mxu0 %v453
    %1127 = vmatmul.mubr.bf16.gmra.mxu0 %v732
    %v1128 = vpop.f32.mrf.mxu0
    %v1129 = vadd.f32 0.0, %v1128
    %v1130 = vpop.f32.mrf.mxu0
    %v1131 = vadd.f32 0.0, %v1130
    %v1132 = vpop.f32.mrf.mxu0
    %v1133 = vpop.f32.mrf.mxu0
    %1134 = vdwg.mxu0
    %v1135 = vadd.f32 %v434, %v1088
    %v1136 = vadd.f32 %v438, %v1090
    %v1137 = vadd.f32 %v442, %v1129
    %v1138 = vadd.f32 %v446, %v1131
    %v1139 = vxor.u32 %v1135, 2147483648
    %v1140 = vxor.u32 %v1136, 2147483648
    %v1141 = vxor.u32 %v1137, 2147483648
    %v1142 = vmul.f32 %v1139, 1.442695
    %v1143 = vpow.pop %v1142
    %v1144 = vmul.f32 %v1140, 1.442695
    %v1145 = vpow.pop %v1144
    %v1146 = vmul.f32 %v1141, 1.442695
    %v1147 = vpow.pop %v1146
    %v1148 = vadd.f32 %v1143, 1.0
    %v1149 = vadd.f32 %v1145, 1.0
    %v1150 = vadd.f32 %v1147, 1.0
    %v1151 = vrcp.pop %v1148
    %v1152 = vmul.f32 1.0, %v1151
    %v1153 = vrcp.pop %v1149
    %v1154 = vmul.f32 1.0, %v1153
    %v1155 = vrcp.pop %v1150
    %v1156 = vmul.f32 1.0, %v1155
    %v1157 = vtanh.pop %v1138
    %v1158 = vmul.f32 %v1154, %v454
    %v1159 = vmul.f32 %v1152, %v1157
    %v1160 = vadd.f32 %v1158, %v1159
    %v1161 = vtanh.pop %v1160
    %v1162 = vmul.f32 %v1156, %v1161
    %v1163 = vpack.c.bf16 %v1162, %v1162
    %s1164 = smul.u32 1, 4
    %s1165 = smul.addr %s1164, 8
    %s1166 = scalar_lea.vmem [#allocation2], %s1165
    %v1167 = vld [vmem:[%s1166] sm:$0xff]
    %v1168 = vld [vmem:[%s1166 + $0x8] sm:$0xff]
    %v1169 = vld [vmem:[%s1166 + $0x10] sm:$0xff]
    %v1170 = vld [vmem:[%s1166 + $0x18] sm:$0xff]
    %1171 = vmatprep.subr.bf16.mxu0 %v587
    %1172 = vmatpush1.bf16.msra.mxu0 %v586
    %1173 = vmatprep.subr.bf16.mxu0 %v583
    %1174 = vmatpush1.bf16.msra.mxu0 %v582
    %1175 = vmatprep.subr.bf16.mxu0 %v579
    %1176 = vmatpush1.bf16.msra.mxu0 %v578
    %1177 = vmatprep.subr.bf16.mxu0 %v575
    %1178 = vmatpush1.bf16.msra.mxu0 %v574
    %1179 = vmatprep.subr.bf16.mxu0 %v571
    %1180 = vmatpush1.bf16.msra.mxu0 %v570
    %1181 = vmatprep.subr.bf16.mxu0 %v567
    %1182 = vmatpush1.bf16.msra.mxu0 %v566
    %1183 = vmatprep.subr.bf16.mxu0 %v563
    %1184 = vmatpush1.bf16.msra.mxu0 %v562
    %1185 = vmatprep.subr.bf16.mxu0 %v559
    %1186 = vmatpush1.bf16.msra.mxu0 %v558
    %1187 = vmatprep.subr.bf16.mxu0 0
    %1188 = vmatpush2.bf16.msra.mxu0 0
    %1189 = vmatprep.subr.bf16.mxu0 0
    %1190 = vmatpush2.bf16.msra.mxu0 0
    %1191 = vmatprep.subr.bf16.mxu0 0
    %1192 = vmatpush2.bf16.msra.mxu0 0
    %1193 = vmatprep.subr.bf16.mxu0 0
    %1194 = vmatpush2.bf16.msra.mxu0 0
    %1195 = vmatprep.subr.bf16.mxu0 0
    %1196 = vmatpush2.bf16.msra.mxu0 0
    %1197 = vmatprep.subr.bf16.mxu0 0
    %1198 = vmatpush2.bf16.msra.mxu0 0
    %1199 = vmatprep.subr.bf16.mxu0 0
    %1200 = vmatpush2.bf16.msra.mxu0 0
    %1201 = vmatprep.subr.bf16.mxu0 0
    %1202 = vmatpush2.bf16.msra.mxu0 0
    %1203 = vmatprep.mubr.bf16.mxu0 0
    %1204 = vmatmul.mubr.bf16.gmra.mxu0 %v732
    %v1205 = vpop.f32.mrf.mxu0
    %v1206 = vadd.f32 0.0, %v1205
    %v1207 = vpop.f32.mrf.mxu0
    %v1208 = vadd.f32 0.0, %v1207
    %v1209 = vpop.f32.mrf.mxu0
    %v1210 = vpop.f32.mrf.mxu0
    %1211 = vdwg.mxu0
    %1212 = vmatprep.subr.bf16.mxu0 %v589
    %1213 = vmatpush1.bf16.msra.mxu0 %v588
    %1214 = vmatprep.subr.bf16.mxu0 %v585
    %1215 = vmatpush1.bf16.msra.mxu0 %v584
    %1216 = vmatprep.subr.bf16.mxu0 %v581
    %1217 = vmatpush1.bf16.msra.mxu0 %v580
    %1218 = vmatprep.subr.bf16.mxu0 %v577
    %1219 = vmatpush1.bf16.msra.mxu0 %v576
    %1220 = vmatprep.subr.bf16.mxu0 %v573
    %1221 = vmatpush1.bf16.msra.mxu0 %v572
    %1222 = vmatprep.subr.bf16.mxu0 %v569
    %1223 = vmatpush1.bf16.msra.mxu0 %v568
    %1224 = vmatprep.subr.bf16.mxu0 %v565
    %1225 = vmatpush1.bf16.msra.mxu0 %v564
    %1226 = vmatprep.subr.bf16.mxu0 %v561
    %1227 = vmatpush1.bf16.msra.mxu0 %v560
    %1228 = vmatprep.subr.bf16.mxu0 0
    %1229 = vmatpush2.bf16.msra.mxu0 0
    %1230 = vmatprep.subr.bf16.mxu0 0
    %1231 = vmatpush2.bf16.msra.mxu0 0
    %1232 = vmatprep.subr.bf16.mxu0 0
    %1233 = vmatpush2.bf16.msra.mxu0 0
    %1234 = vmatprep.subr.bf16.mxu0 0
    %1235 = vmatpush2.bf16.msra.mxu0 0
    %1236 = vmatprep.subr.bf16.mxu0 0
    %1237 = vmatpush2.bf16.msra.mxu0 0
    %1238 = vmatprep.subr.bf16.mxu0 0
    %1239 = vmatpush2.bf16.msra.mxu0 0
    %1240 = vmatprep.subr.bf16.mxu0 0
    %1241 = vmatpush2.bf16.msra.mxu0 0
    %1242 = vmatprep.subr.bf16.mxu0 0
    %1243 = vmatpush2.bf16.msra.mxu0 0
    %1244 = vmatprep.mubr.bf16.mxu0 0
    %1245 = vmatmul.mubr.bf16.gmra.mxu0 %v732
    %v1246 = vpop.f32.mrf.mxu0
    %v1247 = vadd.f32 0.0, %v1246
    %v1248 = vpop.f32.mrf.mxu0
    %v1249 = vadd.f32 0.0, %v1248
    %v1250 = vpop.f32.mrf.mxu0
    %v1251 = vpop.f32.mrf.mxu0
    %1252 = vdwg.mxu0
    %v1253 = vadd.f32 %v1167, %v1206
    %v1254 = vadd.f32 %v1168, %v1208
    %v1255 = vadd.f32 %v1169, %v1247
    %v1256 = vadd.f32 %v1170, %v1249
    %v1257 = vxor.u32 %v1253, 2147483648
    %v1258 = vxor.u32 %v1254, 2147483648
    %v1259 = vxor.u32 %v1255, 2147483648
    %v1260 = vmul.f32 %v1257, 1.442695
    %v1261 = vpow.pop %v1260
    %v1262 = vmul.f32 %v1258, 1.442695
    %v1263 = vpow.pop %v1262
    %v1264 = vmul.f32 %v1259, 1.442695
    %v1265 = vpow.pop %v1264
    %v1266 = vadd.f32 %v1261, 1.0
    %v1267 = vadd.f32 %v1263, 1.0
    %v1268 = vadd.f32 %v1265, 1.0
    %v1269 = vrcp.pop %v1266
    %v1270 = vmul.f32 1.0, %v1269
    %v1271 = vrcp.pop %v1267
    %v1272 = vmul.f32 1.0, %v1271
    %v1273 = vrcp.pop %v1268
    %v1274 = vmul.f32 1.0, %v1273
    %v1275 = vtanh.pop %v1256
    %v1276 = vmul.f32 %v1272, %v729
    %v1277 = vmul.f32 %v1270, %v1275
    %v1278 = vadd.f32 %v1276, %v1277
    %v1279 = vtanh.pop %v1278
    %v1280 = vmul.f32 %v1274, %v1279
    %v1281 = vpack.c.bf16 %v1280, %v1280
    %1282 = vmatprep.subr.bf16.mxu0 %v954
    %1283 = vmatpush1.bf16.msra.mxu0 %v953
    %1284 = vmatprep.subr.bf16.mxu0 %v950
    %1285 = vmatpush1.bf16.msra.mxu0 %v949
    %1286 = vmatprep.subr.bf16.mxu0 %v946
    %1287 = vmatpush1.bf16.msra.mxu0 %v945
    %1288 = vmatprep.subr.bf16.mxu0 %v942
    %1289 = vmatpush1.bf16.msra.mxu0 %v941
    %1290 = vmatprep.subr.bf16.mxu0 %v938
    %1291 = vmatpush1.bf16.msra.mxu0 %v937
    %1292 = vmatprep.subr.bf16.mxu0 %v934
    %1293 = vmatpush1.bf16.msra.mxu0 %v933
    %1294 = vmatprep.subr.bf16.mxu0 %v930
    %1295 = vmatpush1.bf16.msra.mxu0 %v929
    %1296 = vmatprep.subr.bf16.mxu0 %v926
    %1297 = vmatpush1.bf16.msra.mxu0 %v925
    %1298 = vmatprep.subr.bf16.mxu0 %v986
    %1299 = vmatpush2.bf16.msra.mxu0 %v985
    %1300 = vmatprep.subr.bf16.mxu0 %v982
    %1301 = vmatpush2.bf16.msra.mxu0 %v981
    %1302 = vmatprep.subr.bf16.mxu0 %v978
    %1303 = vmatpush2.bf16.msra.mxu0 %v977
    %1304 = vmatprep.subr.bf16.mxu0 %v974
    %1305 = vmatpush2.bf16.msra.mxu0 %v973
    %1306 = vmatprep.subr.bf16.mxu0 %v970
    %1307 = vmatpush2.bf16.msra.mxu0 %v969
    %1308 = vmatprep.subr.bf16.mxu0 %v966
    %1309 = vmatpush2.bf16.msra.mxu0 %v965
    %1310 = vmatprep.subr.bf16.mxu0 %v962
    %1311 = vmatpush2.bf16.msra.mxu0 %v961
    %1312 = vmatprep.subr.bf16.mxu0 %v958
    %1313 = vmatpush2.bf16.msra.mxu0 %v957
    %1314 = vmatprep.mubr.bf16.mxu0 %v1163
    %1315 = vmatmul.mubr.bf16.gmra.mxu0 %v1281
    %v1316 = vpop.f32.mrf.mxu0
    %v1317 = vadd.f32 0.0, %v1316
    %v1318 = vpop.f32.mrf.mxu0
    %v1319 = vadd.f32 0.0, %v1318
    %v1320 = vpop.f32.mrf.mxu0
    %v1321 = vpop.f32.mrf.mxu0
    %1322 = vdwg.mxu0
    %1323 = vmatprep.subr.bf16.mxu0 %v956
    %1324 = vmatpush1.bf16.msra.mxu0 %v955
    %1325 = vmatprep.subr.bf16.mxu0 %v952
    %1326 = vmatpush1.bf16.msra.mxu0 %v951
    %1327 = vmatprep.subr.bf16.mxu0 %v948
    %1328 = vmatpush1.bf16.msra.mxu0 %v947
    %1329 = vmatprep.subr.bf16.mxu0 %v944
    %1330 = vmatpush1.bf16.msra.mxu0 %v943
    %1331 = vmatprep.subr.bf16.mxu0 %v940
    %1332 = vmatpush1.bf16.msra.mxu0 %v939
    %1333 = vmatprep.subr.bf16.mxu0 %v936
    %1334 = vmatpush1.bf16.msra.mxu0 %v935
    %1335 = vmatprep.subr.bf16.mxu0 %v932
    %1336 = vmatpush1.bf16.msra.mxu0 %v931
    %1337 = vmatprep.subr.bf16.mxu0 %v928
    %1338 = vmatpush1.bf16.msra.mxu0 %v927
    %1339 = vmatprep.subr.bf16.mxu0 %v988
    %1340 = vmatpush2.bf16.msra.mxu0 %v987
    %1341 = vmatprep.subr.bf16.mxu0 %v984
    %1342 = vmatpush2.bf16.msra.mxu0 %v983
    %1343 = vmatprep.subr.bf16.mxu0 %v980
    %1344 = vmatpush2.bf16.msra.mxu0 %v979
    %1345 = vmatprep.subr.bf16.mxu0 %v976
    %1346 = vmatpush2.bf16.msra.mxu0 %v975
    %1347 = vmatprep.subr.bf16.mxu0 %v972
    %1348 = vmatpush2.bf16.msra.mxu0 %v971
    %1349 = vmatprep.subr.bf16.mxu0 %v968
    %1350 = vmatpush2.bf16.msra.mxu0 %v967
    %1351 = vmatprep.subr.bf16.mxu0 %v964
    %1352 = vmatpush2.bf16.msra.mxu0 %v963
    %1353 = vmatprep.subr.bf16.mxu0 %v960
    %1354 = vmatpush2.bf16.msra.mxu0 %v959
    %1355 = vmatprep.mubr.bf16.mxu0 %v1163
    %1356 = vmatmul.mubr.bf16.gmra.mxu0 %v1281
    %v1357 = vpop.f32.mrf.mxu0
    %v1358 = vadd.f32 0.0, %v1357
    %v1359 = vpop.f32.mrf.mxu0
    %v1360 = vadd.f32 0.0, %v1359
    %v1361 = vpop.f32.mrf.mxu0
    %v1362 = vpop.f32.mrf.mxu0
    %1363 = vdwg.mxu0
    %v1364 = vadd.f32 %v434, %v1317
    %v1365 = vadd.f32 %v438, %v1319
    %v1366 = vadd.f32 %v442, %v1358
    %v1367 = vadd.f32 %v446, %v1360
    %v1368 = vxor.u32 %v1364, 2147483648
    %v1369 = vxor.u32 %v1365, 2147483648
    %v1370 = vxor.u32 %v1366, 2147483648
    %v1371 = vmul.f32 %v1368, 1.442695
    %v1372 = vpow.pop %v1371
    %v1373 = vmul.f32 %v1369, 1.442695
    %v1374 = vpow.pop %v1373
    %v1375 = vmul.f32 %v1370, 1.442695
    %v1376 = vpow.pop %v1375
    %v1377 = vadd.f32 %v1372, 1.0
    %v1378 = vadd.f32 %v1374, 1.0
    %v1379 = vadd.f32 %v1376, 1.0
    %v1380 = vrcp.pop %v1377
    %v1381 = vmul.f32 1.0, %v1380
    %v1382 = vrcp.pop %v1378
    %v1383 = vmul.f32 1.0, %v1382
    %v1384 = vrcp.pop %v1379
    %v1385 = vmul.f32 1.0, %v1384
    %v1386 = vtanh.pop %v1367
    %v1387 = vmul.f32 %v1383, %v1160
    %v1388 = vmul.f32 %v1381, %v1386
    %v1389 = vadd.f32 %v1387, %v1388
    %v1390 = vtanh.pop %v1389
    %v1391 = vmul.f32 %v1385, %v1390
    %v1392 = vpack.c.bf16 %v1391, %v1391
    %s1393 = smul.u32 2, 4
    %s1394 = smul.addr %s1393, 8
    %s1395 = scalar_lea.vmem [#allocation2], %s1394
    %v1396 = vld [vmem:[%s1395] sm:$0xff]
    %v1397 = vld [vmem:[%s1395 + $0x8] sm:$0xff]
    %v1398 = vld [vmem:[%s1395 + $0x10] sm:$0xff]
    %v1399 = vld [vmem:[%s1395 + $0x18] sm:$0xff]
    %1400 = vmatprep.subr.bf16.mxu0 %v587
    %1401 = vmatpush1.bf16.msra.mxu0 %v586
    %1402 = vmatprep.subr.bf16.mxu0 %v583
    %1403 = vmatpush1.bf16.msra.mxu0 %v582
    %1404 = vmatprep.subr.bf16.mxu0 %v579
    %1405 = vmatpush1.bf16.msra.mxu0 %v578
    %1406 = vmatprep.subr.bf16.mxu0 %v575
    %1407 = vmatpush1.bf16.msra.mxu0 %v574
    %1408 = vmatprep.subr.bf16.mxu0 %v571
    %1409 = vmatpush1.bf16.msra.mxu0 %v570
    %1410 = vmatprep.subr.bf16.mxu0 %v567
    %1411 = vmatpush1.bf16.msra.mxu0 %v566
    %1412 = vmatprep.subr.bf16.mxu0 %v563
    %1413 = vmatpush1.bf16.msra.mxu0 %v562
    %1414 = vmatprep.subr.bf16.mxu0 %v559
    %1415 = vmatpush1.bf16.msra.mxu0 %v558
    %1416 = vmatprep.subr.bf16.mxu0 0
    %1417 = vmatpush2.bf16.msra.mxu0 0
    %1418 = vmatprep.subr.bf16.mxu0 0
    %1419 = vmatpush2.bf16.msra.mxu0 0
    %1420 = vmatprep.subr.bf16.mxu0 0
    %1421 = vmatpush2.bf16.msra.mxu0 0
    %1422 = vmatprep.subr.bf16.mxu0 0
    %1423 = vmatpush2.bf16.msra.mxu0 0
    %1424 = vmatprep.subr.bf16.mxu0 0
    %1425 = vmatpush2.bf16.msra.mxu0 0
    %1426 = vmatprep.subr.bf16.mxu0 0
    %1427 = vmatpush2.bf16.msra.mxu0 0
    %1428 = vmatprep.subr.bf16.mxu0 0
    %1429 = vmatpush2.bf16.msra.mxu0 0
    %1430 = vmatprep.subr.bf16.mxu0 0
    %1431 = vmatpush2.bf16.msra.mxu0 0
    %1432 = vmatprep.mubr.bf16.mxu0 0
    %1433 = vmatmul.mubr.bf16.gmra.mxu0 %v1281
    %v1434 = vpop.f32.mrf.mxu0
    %v1435 = vadd.f32 0.0, %v1434
    %v1436 = vpop.f32.mrf.mxu0
    %v1437 = vadd.f32 0.0, %v1436
    %v1438 = vpop.f32.mrf.mxu0
    %v1439 = vpop.f32.mrf.mxu0
    %1440 = vdwg.mxu0
    %1441 = vmatprep.subr.bf16.mxu0 %v589
    %1442 = vmatpush1.bf16.msra.mxu0 %v588
    %1443 = vmatprep.subr.bf16.mxu0 %v585
    %1444 = vmatpush1.bf16.msra.mxu0 %v584
    %1445 = vmatprep.subr.bf16.mxu0 %v581
    %1446 = vmatpush1.bf16.msra.mxu0 %v580
    %1447 = vmatprep.subr.bf16.mxu0 %v577
    %1448 = vmatpush1.bf16.msra.mxu0 %v576
    %1449 = vmatprep.subr.bf16.mxu0 %v573
    %1450 = vmatpush1.bf16.msra.mxu0 %v572
    %1451 = vmatprep.subr.bf16.mxu0 %v569
    %1452 = vmatpush1.bf16.msra.mxu0 %v568
    %1453 = vmatprep.subr.bf16.mxu0 %v565
    %1454 = vmatpush1.bf16.msra.mxu0 %v564
    %1455 = vmatprep.subr.bf16.mxu0 %v561
    %1456 = vmatpush1.bf16.msra.mxu0 %v560
    %1457 = vmatprep.subr.bf16.mxu0 0
    %1458 = vmatpush2.bf16.msra.mxu0 0
    %1459 = vmatprep.subr.bf16.mxu0 0
    %1460 = vmatpush2.bf16.msra.mxu0 0
    %1461 = vmatprep.subr.bf16.mxu0 0
    %1462 = vmatpush2.bf16.msra.mxu0 0
    %1463 = vmatprep.subr.bf16.mxu0 0
    %1464 = vmatpush2.bf16.msra.mxu0 0
    %1465 = vmatprep.subr.bf16.mxu0 0
    %1466 = vmatpush2.bf16.msra.mxu0 0
    %1467 = vmatprep.subr.bf16.mxu0 0
    %1468 = vmatpush2.bf16.msra.mxu0 0
    %1469 = vmatprep.subr.bf16.mxu0 0
    %1470 = vmatpush2.bf16.msra.mxu0 0
    %1471 = vmatprep.subr.bf16.mxu0 0
    %1472 = vmatpush2.bf16.msra.mxu0 0
    %1473 = vmatprep.mubr.bf16.mxu0 0
    %1474 = vmatmul.mubr.bf16.gmra.mxu0 %v1281
    %v1475 = vpop.f32.mrf.mxu0
    %v1476 = vadd.f32 0.0, %v1475
    %v1477 = vpop.f32.mrf.mxu0
    %v1478 = vadd.f32 0.0, %v1477
    %v1479 = vpop.f32.mrf.mxu0
    %v1480 = vpop.f32.mrf.mxu0
    %1481 = vdwg.mxu0
    %v1482 = vadd.f32 %v1396, %v1435
    %v1483 = vadd.f32 %v1397, %v1437
    %v1484 = vadd.f32 %v1398, %v1476
    %v1485 = vadd.f32 %v1399, %v1478
    %v1486 = vxor.u32 %v1482, 2147483648
    %v1487 = vxor.u32 %v1483, 2147483648
    %v1488 = vxor.u32 %v1484, 2147483648
    %v1489 = vmul.f32 %v1486, 1.442695
    %v1490 = vpow.pop %v1489
    %v1491 = vmul.f32 %v1487, 1.442695
    %v1492 = vpow.pop %v1491
    %v1493 = vmul.f32 %v1488, 1.442695
    %v1494 = vpow.pop %v1493
    %v1495 = vadd.f32 %v1490, 1.0
    %v1496 = vadd.f32 %v1492, 1.0
    %v1497 = vadd.f32 %v1494, 1.0
    %v1498 = vrcp.pop %v1495
    %v1499 = vmul.f32 1.0, %v1498
    %v1500 = vrcp.pop %v1496
    %v1501 = vmul.f32 1.0, %v1500
    %v1502 = vrcp.pop %v1497
    %v1503 = vmul.f32 1.0, %v1502
    %v1504 = vtanh.pop %v1485
    %v1505 = vmul.f32 %v1501, %v1278
    %v1506 = vmul.f32 %v1499, %v1504
    %v1507 = vadd.f32 %v1505, %v1506
    %v1508 = vtanh.pop %v1507
    %v1509 = vmul.f32 %v1503, %v1508
    %v1510 = vpack.c.bf16 %v1509, %v1509
    %1511 = vmatprep.subr.bf16.mxu0 %v954
    %1512 = vmatpush1.bf16.msra.mxu0 %v953
    %1513 = vmatprep.subr.bf16.mxu0 %v950
    %1514 = vmatpush1.bf16.msra.mxu0 %v949
    %1515 = vmatprep.subr.bf16.mxu0 %v946
    %1516 = vmatpush1.bf16.msra.mxu0 %v945
    %1517 = vmatprep.subr.bf16.mxu0 %v942
    %1518 = vmatpush1.bf16.msra.mxu0 %v941
    %1519 = vmatprep.subr.bf16.mxu0 %v938
    %1520 = vmatpush1.bf16.msra.mxu0 %v937
    %1521 = vmatprep.subr.bf16.mxu0 %v934
    %1522 = vmatpush1.bf16.msra.mxu0 %v933
    %1523 = vmatprep.subr.bf16.mxu0 %v930
    %1524 = vmatpush1.bf16.msra.mxu0 %v929
    %1525 = vmatprep.subr.bf16.mxu0 %v926
    %1526 = vmatpush1.bf16.msra.mxu0 %v925
    %1527 = vmatprep.subr.bf16.mxu0 %v986
    %1528 = vmatpush2.bf16.msra.mxu0 %v985
    %1529 = vmatprep.subr.bf16.mxu0 %v982
    %1530 = vmatpush2.bf16.msra.mxu0 %v981
    %1531 = vmatprep.subr.bf16.mxu0 %v978
    %1532 = vmatpush2.bf16.msra.mxu0 %v977
    %1533 = vmatprep.subr.bf16.mxu0 %v974
    %1534 = vmatpush2.bf16.msra.mxu0 %v973
    %1535 = vmatprep.subr.bf16.mxu0 %v970
    %1536 = vmatpush2.bf16.msra.mxu0 %v969
    %1537 = vmatprep.subr.bf16.mxu0 %v966
    %1538 = vmatpush2.bf16.msra.mxu0 %v965
    %1539 = vmatprep.subr.bf16.mxu0 %v962
    %1540 = vmatpush2.bf16.msra.mxu0 %v961
    %1541 = vmatprep.subr.bf16.mxu0 %v958
    %1542 = vmatpush2.bf16.msra.mxu0 %v957
    %1543 = vmatprep.mubr.bf16.mxu0 %v1392
    %1544 = vmatmul.mubr.bf16.gmra.mxu0 %v1510
    %v1545 = vpop.f32.mrf.mxu0
    %v1546 = vadd.f32 0.0, %v1545
    %v1547 = vpop.f32.mrf.mxu0
    %v1548 = vadd.f32 0.0, %v1547
    %v1549 = vpop.f32.mrf.mxu0
    %v1550 = vpop.f32.mrf.mxu0
    %1551 = vdwg.mxu0
    %1552 = vmatprep.subr.bf16.mxu0 %v956
    %1553 = vmatpush1.bf16.msra.mxu0 %v955
    %1554 = vmatprep.subr.bf16.mxu0 %v952
    %1555 = vmatpush1.bf16.msra.mxu0 %v951
    %1556 = vmatprep.subr.bf16.mxu0 %v948
    %1557 = vmatpush1.bf16.msra.mxu0 %v947
    %1558 = vmatprep.subr.bf16.mxu0 %v944
    %1559 = vmatpush1.bf16.msra.mxu0 %v943
    %1560 = vmatprep.subr.bf16.mxu0 %v940
    %1561 = vmatpush1.bf16.msra.mxu0 %v939
    %1562 = vmatprep.subr.bf16.mxu0 %v936
    %1563 = vmatpush1.bf16.msra.mxu0 %v935
    %1564 = vmatprep.subr.bf16.mxu0 %v932
    %1565 = vmatpush1.bf16.msra.mxu0 %v931
    %1566 = vmatprep.subr.bf16.mxu0 %v928
    %1567 = vmatpush1.bf16.msra.mxu0 %v927
    %1568 = vmatprep.subr.bf16.mxu0 %v988
    %1569 = vmatpush2.bf16.msra.mxu0 %v987
    %1570 = vmatprep.subr.bf16.mxu0 %v984
    %1571 = vmatpush2.bf16.msra.mxu0 %v983
    %1572 = vmatprep.subr.bf16.mxu0 %v980
    %1573 = vmatpush2.bf16.msra.mxu0 %v979
    %1574 = vmatprep.subr.bf16.mxu0 %v976
    %1575 = vmatpush2.bf16.msra.mxu0 %v975
    %1576 = vmatprep.subr.bf16.mxu0 %v972
    %1577 = vmatpush2.bf16.msra.mxu0 %v971
    %1578 = vmatprep.subr.bf16.mxu0 %v968
    %1579 = vmatpush2.bf16.msra.mxu0 %v967
    %1580 = vmatprep.subr.bf16.mxu0 %v964
    %1581 = vmatpush2.bf16.msra.mxu0 %v963
    %1582 = vmatprep.subr.bf16.mxu0 %v960
    %1583 = vmatpush2.bf16.msra.mxu0 %v959
    %1584 = vmatprep.mubr.bf16.mxu0 %v1392
    %1585 = vmatmul.mubr.bf16.gmra.mxu0 %v1510
    %v1586 = vpop.f32.mrf.mxu0
    %v1587 = vadd.f32 0.0, %v1586
    %v1588 = vpop.f32.mrf.mxu0
    %v1589 = vadd.f32 0.0, %v1588
    %v1590 = vpop.f32.mrf.mxu0
    %v1591 = vpop.f32.mrf.mxu0
    %1592 = vdwg.mxu0
    %v1593 = vadd.f32 %v434, %v1546
    %v1594 = vadd.f32 %v438, %v1548
    %v1595 = vadd.f32 %v442, %v1587
    %v1596 = vadd.f32 %v446, %v1589
    %v1597 = vxor.u32 %v1593, 2147483648
    %v1598 = vxor.u32 %v1594, 2147483648
    %v1599 = vxor.u32 %v1595, 2147483648
    %v1600 = vmul.f32 %v1597, 1.442695
    %v1601 = vpow.pop %v1600
    %v1602 = vmul.f32 %v1598, 1.442695
    %v1603 = vpow.pop %v1602
    %v1604 = vmul.f32 %v1599, 1.442695
    %v1605 = vpow.pop %v1604
    %v1606 = vadd.f32 %v1601, 1.0
    %v1607 = vadd.f32 %v1603, 1.0
    %v1608 = vadd.f32 %v1605, 1.0
    %v1609 = vrcp.pop %v1606
    %v1610 = vmul.f32 1.0, %v1609
    %v1611 = vrcp.pop %v1607
    %v1612 = vmul.f32 1.0, %v1611
    %v1613 = vrcp.pop %v1608
    %v1614 = vmul.f32 1.0, %v1613
    %v1615 = vtanh.pop %v1596
    %v1616 = vmul.f32 %v1612, %v1389
    %v1617 = vmul.f32 %v1610, %v1615
    %v1618 = vadd.f32 %v1616, %v1617
    %v1619 = vtanh.pop %v1618
    %v1620 = vmul.f32 %v1614, %v1619
    %v1621 = vpack.c.bf16 %v1620, %v1620
    %s1622 = smul.u32 3, 4
    %s1623 = smul.addr %s1622, 8
    %s1624 = scalar_lea.vmem [#allocation2], %s1623
    %v1625 = vld [vmem:[%s1624] sm:$0xff]
    %v1626 = vld [vmem:[%s1624 + $0x8] sm:$0xff]
    %v1627 = vld [vmem:[%s1624 + $0x10] sm:$0xff]
    %v1628 = vld [vmem:[%s1624 + $0x18] sm:$0xff]
    %1629 = vmatprep.subr.bf16.mxu0 %v587
    %1630 = vmatpush1.bf16.msra.mxu0 %v586
    %1631 = vmatprep.subr.bf16.mxu0 %v583
    %1632 = vmatpush1.bf16.msra.mxu0 %v582
    %1633 = vmatprep.subr.bf16.mxu0 %v579
    %1634 = vmatpush1.bf16.msra.mxu0 %v578
    %1635 = vmatprep.subr.bf16.mxu0 %v575
    %1636 = vmatpush1.bf16.msra.mxu0 %v574
    %1637 = vmatprep.subr.bf16.mxu0 %v571
    %1638 = vmatpush1.bf16.msra.mxu0 %v570
    %1639 = vmatprep.subr.bf16.mxu0 %v567
    %1640 = vmatpush1.bf16.msra.mxu0 %v566
    %1641 = vmatprep.subr.bf16.mxu0 %v563
    %1642 = vmatpush1.bf16.msra.mxu0 %v562
    %1643 = vmatprep.subr.bf16.mxu0 %v559
    %1644 = vmatpush1.bf16.msra.mxu0 %v558
    %1645 = vmatprep.subr.bf16.mxu0 0
    %1646 = vmatpush2.bf16.msra.mxu0 0
    %1647 = vmatprep.subr.bf16.mxu0 0
    %1648 = vmatpush2.bf16.msra.mxu0 0
    %1649 = vmatprep.subr.bf16.mxu0 0
    %1650 = vmatpush2.bf16.msra.mxu0 0
    %1651 = vmatprep.subr.bf16.mxu0 0
    %1652 = vmatpush2.bf16.msra.mxu0 0
    %1653 = vmatprep.subr.bf16.mxu0 0
    %1654 = vmatpush2.bf16.msra.mxu0 0
    %1655 = vmatprep.subr.bf16.mxu0 0
    %1656 = vmatpush2.bf16.msra.mxu0 0
    %1657 = vmatprep.subr.bf16.mxu0 0
    %1658 = vmatpush2.bf16.msra.mxu0 0
    %1659 = vmatprep.subr.bf16.mxu0 0
    %1660 = vmatpush2.bf16.msra.mxu0 0
    %1661 = vmatprep.mubr.bf16.mxu0 0
    %1662 = vmatmul.mubr.bf16.gmra.mxu0 %v1510
    %v1663 = vpop.f32.mrf.mxu0
    %v1664 = vadd.f32 0.0, %v1663
    %v1665 = vpop.f32.mrf.mxu0
    %v1666 = vadd.f32 0.0, %v1665
    %v1667 = vpop.f32.mrf.mxu0
    %v1668 = vpop.f32.mrf.mxu0
    %1669 = vdwg.mxu0
    %1670 = vmatprep.subr.bf16.mxu0 %v589
    %1671 = vmatpush1.bf16.msra.mxu0 %v588
    %1672 = vmatprep.subr.bf16.mxu0 %v585
    %1673 = vmatpush1.bf16.msra.mxu0 %v584
    %1674 = vmatprep.subr.bf16.mxu0 %v581
    %1675 = vmatpush1.bf16.msra.mxu0 %v580
    %1676 = vmatprep.subr.bf16.mxu0 %v577
    %1677 = vmatpush1.bf16.msra.mxu0 %v576
    %1678 = vmatprep.subr.bf16.mxu0 %v573
    %1679 = vmatpush1.bf16.msra.mxu0 %v572
    %1680 = vmatprep.subr.bf16.mxu0 %v569
    %1681 = vmatpush1.bf16.msra.mxu0 %v568
    %1682 = vmatprep.subr.bf16.mxu0 %v565
    %1683 = vmatpush1.bf16.msra.mxu0 %v564
    %1684 = vmatprep.subr.bf16.mxu0 %v561
    %1685 = vmatpush1.bf16.msra.mxu0 %v560
    %1686 = vmatprep.subr.bf16.mxu0 0
    %1687 = vmatpush2.bf16.msra.mxu0 0
    %1688 = vmatprep.subr.bf16.mxu0 0
    %1689 = vmatpush2.bf16.msra.mxu0 0
    %1690 = vmatprep.subr.bf16.mxu0 0
    %1691 = vmatpush2.bf16.msra.mxu0 0
    %1692 = vmatprep.subr.bf16.mxu0 0
    %1693 = vmatpush2.bf16.msra.mxu0 0
    %1694 = vmatprep.subr.bf16.mxu0 0
    %1695 = vmatpush2.bf16.msra.mxu0 0
    %1696 = vmatprep.subr.bf16.mxu0 0
    %1697 = vmatpush2.bf16.msra.mxu0 0
    %1698 = vmatprep.subr.bf16.mxu0 0
    %1699 = vmatpush2.bf16.msra.mxu0 0
    %1700 = vmatprep.subr.bf16.mxu0 0
    %1701 = vmatpush2.bf16.msra.mxu0 0
    %1702 = vmatprep.mubr.bf16.mxu0 0
    %1703 = vmatmul.mubr.bf16.gmra.mxu0 %v1510
    %v1704 = vpop.f32.mrf.mxu0
    %v1705 = vadd.f32 0.0, %v1704
    %v1706 = vpop.f32.mrf.mxu0
    %v1707 = vadd.f32 0.0, %v1706
    %v1708 = vpop.f32.mrf.mxu0
    %v1709 = vpop.f32.mrf.mxu0
    %1710 = vdwg.mxu0
    %v1711 = vadd.f32 %v1625, %v1664
    %v1712 = vadd.f32 %v1626, %v1666
    %v1713 = vadd.f32 %v1627, %v1705
    %v1714 = vadd.f32 %v1628, %v1707
    %v1715 = vxor.u32 %v1711, 2147483648
    %v1716 = vxor.u32 %v1712, 2147483648
    %v1717 = vxor.u32 %v1713, 2147483648
    %v1718 = vmul.f32 %v1715, 1.442695
    %v1719 = vpow.pop %v1718
    %v1720 = vmul.f32 %v1716, 1.442695
    %v1721 = vpow.pop %v1720
    %v1722 = vmul.f32 %v1717, 1.442695
    %v1723 = vpow.pop %v1722
    %v1724 = vadd.f32 %v1719, 1.0
    %v1725 = vadd.f32 %v1721, 1.0
    %v1726 = vadd.f32 %v1723, 1.0
    %v1727 = vrcp.pop %v1724
    %v1728 = vmul.f32 1.0, %v1727
    %v1729 = vrcp.pop %v1725
    %v1730 = vmul.f32 1.0, %v1729
    %v1731 = vrcp.pop %v1726
    %v1732 = vmul.f32 1.0, %v1731
    %v1733 = vtanh.pop %v1714
    %v1734 = vmul.f32 %v1730, %v1507
    %v1735 = vmul.f32 %v1728, %v1733
    %v1736 = vadd.f32 %v1734, %v1735
    %v1737 = vtanh.pop %v1736
    %v1738 = vmul.f32 %v1732, %v1737
    %v1739 = vpack.c.bf16 %v1738, %v1738
    %1740 = vmatprep.subr.bf16.mxu0 %v954
    %1741 = vmatpush1.bf16.msra.mxu0 %v953
    %1742 = vmatprep.subr.bf16.mxu0 %v950
    %1743 = vmatpush1.bf16.msra.mxu0 %v949
    %1744 = vmatprep.subr.bf16.mxu0 %v946
    %1745 = vmatpush1.bf16.msra.mxu0 %v945
    %1746 = vmatprep.subr.bf16.mxu0 %v942
    %1747 = vmatpush1.bf16.msra.mxu0 %v941
    %1748 = vmatprep.subr.bf16.mxu0 %v938
    %1749 = vmatpush1.bf16.msra.mxu0 %v937
    %1750 = vmatprep.subr.bf16.mxu0 %v934
    %1751 = vmatpush1.bf16.msra.mxu0 %v933
    %1752 = vmatprep.subr.bf16.mxu0 %v930
    %1753 = vmatpush1.bf16.msra.mxu0 %v929
    %1754 = vmatprep.subr.bf16.mxu0 %v926
    %1755 = vmatpush1.bf16.msra.mxu0 %v925
    %1756 = vmatprep.subr.bf16.mxu0 %v986
    %1757 = vmatpush2.bf16.msra.mxu0 %v985
    %1758 = vmatprep.subr.bf16.mxu0 %v982
    %1759 = vmatpush2.bf16.msra.mxu0 %v981
    %1760 = vmatprep.subr.bf16.mxu0 %v978
    %1761 = vmatpush2.bf16.msra.mxu0 %v977
    %1762 = vmatprep.subr.bf16.mxu0 %v974
    %1763 = vmatpush2.bf16.msra.mxu0 %v973
    %1764 = vmatprep.subr.bf16.mxu0 %v970
    %1765 = vmatpush2.bf16.msra.mxu0 %v969
    %1766 = vmatprep.subr.bf16.mxu0 %v966
    %1767 = vmatpush2.bf16.msra.mxu0 %v965
    %1768 = vmatprep.subr.bf16.mxu0 %v962
    %1769 = vmatpush2.bf16.msra.mxu0 %v961
    %1770 = vmatprep.subr.bf16.mxu0 %v958
    %1771 = vmatpush2.bf16.msra.mxu0 %v957
    %1772 = vmatprep.mubr.bf16.mxu0 %v1621
    %1773 = vmatmul.mubr.bf16.gmra.mxu0 %v1739
    %v1774 = vpop.f32.mrf.mxu0
    %v1775 = vadd.f32 0.0, %v1774
    %v1776 = vpop.f32.mrf.mxu0
    %v1777 = vadd.f32 0.0, %v1776
    %v1778 = vpop.f32.mrf.mxu0
    %v1779 = vpop.f32.mrf.mxu0
    %1780 = vdwg.mxu0
    %1781 = vmatprep.subr.bf16.mxu0 %v956
    %1782 = vmatpush1.bf16.msra.mxu0 %v955
    %1783 = vmatprep.subr.bf16.mxu0 %v952
    %1784 = vmatpush1.bf16.msra.mxu0 %v951
    %1785 = vmatprep.subr.bf16.mxu0 %v948
    %1786 = vmatpush1.bf16.msra.mxu0 %v947
    %1787 = vmatprep.subr.bf16.mxu0 %v944
    %1788 = vmatpush1.bf16.msra.mxu0 %v943
    %1789 = vmatprep.subr.bf16.mxu0 %v940
    %1790 = vmatpush1.bf16.msra.mxu0 %v939
    %1791 = vmatprep.subr.bf16.mxu0 %v936
    %1792 = vmatpush1.bf16.msra.mxu0 %v935
    %1793 = vmatprep.subr.bf16.mxu0 %v932
    %1794 = vmatpush1.bf16.msra.mxu0 %v931
    %1795 = vmatprep.subr.bf16.mxu0 %v928
    %1796 = vmatpush1.bf16.msra.mxu0 %v927
    %1797 = vmatprep.subr.bf16.mxu0 %v988
    %1798 = vmatpush2.bf16.msra.mxu0 %v987
    %1799 = vmatprep.subr.bf16.mxu0 %v984
    %1800 = vmatpush2.bf16.msra.mxu0 %v983
    %1801 = vmatprep.subr.bf16.mxu0 %v980
    %1802 = vmatpush2.bf16.msra.mxu0 %v979
    %1803 = vmatprep.subr.bf16.mxu0 %v976
    %1804 = vmatpush2.bf16.msra.mxu0 %v975
    %1805 = vmatprep.subr.bf16.mxu0 %v972
    %1806 = vmatpush2.bf16.msra.mxu0 %v971
    %1807 = vmatprep.subr.bf16.mxu0 %v968
    %1808 = vmatpush2.bf16.msra.mxu0 %v967
    %1809 = vmatprep.subr.bf16.mxu0 %v964
    %1810 = vmatpush2.bf16.msra.mxu0 %v963
    %1811 = vmatprep.subr.bf16.mxu0 %v960
    %1812 = vmatpush2.bf16.msra.mxu0 %v959
    %1813 = vmatprep.mubr.bf16.mxu0 %v1621
    %1814 = vmatmul.mubr.bf16.gmra.mxu0 %v1739
    %v1815 = vpop.f32.mrf.mxu0
    %v1816 = vadd.f32 0.0, %v1815
    %v1817 = vpop.f32.mrf.mxu0
    %v1818 = vadd.f32 0.0, %v1817
    %v1819 = vpop.f32.mrf.mxu0
    %v1820 = vpop.f32.mrf.mxu0
    %1821 = vdwg.mxu0
    %v1822 = vadd.f32 %v434, %v1775
    %v1823 = vadd.f32 %v438, %v1777
    %v1824 = vadd.f32 %v442, %v1816
    %v1825 = vadd.f32 %v446, %v1818
    %v1826 = vxor.u32 %v1822, 2147483648
    %v1827 = vxor.u32 %v1823, 2147483648
    %v1828 = vxor.u32 %v1824, 2147483648
    %v1829 = vmul.f32 %v1826, 1.442695
    %v1830 = vpow.pop %v1829
    %v1831 = vmul.f32 %v1827, 1.442695
    %v1832 = vpow.pop %v1831
    %v1833 = vmul.f32 %v1828, 1.442695
    %v1834 = vpow.pop %v1833
    %v1835 = vadd.f32 %v1830, 1.0
    %v1836 = vadd.f32 %v1832, 1.0
    %v1837 = vadd.f32 %v1834, 1.0
    %v1838 = vrcp.pop %v1835
    %v1839 = vmul.f32 1.0, %v1838
    %v1840 = vrcp.pop %v1836
    %v1841 = vmul.f32 1.0, %v1840
    %v1842 = vrcp.pop %v1837
    %v1843 = vmul.f32 1.0, %v1842
    %v1844 = vtanh.pop %v1825
    %v1845 = vmul.f32 %v1841, %v1618
    %v1846 = vmul.f32 %v1839, %v1844
    %v1847 = vadd.f32 %v1845, %v1846
    %v1848 = vtanh.pop %v1847
    %v1849 = vmul.f32 %v1843, %v1848
    %v1850 = vpack.c.bf16 %v1849, %v1849
    %s1851 = smul.u32 4, 4
    %s1852 = smul.addr %s1851, 8
    %s1853 = scalar_lea.vmem [#allocation2], %s1852
    %v1854 = vld [vmem:[%s1853] sm:$0xff]
    %v1855 = vld [vmem:[%s1853 + $0x8] sm:$0xff]
    %v1856 = vld [vmem:[%s1853 + $0x10] sm:$0xff]
    %v1857 = vld [vmem:[%s1853 + $0x18] sm:$0xff]
    %1858 = vmatprep.subr.bf16.mxu0 %v587
    %1859 = vmatpush1.bf16.msra.mxu0 %v586
    %1860 = vmatprep.subr.bf16.mxu0 %v583
    %1861 = vmatpush1.bf16.msra.mxu0 %v582
    %1862 = vmatprep.subr.bf16.mxu0 %v579
    %1863 = vmatpush1.bf16.msra.mxu0 %v578
    %1864 = vmatprep.subr.bf16.mxu0 %v575
    %1865 = vmatpush1.bf16.msra.mxu0 %v574
    %1866 = vmatprep.subr.bf16.mxu0 %v571
    %1867 = vmatpush1.bf16.msra.mxu0 %v570
    %1868 = vmatprep.subr.bf16.mxu0 %v567
    %1869 = vmatpush1.bf16.msra.mxu0 %v566
    %1870 = vmatprep.subr.bf16.mxu0 %v563
    %1871 = vmatpush1.bf16.msra.mxu0 %v562
    %1872 = vmatprep.subr.bf16.mxu0 %v559
    %1873 = vmatpush1.bf16.msra.mxu0 %v558
    %1874 = vmatprep.subr.bf16.mxu0 0
    %1875 = vmatpush2.bf16.msra.mxu0 0
    %1876 = vmatprep.subr.bf16.mxu0 0
    %1877 = vmatpush2.bf16.msra.mxu0 0
    %1878 = vmatprep.subr.bf16.mxu0 0
    %1879 = vmatpush2.bf16.msra.mxu0 0
    %1880 = vmatprep.subr.bf16.mxu0 0
    %1881 = vmatpush2.bf16.msra.mxu0 0
    %1882 = vmatprep.subr.bf16.mxu0 0
    %1883 = vmatpush2.bf16.msra.mxu0 0
    %1884 = vmatprep.subr.bf16.mxu0 0
    %1885 = vmatpush2.bf16.msra.mxu0 0
    %1886 = vmatprep.subr.bf16.mxu0 0
    %1887 = vmatpush2.bf16.msra.mxu0 0
    %1888 = vmatprep.subr.bf16.mxu0 0
    %1889 = vmatpush2.bf16.msra.mxu0 0
    %1890 = vmatprep.mubr.bf16.mxu0 0
    %1891 = vmatmul.mubr.bf16.gmra.mxu0 %v1739
    %v1892 = vpop.f32.mrf.mxu0
    %v1893 = vadd.f32 0.0, %v1892
    %v1894 = vpop.f32.mrf.mxu0
    %v1895 = vadd.f32 0.0, %v1894
    %v1896 = vpop.f32.mrf.mxu0
    %v1897 = vpop.f32.mrf.mxu0
    %1898 = vdwg.mxu0
    %1899 = vmatprep.subr.bf16.mxu0 %v589
    %1900 = vmatpush1.bf16.msra.mxu0 %v588
    %1901 = vmatprep.subr.bf16.mxu0 %v585
    %1902 = vmatpush1.bf16.msra.mxu0 %v584
    %1903 = vmatprep.subr.bf16.mxu0 %v581
    %1904 = vmatpush1.bf16.msra.mxu0 %v580
    %1905 = vmatprep.subr.bf16.mxu0 %v577
    %1906 = vmatpush1.bf16.msra.mxu0 %v576
    %1907 = vmatprep.subr.bf16.mxu0 %v573
    %1908 = vmatpush1.bf16.msra.mxu0 %v572
    %1909 = vmatprep.subr.bf16.mxu0 %v569
    %1910 = vmatpush1.bf16.msra.mxu0 %v568
    %1911 = vmatprep.subr.bf16.mxu0 %v565
    %1912 = vmatpush1.bf16.msra.mxu0 %v564
    %1913 = vmatprep.subr.bf16.mxu0 %v561
    %1914 = vmatpush1.bf16.msra.mxu0 %v560
    %1915 = vmatprep.subr.bf16.mxu0 0
    %1916 = vmatpush2.bf16.msra.mxu0 0
    %1917 = vmatprep.subr.bf16.mxu0 0
    %1918 = vmatpush2.bf16.msra.mxu0 0
    %1919 = vmatprep.subr.bf16.mxu0 0
    %1920 = vmatpush2.bf16.msra.mxu0 0
    %1921 = vmatprep.subr.bf16.mxu0 0
    %1922 = vmatpush2.bf16.msra.mxu0 0
    %1923 = vmatprep.subr.bf16.mxu0 0
    %1924 = vmatpush2.bf16.msra.mxu0 0
    %1925 = vmatprep.subr.bf16.mxu0 0
    %1926 = vmatpush2.bf16.msra.mxu0 0
    %1927 = vmatprep.subr.bf16.mxu0 0
    %1928 = vmatpush2.bf16.msra.mxu0 0
    %1929 = vmatprep.subr.bf16.mxu0 0
    %1930 = vmatpush2.bf16.msra.mxu0 0
    %1931 = vmatprep.mubr.bf16.mxu0 0
    %1932 = vmatmul.mubr.bf16.gmra.mxu0 %v1739
    %v1933 = vpop.f32.mrf.mxu0
    %v1934 = vadd.f32 0.0, %v1933
    %v1935 = vpop.f32.mrf.mxu0
    %v1936 = vadd.f32 0.0, %v1935
    %v1937 = vpop.f32.mrf.mxu0
    %v1938 = vpop.f32.mrf.mxu0
    %1939 = vdwg.mxu0
    %v1940 = vadd.f32 %v1854, %v1893
    %v1941 = vadd.f32 %v1855, %v1895
    %v1942 = vadd.f32 %v1856, %v1934
    %v1943 = vadd.f32 %v1857, %v1936
    %v1944 = vxor.u32 %v1940, 2147483648
    %v1945 = vxor.u32 %v1941, 2147483648
    %v1946 = vxor.u32 %v1942, 2147483648
    %v1947 = vmul.f32 %v1944, 1.442695
    %v1948 = vpow.pop %v1947
    %v1949 = vmul.f32 %v1945, 1.442695
    %v1950 = vpow.pop %v1949
    %v1951 = vmul.f32 %v1946, 1.442695
    %v1952 = vpow.pop %v1951
    %v1953 = vadd.f32 %v1948, 1.0
    %v1954 = vadd.f32 %v1950, 1.0
    %v1955 = vadd.f32 %v1952, 1.0
    %v1956 = vrcp.pop %v1953
    %v1957 = vmul.f32 1.0, %v1956
    %v1958 = vrcp.pop %v1954
    %v1959 = vmul.f32 1.0, %v1958
    %v1960 = vrcp.pop %v1955
    %v1961 = vmul.f32 1.0, %v1960
    %v1962 = vtanh.pop %v1943
    %v1963 = vmul.f32 %v1959, %v1736
    %v1964 = vmul.f32 %v1957, %v1962
    %v1965 = vadd.f32 %v1963, %v1964
    %v1966 = vtanh.pop %v1965
    %v1967 = vmul.f32 %v1961, %v1966
    %v1968 = vpack.c.bf16 %v1967, %v1967
    %1969 = vmatprep.subr.bf16.mxu0 %v954
    %1970 = vmatpush1.bf16.msra.mxu0 %v953
    %1971 = vmatprep.subr.bf16.mxu0 %v950
    %1972 = vmatpush1.bf16.msra.mxu0 %v949
    %1973 = vmatprep.subr.bf16.mxu0 %v946
    %1974 = vmatpush1.bf16.msra.mxu0 %v945
    %1975 = vmatprep.subr.bf16.mxu0 %v942
    %1976 = vmatpush1.bf16.msra.mxu0 %v941
    %1977 = vmatprep.subr.bf16.mxu0 %v938
    %1978 = vmatpush1.bf16.msra.mxu0 %v937
    %1979 = vmatprep.subr.bf16.mxu0 %v934
    %1980 = vmatpush1.bf16.msra.mxu0 %v933
    %1981 = vmatprep.subr.bf16.mxu0 %v930
    %1982 = vmatpush1.bf16.msra.mxu0 %v929
    %1983 = vmatprep.subr.bf16.mxu0 %v926
    %1984 = vmatpush1.bf16.msra.mxu0 %v925
    %1985 = vmatprep.subr.bf16.mxu0 %v986
    %1986 = vmatpush2.bf16.msra.mxu0 %v985
    %1987 = vmatprep.subr.bf16.mxu0 %v982
    %1988 = vmatpush2.bf16.msra.mxu0 %v981
    %1989 = vmatprep.subr.bf16.mxu0 %v978
    %1990 = vmatpush2.bf16.msra.mxu0 %v977
    %1991 = vmatprep.subr.bf16.mxu0 %v974
    %1992 = vmatpush2.bf16.msra.mxu0 %v973
    %1993 = vmatprep.subr.bf16.mxu0 %v970
    %1994 = vmatpush2.bf16.msra.mxu0 %v969
    %1995 = vmatprep.subr.bf16.mxu0 %v966
    %1996 = vmatpush2.bf16.msra.mxu0 %v965
    %1997 = vmatprep.subr.bf16.mxu0 %v962
    %1998 = vmatpush2.bf16.msra.mxu0 %v961
    %1999 = vmatprep.subr.bf16.mxu0 %v958
    %2000 = vmatpush2.bf16.msra.mxu0 %v957
    %2001 = vmatprep.mubr.bf16.mxu0 %v1850
    %2002 = vmatmul.mubr.bf16.gmra.mxu0 %v1968
    %v2003 = vpop.f32.mrf.mxu0
    %v2004 = vadd.f32 0.0, %v2003
    %v2005 = vpop.f32.mrf.mxu0
    %v2006 = vadd.f32 0.0, %v2005
    %v2007 = vpop.f32.mrf.mxu0
    %v2008 = vpop.f32.mrf.mxu0
    %2009 = vdwg.mxu0
    %2010 = vmatprep.subr.bf16.mxu0 %v956
    %2011 = vmatpush1.bf16.msra.mxu0 %v955
    %2012 = vmatprep.subr.bf16.mxu0 %v952
    %2013 = vmatpush1.bf16.msra.mxu0 %v951
    %2014 = vmatprep.subr.bf16.mxu0 %v948
    %2015 = vmatpush1.bf16.msra.mxu0 %v947
    %2016 = vmatprep.subr.bf16.mxu0 %v944
    %2017 = vmatpush1.bf16.msra.mxu0 %v943
    %2018 = vmatprep.subr.bf16.mxu0 %v940
    %2019 = vmatpush1.bf16.msra.mxu0 %v939
    %2020 = vmatprep.subr.bf16.mxu0 %v936
    %2021 = vmatpush1.bf16.msra.mxu0 %v935
    %2022 = vmatprep.subr.bf16.mxu0 %v932
    %2023 = vmatpush1.bf16.msra.mxu0 %v931
    %2024 = vmatprep.subr.bf16.mxu0 %v928
    %2025 = vmatpush1.bf16.msra.mxu0 %v927
    %2026 = vmatprep.subr.bf16.mxu0 %v988
    %2027 = vmatpush2.bf16.msra.mxu0 %v987
    %2028 = vmatprep.subr.bf16.mxu0 %v984
    %2029 = vmatpush2.bf16.msra.mxu0 %v983
    %2030 = vmatprep.subr.bf16.mxu0 %v980
    %2031 = vmatpush2.bf16.msra.mxu0 %v979
    %2032 = vmatprep.subr.bf16.mxu0 %v976
    %2033 = vmatpush2.bf16.msra.mxu0 %v975
    %2034 = vmatprep.subr.bf16.mxu0 %v972
    %2035 = vmatpush2.bf16.msra.mxu0 %v971
    %2036 = vmatprep.subr.bf16.mxu0 %v968
    %2037 = vmatpush2.bf16.msra.mxu0 %v967
    %2038 = vmatprep.subr.bf16.mxu0 %v964
    %2039 = vmatpush2.bf16.msra.mxu0 %v963
    %2040 = vmatprep.subr.bf16.mxu0 %v960
    %2041 = vmatpush2.bf16.msra.mxu0 %v959
    %2042 = vmatprep.mubr.bf16.mxu0 %v1850
    %2043 = vmatmul.mubr.bf16.gmra.mxu0 %v1968
    %v2044 = vpop.f32.mrf.mxu0
    %v2045 = vadd.f32 0.0, %v2044
    %v2046 = vpop.f32.mrf.mxu0
    %v2047 = vadd.f32 0.0, %v2046
    %v2048 = vpop.f32.mrf.mxu0
    %v2049 = vpop.f32.mrf.mxu0
    %2050 = vdwg.mxu0
    %v2051 = vadd.f32 %v434, %v2004
    %v2052 = vadd.f32 %v438, %v2006
    %v2053 = vadd.f32 %v442, %v2045
    %v2054 = vadd.f32 %v446, %v2047
    %v2055 = vxor.u32 %v2051, 2147483648
    %v2056 = vxor.u32 %v2052, 2147483648
    %v2057 = vxor.u32 %v2053, 2147483648
    %v2058 = vmul.f32 %v2055, 1.442695
    %v2059 = vpow.pop %v2058
    %v2060 = vmul.f32 %v2056, 1.442695
    %v2061 = vpow.pop %v2060
    %v2062 = vmul.f32 %v2057, 1.442695
    %v2063 = vpow.pop %v2062
    %v2064 = vadd.f32 %v2059, 1.0
    %v2065 = vadd.f32 %v2061, 1.0
    %v2066 = vadd.f32 %v2063, 1.0
    %v2067 = vrcp.pop %v2064
    %v2068 = vmul.f32 1.0, %v2067
    %v2069 = vrcp.pop %v2065
    %v2070 = vmul.f32 1.0, %v2069
    %v2071 = vrcp.pop %v2066
    %v2072 = vmul.f32 1.0, %v2071
    %v2073 = vtanh.pop %v2054
    %v2074 = vmul.f32 %v2070, %v1847
    %v2075 = vmul.f32 %v2068, %v2073
    %v2076 = vadd.f32 %v2074, %v2075
    %v2077 = vtanh.pop %v2076
    %v2078 = vmul.f32 %v2072, %v2077
    %v2079 = vpack.c.bf16 %v2078, %v2078
    %s2080 = smul.u32 5, 4
    %s2081 = smul.addr %s2080, 8
    %s2082 = scalar_lea.vmem [#allocation2], %s2081
    %v2083 = vld [vmem:[%s2082] sm:$0xff]
    %v2084 = vld [vmem:[%s2082 + $0x8] sm:$0xff]
    %v2085 = vld [vmem:[%s2082 + $0x10] sm:$0xff]
    %v2086 = vld [vmem:[%s2082 + $0x18] sm:$0xff]
    %2087 = vmatprep.subr.bf16.mxu0 %v587
    %2088 = vmatpush1.bf16.msra.mxu0 %v586
    %2089 = vmatprep.subr.bf16.mxu0 %v583
    %2090 = vmatpush1.bf16.msra.mxu0 %v582
    %2091 = vmatprep.subr.bf16.mxu0 %v579
    %2092 = vmatpush1.bf16.msra.mxu0 %v578
    %2093 = vmatprep.subr.bf16.mxu0 %v575
    %2094 = vmatpush1.bf16.msra.mxu0 %v574
    %2095 = vmatprep.subr.bf16.mxu0 %v571
    %2096 = vmatpush1.bf16.msra.mxu0 %v570
    %2097 = vmatprep.subr.bf16.mxu0 %v567
    %2098 = vmatpush1.bf16.msra.mxu0 %v566
    %2099 = vmatprep.subr.bf16.mxu0 %v563
    %2100 = vmatpush1.bf16.msra.mxu0 %v562
    %2101 = vmatprep.subr.bf16.mxu0 %v559
    %2102 = vmatpush1.bf16.msra.mxu0 %v558
    %2103 = vmatprep.subr.bf16.mxu0 0
    %2104 = vmatpush2.bf16.msra.mxu0 0
    %2105 = vmatprep.subr.bf16.mxu0 0
    %2106 = vmatpush2.bf16.msra.mxu0 0
    %2107 = vmatprep.subr.bf16.mxu0 0
    %2108 = vmatpush2.bf16.msra.mxu0 0
    %2109 = vmatprep.subr.bf16.mxu0 0
    %2110 = vmatpush2.bf16.msra.mxu0 0
    %2111 = vmatprep.subr.bf16.mxu0 0
    %2112 = vmatpush2.bf16.msra.mxu0 0
    %2113 = vmatprep.subr.bf16.mxu0 0
    %2114 = vmatpush2.bf16.msra.mxu0 0
    %2115 = vmatprep.subr.bf16.mxu0 0
    %2116 = vmatpush2.bf16.msra.mxu0 0
    %2117 = vmatprep.subr.bf16.mxu0 0
    %2118 = vmatpush2.bf16.msra.mxu0 0
    %2119 = vmatprep.mubr.bf16.mxu0 0
    %2120 = vmatmul.mubr.bf16.gmra.mxu0 %v1968
    %v2121 = vpop.f32.mrf.mxu0
    %v2122 = vadd.f32 0.0, %v2121
    %v2123 = vpop.f32.mrf.mxu0
    %v2124 = vadd.f32 0.0, %v2123
    %v2125 = vpop.f32.mrf.mxu0
    %v2126 = vpop.f32.mrf.mxu0
    %2127 = vdwg.mxu0
    %2128 = vmatprep.subr.bf16.mxu0 %v589
    %2129 = vmatpush1.bf16.msra.mxu0 %v588
    %2130 = vmatprep.subr.bf16.mxu0 %v585
    %2131 = vmatpush1.bf16.msra.mxu0 %v584
    %2132 = vmatprep.subr.bf16.mxu0 %v581
    %2133 = vmatpush1.bf16.msra.mxu0 %v580
    %2134 = vmatprep.subr.bf16.mxu0 %v577
    %2135 = vmatpush1.bf16.msra.mxu0 %v576
    %2136 = vmatprep.subr.bf16.mxu0 %v573
    %2137 = vmatpush1.bf16.msra.mxu0 %v572
    %2138 = vmatprep.subr.bf16.mxu0 %v569
    %2139 = vmatpush1.bf16.msra.mxu0 %v568
    %2140 = vmatprep.subr.bf16.mxu0 %v565
    %2141 = vmatpush1.bf16.msra.mxu0 %v564
    %2142 = vmatprep.subr.bf16.mxu0 %v561
    %2143 = vmatpush1.bf16.msra.mxu0 %v560
    %2144 = vmatprep.subr.bf16.mxu0 0
    %2145 = vmatpush2.bf16.msra.mxu0 0
    %2146 = vmatprep.subr.bf16.mxu0 0
    %2147 = vmatpush2.bf16.msra.mxu0 0
    %2148 = vmatprep.subr.bf16.mxu0 0
    %2149 = vmatpush2.bf16.msra.mxu0 0
    %2150 = vmatprep.subr.bf16.mxu0 0
    %2151 = vmatpush2.bf16.msra.mxu0 0
    %2152 = vmatprep.subr.bf16.mxu0 0
    %2153 = vmatpush2.bf16.msra.mxu0 0
    %2154 = vmatprep.subr.bf16.mxu0 0
    %2155 = vmatpush2.bf16.msra.mxu0 0
    %2156 = vmatprep.subr.bf16.mxu0 0
    %2157 = vmatpush2.bf16.msra.mxu0 0
    %2158 = vmatprep.subr.bf16.mxu0 0
    %2159 = vmatpush2.bf16.msra.mxu0 0
    %2160 = vmatprep.mubr.bf16.mxu0 0
    %2161 = vmatmul.mubr.bf16.gmra.mxu0 %v1968
    %v2162 = vpop.f32.mrf.mxu0
    %v2163 = vadd.f32 0.0, %v2162
    %v2164 = vpop.f32.mrf.mxu0
    %v2165 = vadd.f32 0.0, %v2164
    %v2166 = vpop.f32.mrf.mxu0
    %v2167 = vpop.f32.mrf.mxu0
    %2168 = vdwg.mxu0
    %v2169 = vadd.f32 %v2083, %v2122
    %v2170 = vadd.f32 %v2084, %v2124
    %v2171 = vadd.f32 %v2085, %v2163
    %v2172 = vadd.f32 %v2086, %v2165
    %v2173 = vxor.u32 %v2169, 2147483648
    %v2174 = vxor.u32 %v2170, 2147483648
    %v2175 = vxor.u32 %v2171, 2147483648
    %v2176 = vmul.f32 %v2173, 1.442695
    %v2177 = vpow.pop %v2176
    %v2178 = vmul.f32 %v2174, 1.442695
    %v2179 = vpow.pop %v2178
    %v2180 = vmul.f32 %v2175, 1.442695
    %v2181 = vpow.pop %v2180
    %v2182 = vadd.f32 %v2177, 1.0
    %v2183 = vadd.f32 %v2179, 1.0
    %v2184 = vadd.f32 %v2181, 1.0
    %v2185 = vrcp.pop %v2182
    %v2186 = vmul.f32 1.0, %v2185
    %v2187 = vrcp.pop %v2183
    %v2188 = vmul.f32 1.0, %v2187
    %v2189 = vrcp.pop %v2184
    %v2190 = vmul.f32 1.0, %v2189
    %v2191 = vtanh.pop %v2172
    %v2192 = vmul.f32 %v2188, %v1965
    %v2193 = vmul.f32 %v2186, %v2191
    %v2194 = vadd.f32 %v2192, %v2193
    %v2195 = vtanh.pop %v2194
    %v2196 = vmul.f32 %v2190, %v2195
    %v2197 = vpack.c.bf16 %v2196, %v2196
    %2198 = vmatprep.subr.bf16.mxu0 %v954
    %2199 = vmatpush1.bf16.msra.mxu0 %v953
    %2200 = vmatprep.subr.bf16.mxu0 %v950
    %2201 = vmatpush1.bf16.msra.mxu0 %v949
    %2202 = vmatprep.subr.bf16.mxu0 %v946
    %2203 = vmatpush1.bf16.msra.mxu0 %v945
    %2204 = vmatprep.subr.bf16.mxu0 %v942
    %2205 = vmatpush1.bf16.msra.mxu0 %v941
    %2206 = vmatprep.subr.bf16.mxu0 %v938
    %2207 = vmatpush1.bf16.msra.mxu0 %v937
    %2208 = vmatprep.subr.bf16.mxu0 %v934
    %2209 = vmatpush1.bf16.msra.mxu0 %v933
    %2210 = vmatprep.subr.bf16.mxu0 %v930
    %2211 = vmatpush1.bf16.msra.mxu0 %v929
    %2212 = vmatprep.subr.bf16.mxu0 %v926
    %2213 = vmatpush1.bf16.msra.mxu0 %v925
    %2214 = vmatprep.subr.bf16.mxu0 %v986
    %2215 = vmatpush2.bf16.msra.mxu0 %v985
    %2216 = vmatprep.subr.bf16.mxu0 %v982
    %2217 = vmatpush2.bf16.msra.mxu0 %v981
    %2218 = vmatprep.subr.bf16.mxu0 %v978
    %2219 = vmatpush2.bf16.msra.mxu0 %v977
    %2220 = vmatprep.subr.bf16.mxu0 %v974
    %2221 = vmatpush2.bf16.msra.mxu0 %v973
    %2222 = vmatprep.subr.bf16.mxu0 %v970
    %2223 = vmatpush2.bf16.msra.mxu0 %v969
    %2224 = vmatprep.subr.bf16.mxu0 %v966
    %2225 = vmatpush2.bf16.msra.mxu0 %v965
    %2226 = vmatprep.subr.bf16.mxu0 %v962
    %2227 = vmatpush2.bf16.msra.mxu0 %v961
    %2228 = vmatprep.subr.bf16.mxu0 %v958
    %2229 = vmatpush2.bf16.msra.mxu0 %v957
    %2230 = vmatprep.mubr.bf16.mxu0 %v2079
    %2231 = vmatmul.mubr.bf16.gmra.mxu0 %v2197
    %v2232 = vpop.f32.mrf.mxu0
    %v2233 = vadd.f32 0.0, %v2232
    %v2234 = vpop.f32.mrf.mxu0
    %v2235 = vadd.f32 0.0, %v2234
    %v2236 = vpop.f32.mrf.mxu0
    %v2237 = vpop.f32.mrf.mxu0
    %2238 = vdwg.mxu0
    %2239 = vmatprep.subr.bf16.mxu0 %v956
    %2240 = vmatpush1.bf16.msra.mxu0 %v955
    %2241 = vmatprep.subr.bf16.mxu0 %v952
    %2242 = vmatpush1.bf16.msra.mxu0 %v951
    %2243 = vmatprep.subr.bf16.mxu0 %v948
    %2244 = vmatpush1.bf16.msra.mxu0 %v947
    %2245 = vmatprep.subr.bf16.mxu0 %v944
    %2246 = vmatpush1.bf16.msra.mxu0 %v943
    %2247 = vmatprep.subr.bf16.mxu0 %v940
    %2248 = vmatpush1.bf16.msra.mxu0 %v939
    %2249 = vmatprep.subr.bf16.mxu0 %v936
    %2250 = vmatpush1.bf16.msra.mxu0 %v935
    %2251 = vmatprep.subr.bf16.mxu0 %v932
    %2252 = vmatpush1.bf16.msra.mxu0 %v931
    %2253 = vmatprep.subr.bf16.mxu0 %v928
    %2254 = vmatpush1.bf16.msra.mxu0 %v927
    %2255 = vmatprep.subr.bf16.mxu0 %v988
    %2256 = vmatpush2.bf16.msra.mxu0 %v987
    %2257 = vmatprep.subr.bf16.mxu0 %v984
    %2258 = vmatpush2.bf16.msra.mxu0 %v983
    %2259 = vmatprep.subr.bf16.mxu0 %v980
    %2260 = vmatpush2.bf16.msra.mxu0 %v979
    %2261 = vmatprep.subr.bf16.mxu0 %v976
    %2262 = vmatpush2.bf16.msra.mxu0 %v975
    %2263 = vmatprep.subr.bf16.mxu0 %v972
    %2264 = vmatpush2.bf16.msra.mxu0 %v971
    %2265 = vmatprep.subr.bf16.mxu0 %v968
    %2266 = vmatpush2.bf16.msra.mxu0 %v967
    %2267 = vmatprep.subr.bf16.mxu0 %v964
    %2268 = vmatpush2.bf16.msra.mxu0 %v963
    %2269 = vmatprep.subr.bf16.mxu0 %v960
    %2270 = vmatpush2.bf16.msra.mxu0 %v959
    %2271 = vmatprep.mubr.bf16.mxu0 %v2079
    %2272 = vmatmul.mubr.bf16.gmra.mxu0 %v2197
    %v2273 = vpop.f32.mrf.mxu0
    %v2274 = vadd.f32 0.0, %v2273
    %v2275 = vpop.f32.mrf.mxu0
    %v2276 = vadd.f32 0.0, %v2275
    %v2277 = vpop.f32.mrf.mxu0
    %v2278 = vpop.f32.mrf.mxu0
    %2279 = vdwg.mxu0
    %v2280 = vadd.f32 %v434, %v2233
    %v2281 = vadd.f32 %v438, %v2235
    %v2282 = vadd.f32 %v442, %v2274
    %v2283 = vadd.f32 %v446, %v2276
    %v2284 = vxor.u32 %v2280, 2147483648
    %v2285 = vxor.u32 %v2281, 2147483648
    %v2286 = vxor.u32 %v2282, 2147483648
    %v2287 = vmul.f32 %v2284, 1.442695
    %v2288 = vpow.pop %v2287
    %v2289 = vmul.f32 %v2285, 1.442695
    %v2290 = vpow.pop %v2289
    %v2291 = vmul.f32 %v2286, 1.442695
    %v2292 = vpow.pop %v2291
    %v2293 = vadd.f32 %v2288, 1.0
    %v2294 = vadd.f32 %v2290, 1.0
    %v2295 = vadd.f32 %v2292, 1.0
    %v2296 = vrcp.pop %v2293
    %v2297 = vmul.f32 1.0, %v2296
    %v2298 = vrcp.pop %v2294
    %v2299 = vmul.f32 1.0, %v2298
    %v2300 = vrcp.pop %v2295
    %v2301 = vmul.f32 1.0, %v2300
    %v2302 = vtanh.pop %v2283
    %v2303 = vmul.f32 %v2299, %v2076
    %v2304 = vmul.f32 %v2297, %v2302
    %v2305 = vadd.f32 %v2303, %v2304
    %v2306 = vtanh.pop %v2305
    %v2307 = vmul.f32 %v2301, %v2306
    %v2308 = vpack.c.bf16 %v2307, %v2307
    %s2309 = smul.u32 6, 4
    %s2310 = smul.addr %s2309, 8
    %s2311 = scalar_lea.vmem [#allocation2], %s2310
    %v2312 = vld [vmem:[%s2311] sm:$0xff]
    %v2313 = vld [vmem:[%s2311 + $0x8] sm:$0xff]
    %v2314 = vld [vmem:[%s2311 + $0x10] sm:$0xff]
    %v2315 = vld [vmem:[%s2311 + $0x18] sm:$0xff]
    %2316 = vmatprep.subr.bf16.mxu0 %v587
    %2317 = vmatpush1.bf16.msra.mxu0 %v586
    %2318 = vmatprep.subr.bf16.mxu0 %v583
    %2319 = vmatpush1.bf16.msra.mxu0 %v582
    %2320 = vmatprep.subr.bf16.mxu0 %v579
    %2321 = vmatpush1.bf16.msra.mxu0 %v578
    %2322 = vmatprep.subr.bf16.mxu0 %v575
    %2323 = vmatpush1.bf16.msra.mxu0 %v574
    %2324 = vmatprep.subr.bf16.mxu0 %v571
    %2325 = vmatpush1.bf16.msra.mxu0 %v570
    %2326 = vmatprep.subr.bf16.mxu0 %v567
    %2327 = vmatpush1.bf16.msra.mxu0 %v566
    %2328 = vmatprep.subr.bf16.mxu0 %v563
    %2329 = vmatpush1.bf16.msra.mxu0 %v562
    %2330 = vmatprep.subr.bf16.mxu0 %v559
    %2331 = vmatpush1.bf16.msra.mxu0 %v558
    %2332 = vmatprep.subr.bf16.mxu0 0
    %2333 = vmatpush2.bf16.msra.mxu0 0
    %2334 = vmatprep.subr.bf16.mxu0 0
    %2335 = vmatpush2.bf16.msra.mxu0 0
    %2336 = vmatprep.subr.bf16.mxu0 0
    %2337 = vmatpush2.bf16.msra.mxu0 0
    %2338 = vmatprep.subr.bf16.mxu0 0
    %2339 = vmatpush2.bf16.msra.mxu0 0
    %2340 = vmatprep.subr.bf16.mxu0 0
    %2341 = vmatpush2.bf16.msra.mxu0 0
    %2342 = vmatprep.subr.bf16.mxu0 0
    %2343 = vmatpush2.bf16.msra.mxu0 0
    %2344 = vmatprep.subr.bf16.mxu0 0
    %2345 = vmatpush2.bf16.msra.mxu0 0
    %2346 = vmatprep.subr.bf16.mxu0 0
    %2347 = vmatpush2.bf16.msra.mxu0 0
    %2348 = vmatprep.mubr.bf16.mxu0 0
    %2349 = vmatmul.mubr.bf16.gmra.mxu0 %v2197
    %v2350 = vpop.f32.mrf.mxu0
    %v2351 = vadd.f32 0.0, %v2350
    %v2352 = vpop.f32.mrf.mxu0
    %v2353 = vadd.f32 0.0, %v2352
    %v2354 = vpop.f32.mrf.mxu0
    %v2355 = vpop.f32.mrf.mxu0
    %2356 = vdwg.mxu0
    %2357 = vmatprep.subr.bf16.mxu0 %v589
    %2358 = vmatpush1.bf16.msra.mxu0 %v588
    %2359 = vmatprep.subr.bf16.mxu0 %v585
    %2360 = vmatpush1.bf16.msra.mxu0 %v584
    %2361 = vmatprep.subr.bf16.mxu0 %v581
    %2362 = vmatpush1.bf16.msra.mxu0 %v580
    %2363 = vmatprep.subr.bf16.mxu0 %v577
    %2364 = vmatpush1.bf16.msra.mxu0 %v576
    %2365 = vmatprep.subr.bf16.mxu0 %v573
    %2366 = vmatpush1.bf16.msra.mxu0 %v572
    %2367 = vmatprep.subr.bf16.mxu0 %v569
    %2368 = vmatpush1.bf16.msra.mxu0 %v568
    %2369 = vmatprep.subr.bf16.mxu0 %v565
    %2370 = vmatpush1.bf16.msra.mxu0 %v564
    %2371 = vmatprep.subr.bf16.mxu0 %v561
    %2372 = vmatpush1.bf16.msra.mxu0 %v560
    %2373 = vmatprep.subr.bf16.mxu0 0
    %2374 = vmatpush2.bf16.msra.mxu0 0
    %2375 = vmatprep.subr.bf16.mxu0 0
    %2376 = vmatpush2.bf16.msra.mxu0 0
    %2377 = vmatprep.subr.bf16.mxu0 0
    %2378 = vmatpush2.bf16.msra.mxu0 0
    %2379 = vmatprep.subr.bf16.mxu0 0
    %2380 = vmatpush2.bf16.msra.mxu0 0
    %2381 = vmatprep.subr.bf16.mxu0 0
    %2382 = vmatpush2.bf16.msra.mxu0 0
    %2383 = vmatprep.subr.bf16.mxu0 0
    %2384 = vmatpush2.bf16.msra.mxu0 0
    %2385 = vmatprep.subr.bf16.mxu0 0
    %2386 = vmatpush2.bf16.msra.mxu0 0
    %2387 = vmatprep.subr.bf16.mxu0 0
    %2388 = vmatpush2.bf16.msra.mxu0 0
    %2389 = vmatprep.mubr.bf16.mxu0 0
    %2390 = vmatmul.mubr.bf16.gmra.mxu0 %v2197
    %v2391 = vpop.f32.mrf.mxu0
    %v2392 = vadd.f32 0.0, %v2391
    %v2393 = vpop.f32.mrf.mxu0
    %v2394 = vadd.f32 0.0, %v2393
    %v2395 = vpop.f32.mrf.mxu0
    %v2396 = vpop.f32.mrf.mxu0
    %2397 = vdwg.mxu0
    %v2398 = vadd.f32 %v2312, %v2351
    %v2399 = vadd.f32 %v2313, %v2353
    %v2400 = vadd.f32 %v2314, %v2392
    %v2401 = vadd.f32 %v2315, %v2394
    %v2402 = vxor.u32 %v2398, 2147483648
    %v2403 = vxor.u32 %v2399, 2147483648
    %v2404 = vxor.u32 %v2400, 2147483648
    %v2405 = vmul.f32 %v2402, 1.442695
    %v2406 = vpow.pop %v2405
    %v2407 = vmul.f32 %v2403, 1.442695
    %v2408 = vpow.pop %v2407
    %v2409 = vmul.f32 %v2404, 1.442695
    %v2410 = vpow.pop %v2409
    %v2411 = vadd.f32 %v2406, 1.0
    %v2412 = vadd.f32 %v2408, 1.0
    %v2413 = vadd.f32 %v2410, 1.0
    %v2414 = vrcp.pop %v2411
    %v2415 = vmul.f32 1.0, %v2414
    %v2416 = vrcp.pop %v2412
    %v2417 = vmul.f32 1.0, %v2416
    %v2418 = vrcp.pop %v2413
    %v2419 = vmul.f32 1.0, %v2418
    %v2420 = vtanh.pop %v2401
    %v2421 = vmul.f32 %v2417, %v2194
    %v2422 = vmul.f32 %v2415, %v2420
    %v2423 = vadd.f32 %v2421, %v2422
    %v2424 = vtanh.pop %v2423
    %v2425 = vmul.f32 %v2419, %v2424
    %v2426 = vpack.c.bf16 %v2425, %v2425
    %2427 = vmatprep.subr.bf16.mxu0 %v954
    %2428 = vmatpush1.bf16.msra.mxu0 %v953
    %2429 = vmatprep.subr.bf16.mxu0 %v950
    %2430 = vmatpush1.bf16.msra.mxu0 %v949
    %2431 = vmatprep.subr.bf16.mxu0 %v946
    %2432 = vmatpush1.bf16.msra.mxu0 %v945
    %2433 = vmatprep.subr.bf16.mxu0 %v942
    %2434 = vmatpush1.bf16.msra.mxu0 %v941
    %2435 = vmatprep.subr.bf16.mxu0 %v938
    %2436 = vmatpush1.bf16.msra.mxu0 %v937
    %2437 = vmatprep.subr.bf16.mxu0 %v934
    %2438 = vmatpush1.bf16.msra.mxu0 %v933
    %2439 = vmatprep.subr.bf16.mxu0 %v930
    %2440 = vmatpush1.bf16.msra.mxu0 %v929
    %2441 = vmatprep.subr.bf16.mxu0 %v926
    %2442 = vmatpush1.bf16.msra.mxu0 %v925
    %2443 = vmatprep.subr.bf16.mxu0 %v986
    %2444 = vmatpush2.bf16.msra.mxu0 %v985
    %2445 = vmatprep.subr.bf16.mxu0 %v982
    %2446 = vmatpush2.bf16.msra.mxu0 %v981
    %2447 = vmatprep.subr.bf16.mxu0 %v978
    %2448 = vmatpush2.bf16.msra.mxu0 %v977
    %2449 = vmatprep.subr.bf16.mxu0 %v974
    %2450 = vmatpush2.bf16.msra.mxu0 %v973
    %2451 = vmatprep.subr.bf16.mxu0 %v970
    %2452 = vmatpush2.bf16.msra.mxu0 %v969
    %2453 = vmatprep.subr.bf16.mxu0 %v966
    %2454 = vmatpush2.bf16.msra.mxu0 %v965
    %2455 = vmatprep.subr.bf16.mxu0 %v962
    %2456 = vmatpush2.bf16.msra.mxu0 %v961
    %2457 = vmatprep.subr.bf16.mxu0 %v958
    %2458 = vmatpush2.bf16.msra.mxu0 %v957
    %2459 = vmatprep.mubr.bf16.mxu0 %v2308
    %2460 = vmatmul.mubr.bf16.gmra.mxu0 %v2426
    %v2461 = vpop.f32.mrf.mxu0
    %v2462 = vadd.f32 0.0, %v2461
    %v2463 = vpop.f32.mrf.mxu0
    %v2464 = vadd.f32 0.0, %v2463
    %v2465 = vpop.f32.mrf.mxu0
    %v2466 = vpop.f32.mrf.mxu0
    %2467 = vdwg.mxu0
    %2468 = vmatprep.subr.bf16.mxu0 %v956
    %2469 = vmatpush1.bf16.msra.mxu0 %v955
    %2470 = vmatprep.subr.bf16.mxu0 %v952
    %2471 = vmatpush1.bf16.msra.mxu0 %v951
    %2472 = vmatprep.subr.bf16.mxu0 %v948
    %2473 = vmatpush1.bf16.msra.mxu0 %v947
    %2474 = vmatprep.subr.bf16.mxu0 %v944
    %2475 = vmatpush1.bf16.msra.mxu0 %v943
    %2476 = vmatprep.subr.bf16.mxu0 %v940
    %2477 = vmatpush1.bf16.msra.mxu0 %v939
    %2478 = vmatprep.subr.bf16.mxu0 %v936
    %2479 = vmatpush1.bf16.msra.mxu0 %v935
    %2480 = vmatprep.subr.bf16.mxu0 %v932
    %2481 = vmatpush1.bf16.msra.mxu0 %v931
    %2482 = vmatprep.subr.bf16.mxu0 %v928
    %2483 = vmatpush1.bf16.msra.mxu0 %v927
    %2484 = vmatprep.subr.bf16.mxu0 %v988
    %2485 = vmatpush2.bf16.msra.mxu0 %v987
    %2486 = vmatprep.subr.bf16.mxu0 %v984
    %2487 = vmatpush2.bf16.msra.mxu0 %v983
    %2488 = vmatprep.subr.bf16.mxu0 %v980
    %2489 = vmatpush2.bf16.msra.mxu0 %v979
    %2490 = vmatprep.subr.bf16.mxu0 %v976
    %2491 = vmatpush2.bf16.msra.mxu0 %v975
    %2492 = vmatprep.subr.bf16.mxu0 %v972
    %2493 = vmatpush2.bf16.msra.mxu0 %v971
    %2494 = vmatprep.subr.bf16.mxu0 %v968
    %2495 = vmatpush2.bf16.msra.mxu0 %v967
    %2496 = vmatprep.subr.bf16.mxu0 %v964
    %2497 = vmatpush2.bf16.msra.mxu0 %v963
    %2498 = vmatprep.subr.bf16.mxu0 %v960
    %2499 = vmatpush2.bf16.msra.mxu0 %v959
    %2500 = vmatprep.mubr.bf16.mxu0 %v2308
    %2501 = vmatmul.mubr.bf16.gmra.mxu0 %v2426
    %v2502 = vpop.f32.mrf.mxu0
    %v2503 = vadd.f32 0.0, %v2502
    %v2504 = vpop.f32.mrf.mxu0
    %v2505 = vadd.f32 0.0, %v2504
    %v2506 = vpop.f32.mrf.mxu0
    %v2507 = vpop.f32.mrf.mxu0
    %2508 = vdwg.mxu0
    %v2509 = vadd.f32 %v434, %v2462
    %v2510 = vadd.f32 %v438, %v2464
    %v2511 = vadd.f32 %v442, %v2503
    %v2512 = vadd.f32 %v446, %v2505
    %v2513 = vxor.u32 %v2509, 2147483648
    %v2514 = vxor.u32 %v2510, 2147483648
    %v2515 = vxor.u32 %v2511, 2147483648
    %v2516 = vmul.f32 %v2513, 1.442695
    %v2517 = vpow.pop %v2516
    %v2518 = vmul.f32 %v2514, 1.442695
    %v2519 = vpow.pop %v2518
    %v2520 = vmul.f32 %v2515, 1.442695
    %v2521 = vpow.pop %v2520
    %v2522 = vadd.f32 %v2517, 1.0
    %v2523 = vadd.f32 %v2519, 1.0
    %v2524 = vadd.f32 %v2521, 1.0
    %v2525 = vrcp.pop %v2522
    %v2526 = vmul.f32 1.0, %v2525
    %v2527 = vrcp.pop %v2523
    %v2528 = vmul.f32 1.0, %v2527
    %v2529 = vrcp.pop %v2524
    %v2530 = vmul.f32 1.0, %v2529
    %v2531 = vtanh.pop %v2512
    %v2532 = vmul.f32 %v2528, %v2305
    %v2533 = vmul.f32 %v2526, %v2531
    %v2534 = vadd.f32 %v2532, %v2533
    %v2535 = vtanh.pop %v2534
    %v2536 = vmul.f32 %v2530, %v2535
    %v2537 = vpack.c.bf16 %v2536, %v2536
    %s2538 = smul.u32 7, 4
    %s2539 = smul.addr %s2538, 8
    %s2540 = scalar_lea.vmem [#allocation2], %s2539
    %v2541 = vld [vmem:[%s2540] sm:$0xff]
    %v2542 = vld [vmem:[%s2540 + $0x8] sm:$0xff]
    %v2543 = vld [vmem:[%s2540 + $0x10] sm:$0xff]
    %v2544 = vld [vmem:[%s2540 + $0x18] sm:$0xff]
    %2545 = vmatprep.subr.bf16.mxu0 %v587
    %2546 = vmatpush1.bf16.msra.mxu0 %v586
    %2547 = vmatprep.subr.bf16.mxu0 %v583
    %2548 = vmatpush1.bf16.msra.mxu0 %v582
    %2549 = vmatprep.subr.bf16.mxu0 %v579
    %2550 = vmatpush1.bf16.msra.mxu0 %v578
    %2551 = vmatprep.subr.bf16.mxu0 %v575
    %2552 = vmatpush1.bf16.msra.mxu0 %v574
    %2553 = vmatprep.subr.bf16.mxu0 %v571
    %2554 = vmatpush1.bf16.msra.mxu0 %v570
    %2555 = vmatprep.subr.bf16.mxu0 %v567
    %2556 = vmatpush1.bf16.msra.mxu0 %v566
    %2557 = vmatprep.subr.bf16.mxu0 %v563
    %2558 = vmatpush1.bf16.msra.mxu0 %v562
    %2559 = vmatprep.subr.bf16.mxu0 %v559
    %2560 = vmatpush1.bf16.msra.mxu0 %v558
    %2561 = vmatprep.subr.bf16.mxu0 0
    %2562 = vmatpush2.bf16.msra.mxu0 0
    %2563 = vmatprep.subr.bf16.mxu0 0
    %2564 = vmatpush2.bf16.msra.mxu0 0
    %2565 = vmatprep.subr.bf16.mxu0 0
    %2566 = vmatpush2.bf16.msra.mxu0 0
    %2567 = vmatprep.subr.bf16.mxu0 0
    %2568 = vmatpush2.bf16.msra.mxu0 0
    %2569 = vmatprep.subr.bf16.mxu0 0
    %2570 = vmatpush2.bf16.msra.mxu0 0
    %2571 = vmatprep.subr.bf16.mxu0 0
    %2572 = vmatpush2.bf16.msra.mxu0 0
    %2573 = vmatprep.subr.bf16.mxu0 0
    %2574 = vmatpush2.bf16.msra.mxu0 0
    %2575 = vmatprep.subr.bf16.mxu0 0
    %2576 = vmatpush2.bf16.msra.mxu0 0
    %2577 = vmatprep.mubr.bf16.mxu0 0
    %2578 = vmatmul.mubr.bf16.gmra.mxu0 %v2426
    %v2579 = vpop.f32.mrf.mxu0
    %v2580 = vadd.f32 0.0, %v2579
    %v2581 = vpop.f32.mrf.mxu0
    %v2582 = vadd.f32 0.0, %v2581
    %v2583 = vpop.f32.mrf.mxu0
    %v2584 = vpop.f32.mrf.mxu0
    %2585 = vdwg.mxu0
    %2586 = vmatprep.subr.bf16.mxu0 %v589
    %2587 = vmatpush1.bf16.msra.mxu0 %v588
    %2588 = vmatprep.subr.bf16.mxu0 %v585
    %2589 = vmatpush1.bf16.msra.mxu0 %v584
    %2590 = vmatprep.subr.bf16.mxu0 %v581
    %2591 = vmatpush1.bf16.msra.mxu0 %v580
    %2592 = vmatprep.subr.bf16.mxu0 %v577
    %2593 = vmatpush1.bf16.msra.mxu0 %v576
    %2594 = vmatprep.subr.bf16.mxu0 %v573
    %2595 = vmatpush1.bf16.msra.mxu0 %v572
    %2596 = vmatprep.subr.bf16.mxu0 %v569
    %2597 = vmatpush1.bf16.msra.mxu0 %v568
    %2598 = vmatprep.subr.bf16.mxu0 %v565
    %2599 = vmatpush1.bf16.msra.mxu0 %v564
    %2600 = vmatprep.subr.bf16.mxu0 %v561
    %2601 = vmatpush1.bf16.msra.mxu0 %v560
    %2602 = vmatprep.subr.bf16.mxu0 0
    %2603 = vmatpush2.bf16.msra.mxu0 0
    %2604 = vmatprep.subr.bf16.mxu0 0
    %2605 = vmatpush2.bf16.msra.mxu0 0
    %2606 = vmatprep.subr.bf16.mxu0 0
    %2607 = vmatpush2.bf16.msra.mxu0 0
    %2608 = vmatprep.subr.bf16.mxu0 0
    %2609 = vmatpush2.bf16.msra.mxu0 0
    %2610 = vmatprep.subr.bf16.mxu0 0
    %2611 = vmatpush2.bf16.msra.mxu0 0
    %2612 = vmatprep.subr.bf16.mxu0 0
    %2613 = vmatpush2.bf16.msra.mxu0 0
    %2614 = vmatprep.subr.bf16.mxu0 0
    %2615 = vmatpush2.bf16.msra.mxu0 0
    %2616 = vmatprep.subr.bf16.mxu0 0
    %2617 = vmatpush2.bf16.msra.mxu0 0
    %2618 = vmatprep.mubr.bf16.mxu0 0
    %2619 = vmatmul.mubr.bf16.gmra.mxu0 %v2426
    %v2620 = vpop.f32.mrf.mxu0
    %v2621 = vadd.f32 0.0, %v2620
    %v2622 = vpop.f32.mrf.mxu0
    %v2623 = vadd.f32 0.0, %v2622
    %v2624 = vpop.f32.mrf.mxu0
    %v2625 = vpop.f32.mrf.mxu0
    %2626 = vdwg.mxu0
    %v2627 = vadd.f32 %v2541, %v2580
    %v2628 = vadd.f32 %v2542, %v2582
    %v2629 = vadd.f32 %v2543, %v2621
    %v2630 = vadd.f32 %v2544, %v2623
    %v2631 = vxor.u32 %v2627, 2147483648
    %v2632 = vxor.u32 %v2628, 2147483648
    %v2633 = vxor.u32 %v2629, 2147483648
    %v2634 = vmul.f32 %v2631, 1.442695
    %v2635 = vpow.pop %v2634
    %v2636 = vmul.f32 %v2632, 1.442695
    %v2637 = vpow.pop %v2636
    %v2638 = vmul.f32 %v2633, 1.442695
    %v2639 = vpow.pop %v2638
    %v2640 = vadd.f32 %v2635, 1.0
    %v2641 = vadd.f32 %v2637, 1.0
    %v2642 = vadd.f32 %v2639, 1.0
    %v2643 = vrcp.pop %v2640
    %v2644 = vmul.f32 1.0, %v2643
    %v2645 = vrcp.pop %v2641
    %v2646 = vmul.f32 1.0, %v2645
    %v2647 = vrcp.pop %v2642
    %v2648 = vmul.f32 1.0, %v2647
    %v2649 = vtanh.pop %v2630
    %v2650 = vmul.f32 %v2646, %v2423
    %v2651 = vmul.f32 %v2644, %v2649
    %v2652 = vadd.f32 %v2650, %v2651
    %v2653 = vtanh.pop %v2652
    %v2654 = vmul.f32 %v2648, %v2653
    %v2655 = vpack.c.bf16 %v2654, %v2654
    %2656 = vmatprep.subr.bf16.mxu0 %v954
    %2657 = vmatpush1.bf16.msra.mxu0 %v953
    %2658 = vmatprep.subr.bf16.mxu0 %v950
    %2659 = vmatpush1.bf16.msra.mxu0 %v949
    %2660 = vmatprep.subr.bf16.mxu0 %v946
    %2661 = vmatpush1.bf16.msra.mxu0 %v945
    %2662 = vmatprep.subr.bf16.mxu0 %v942
    %2663 = vmatpush1.bf16.msra.mxu0 %v941
    %2664 = vmatprep.subr.bf16.mxu0 %v938
    %2665 = vmatpush1.bf16.msra.mxu0 %v937
    %2666 = vmatprep.subr.bf16.mxu0 %v934
    %2667 = vmatpush1.bf16.msra.mxu0 %v933
    %2668 = vmatprep.subr.bf16.mxu0 %v930
    %2669 = vmatpush1.bf16.msra.mxu0 %v929
    %2670 = vmatprep.subr.bf16.mxu0 %v926
    %2671 = vmatpush1.bf16.msra.mxu0 %v925
    %2672 = vmatprep.subr.bf16.mxu0 %v986
    %2673 = vmatpush2.bf16.msra.mxu0 %v985
    %2674 = vmatprep.subr.bf16.mxu0 %v982
    %2675 = vmatpush2.bf16.msra.mxu0 %v981
    %2676 = vmatprep.subr.bf16.mxu0 %v978
    %2677 = vmatpush2.bf16.msra.mxu0 %v977
    %2678 = vmatprep.subr.bf16.mxu0 %v974
    %2679 = vmatpush2.bf16.msra.mxu0 %v973
    %2680 = vmatprep.subr.bf16.mxu0 %v970
    %2681 = vmatpush2.bf16.msra.mxu0 %v969
    %2682 = vmatprep.subr.bf16.mxu0 %v966
    %2683 = vmatpush2.bf16.msra.mxu0 %v965
    %2684 = vmatprep.subr.bf16.mxu0 %v962
    %2685 = vmatpush2.bf16.msra.mxu0 %v961
    %2686 = vmatprep.subr.bf16.mxu0 %v958
    %2687 = vmatpush2.bf16.msra.mxu0 %v957
    %2688 = vmatprep.mubr.bf16.mxu0 %v2537
    %2689 = vmatmul.mubr.bf16.gmra.mxu0 %v2655
    %v2690 = vpop.f32.mrf.mxu0
    %v2691 = vadd.f32 0.0, %v2690
    %v2692 = vpop.f32.mrf.mxu0
    %v2693 = vadd.f32 0.0, %v2692
    %v2694 = vpop.f32.mrf.mxu0
    %v2695 = vpop.f32.mrf.mxu0
    %2696 = vdwg.mxu0
    %2697 = vmatprep.subr.bf16.mxu0 %v956
    %2698 = vmatpush1.bf16.msra.mxu0 %v955
    %2699 = vmatprep.subr.bf16.mxu0 %v952
    %2700 = vmatpush1.bf16.msra.mxu0 %v951
    %2701 = vmatprep.subr.bf16.mxu0 %v948
    %2702 = vmatpush1.bf16.msra.mxu0 %v947
    %2703 = vmatprep.subr.bf16.mxu0 %v944
    %2704 = vmatpush1.bf16.msra.mxu0 %v943
    %2705 = vmatprep.subr.bf16.mxu0 %v940
    %2706 = vmatpush1.bf16.msra.mxu0 %v939
    %2707 = vmatprep.subr.bf16.mxu0 %v936
    %2708 = vmatpush1.bf16.msra.mxu0 %v935
    %2709 = vmatprep.subr.bf16.mxu0 %v932
    %2710 = vmatpush1.bf16.msra.mxu0 %v931
    %2711 = vmatprep.subr.bf16.mxu0 %v928
    %2712 = vmatpush1.bf16.msra.mxu0 %v927
    %2713 = vmatprep.subr.bf16.mxu0 %v988
    %2714 = vmatpush2.bf16.msra.mxu0 %v987
    %2715 = vmatprep.subr.bf16.mxu0 %v984
    %2716 = vmatpush2.bf16.msra.mxu0 %v983
    %2717 = vmatprep.subr.bf16.mxu0 %v980
    %2718 = vmatpush2.bf16.msra.mxu0 %v979
    %2719 = vmatprep.subr.bf16.mxu0 %v976
    %2720 = vmatpush2.bf16.msra.mxu0 %v975
    %2721 = vmatprep.subr.bf16.mxu0 %v972
    %2722 = vmatpush2.bf16.msra.mxu0 %v971
    %2723 = vmatprep.subr.bf16.mxu0 %v968
    %2724 = vmatpush2.bf16.msra.mxu0 %v967
    %2725 = vmatprep.subr.bf16.mxu0 %v964
    %2726 = vmatpush2.bf16.msra.mxu0 %v963
    %2727 = vmatprep.subr.bf16.mxu0 %v960
    %2728 = vmatpush2.bf16.msra.mxu0 %v959
    %2729 = vmatprep.mubr.bf16.mxu0 %v2537
    %2730 = vmatmul.mubr.bf16.gmra.mxu0 %v2655
    %v2731 = vpop.f32.mrf.mxu0
    %v2732 = vadd.f32 0.0, %v2731
    %v2733 = vpop.f32.mrf.mxu0
    %v2734 = vadd.f32 0.0, %v2733
    %v2735 = vpop.f32.mrf.mxu0
    %v2736 = vpop.f32.mrf.mxu0
    %2737 = vdwg.mxu0
    %v2738 = vadd.f32 %v434, %v2691
    %v2739 = vadd.f32 %v438, %v2693
    %v2740 = vadd.f32 %v442, %v2732
    %v2741 = vadd.f32 %v446, %v2734
    %v2742 = vxor.u32 %v2738, 2147483648
    %v2743 = vxor.u32 %v2739, 2147483648
    %v2744 = vxor.u32 %v2740, 2147483648
    %v2745 = vmul.f32 %v2742, 1.442695
    %v2746 = vpow.pop %v2745
    %v2747 = vmul.f32 %v2743, 1.442695
    %v2748 = vpow.pop %v2747
    %v2749 = vmul.f32 %v2744, 1.442695
    %v2750 = vpow.pop %v2749
    %v2751 = vadd.f32 %v2746, 1.0
    %v2752 = vadd.f32 %v2748, 1.0
    %v2753 = vadd.f32 %v2750, 1.0
    %v2754 = vrcp.pop %v2751
    %v2755 = vmul.f32 1.0, %v2754
    %v2756 = vrcp.pop %v2752
    %v2757 = vmul.f32 1.0, %v2756
    %v2758 = vrcp.pop %v2753
    %v2759 = vmul.f32 1.0, %v2758
    %v2760 = vtanh.pop %v2741
    %v2761 = vmul.f32 %v2757, %v2534
    %v2762 = vmul.f32 %v2755, %v2760
    %v2763 = vadd.f32 %v2761, %v2762
    %v2764 = vtanh.pop %v2763
    %v2765 = vmul.f32 %v2759, %v2764
    %v2766 = vpack.c.bf16 %v2765, %v2765
    %2767 = vst [vmem:[#allocation3] sm:$0xf] %v2655
    %2768 = vst [vmem:[#allocation4] sm:$0xff] %v2652
    %2769 = vst [vmem:[#allocation5] sm:$0xf] %v2766
    %2770 = vst [vmem:[#allocation6] sm:$0xff] %v2763
    // Predicated region
    $region46: #{lstm_model_forward.1} parent=1 // pred_check
      %p2771 = pneg %p58
    $region47: #{lstm_model_forward.1} parent=1 // pred_check_branch
      %2773 = sbr.rel (%p2771) target = $region49
    $region48: #{lstm_model_forward.1} parent=1 // pred_region
      %v2774 = vunpack.c.l.bf16 %v2766
      %v2775 = vld [vmem:[%s6] sm:$0xff]
      %v2776 = vld [vmem:[%s6 + $0x8] sm:$0xff]
      %v2777 = vld [vmem:[%s6 + $0x10] sm:$0xff]
      %v2778 = vld [vmem:[%s6 + $0x18] sm:$0xff]
      %v2779 = vld [vmem:[%s6 + $0x20] sm:$0xff]
      %v2780 = vld [vmem:[%s6 + $0x28] sm:$0xff]
      %v2781 = vld [vmem:[%s6 + $0x30] sm:$0xff]
      %v2782 = vld [vmem:[%s6 + $0x38] sm:$0xff]
      %v2783 = vld [vmem:[%s6 + $0x40] sm:$0xff]
      %v2784 = vld [vmem:[%s6 + $0x48] sm:$0xff]
      %v2785 = vld [vmem:[%s6 + $0x50] sm:$0xff]
      %v2786 = vld [vmem:[%s6 + $0x58] sm:$0xff]
      %v2787 = vld [vmem:[%s6 + $0x60] sm:$0xff]
      %v2788 = vld [vmem:[%s6 + $0x68] sm:$0xff]
      %v2789 = vld [vmem:[%s6 + $0x70] sm:$0xff]
      %v2790 = vld [vmem:[%s6 + $0x78] sm:$0xff]
      %v2791 = vld [vmem:[%s7] sm:$0x1]
      %v2793 = vlaneseq
      %v2794 = vshrl.u32 %v2793, 7
      %v2795 = vsub.s32 0, %v2794
      %v2796 = vrot.slane %v2791, %v2795
      %2798 = vmatprep.subr.mxu0 0.0
      %2799 = vmatpush1.msra.mxu0 %v2790
      %2800 = vmatprep.subr.mxu0 0.0
      %2801 = vmatpush1.msra.mxu0 %v2789
      %2802 = vmatprep.subr.mxu0 0.0
      %2803 = vmatpush1.msra.mxu0 %v2788
      %2804 = vmatprep.subr.mxu0 0.0
      %2805 = vmatpush1.msra.mxu0 %v2787
      %2806 = vmatprep.subr.mxu0 0.0
      %2807 = vmatpush1.msra.mxu0 %v2786
      %2808 = vmatprep.subr.mxu0 0.0
      %2809 = vmatpush1.msra.mxu0 %v2785
      %2810 = vmatprep.subr.mxu0 0.0
      %2811 = vmatpush1.msra.mxu0 %v2784
      %2812 = vmatprep.subr.mxu0 0.0
      %2813 = vmatpush1.msra.mxu0 %v2783
      %2814 = vmatprep.subr.mxu0 0.0
      %2815 = vmatpush1.msra.mxu0 %v2782
      %2816 = vmatprep.subr.mxu0 0.0
      %2817 = vmatpush1.msra.mxu0 %v2781
      %2818 = vmatprep.subr.mxu0 0.0
      %2819 = vmatpush1.msra.mxu0 %v2780
      %2820 = vmatprep.subr.mxu0 0.0
      %2821 = vmatpush1.msra.mxu0 %v2779
      %2822 = vmatprep.subr.mxu0 0.0
      %2823 = vmatpush1.msra.mxu0 %v2778
      %2824 = vmatprep.subr.mxu0 0.0
      %2825 = vmatpush1.msra.mxu0 %v2777
      %2826 = vmatprep.subr.mxu0 0.0
      %2827 = vmatpush1.msra.mxu0 %v2776
      %2828 = vmatprep.subr.mxu0 0.0
      %2829 = vmatpush1.msra.mxu0 %v2775
      %2830 = vmatprep.subr.mxu0 0.0
      %2831 = vmatpush2.msra.mxu0 0.0
      %2832 = vmatprep.subr.mxu0 0.0
      %2833 = vmatpush2.msra.mxu0 0.0
      %2834 = vmatprep.subr.mxu0 0.0
      %2835 = vmatpush2.msra.mxu0 0.0
      %2836 = vmatprep.subr.mxu0 0.0
      %2837 = vmatpush2.msra.mxu0 0.0
      %2838 = vmatprep.subr.mxu0 0.0
      %2839 = vmatpush2.msra.mxu0 0.0
      %2840 = vmatprep.subr.mxu0 0.0
      %2841 = vmatpush2.msra.mxu0 0.0
      %2842 = vmatprep.subr.mxu0 0.0
      %2843 = vmatpush2.msra.mxu0 0.0
      %2844 = vmatprep.subr.mxu0 0.0
      %2845 = vmatpush2.msra.mxu0 0.0
      %2846 = vmatprep.subr.mxu0 0.0
      %2847 = vmatpush2.msra.mxu0 0.0
      %2848 = vmatprep.subr.mxu0 0.0
      %2849 = vmatpush2.msra.mxu0 0.0
      %2850 = vmatprep.subr.mxu0 0.0
      %2851 = vmatpush2.msra.mxu0 0.0
      %2852 = vmatprep.subr.mxu0 0.0
      %2853 = vmatpush2.msra.mxu0 0.0
      %2854 = vmatprep.subr.mxu0 0.0
      %2855 = vmatpush2.msra.mxu0 0.0
      %2856 = vmatprep.subr.mxu0 0.0
      %2857 = vmatpush2.msra.mxu0 0.0
      %2858 = vmatprep.subr.mxu0 0.0
      %2859 = vmatpush2.msra.mxu0 0.0
      %2860 = vmatprep.subr.mxu0 0.0
      %2861 = vmatpush2.msra.mxu0 0.0
      %2862 = vmatprep.mubr.f32.mxu0 0.0
      %2863 = vmatmul.mubr.f32.gmra.mxu0 %v2774
      %v2864 = vpop.f32.mrf.mxu0
      %v2865 = vadd.f32 %v2796, %v2864
      %v2866 = vpop.f32.mrf.mxu0
      %2867 = vdwg.mxu0
      %vm2868 = vcmask 15360
      %2869 = vst.msk [vmem:[%s8] sm:$0xff] %vm2868, %v2865
    $region49: #{lstm_model_forward.1} parent=1 // pred_fallthru
      _
    // Predicated region
    $region50: #{lstm_model_forward.1} parent=1 // pred_check
      _
    $region51: #{lstm_model_forward.1} parent=1 // pred_check_branch
      %2871 = sbr.rel (0) target = $region53
    $region52: #{lstm_model_forward.1} parent=1 // pred_region
      _
    $region53: #{lstm_model_forward.1} parent=1 // pred_fallthru
      _
    // Predicated region
    $region54: #{lstm_model_forward.1} parent=1 // pred_check
      _
    $region55: #{lstm_model_forward.1} parent=1 // pred_check_branch
      %2873 = sbr.rel (0) target = $region57
    $region56: #{lstm_model_forward.1} parent=1 // pred_region
      _
    $region57: #{lstm_model_forward.1} parent=1 // pred_fallthru
      _
    %2874 = vsyncpa [#allocation8], 1
    %2875 = vsyncpa [#allocation10], 1

</llo_original>
